<compile_context>
chip_gen: v5e
topology: v5e:2x2
jax: 0.10.0
libtpu: 0.0.40
codegen_flags: <defaults>
</compile_context>

<pallas_src>
import functools

import jax
import jax.numpy as jnp
from jax import lax
from jax.experimental import pallas as pl
from jax.experimental.pallas import tpu as pltpu


def _coor_embedding_kernel(coors_t_ref, xw_ref, yw_ref, out_t_ref, *, emb_dim, num_extra):
    """One grid step = TM coordinate rows, processed in transposed (lane-dense) layout.

    coors_t_ref : (C, TM)            f32   transposed coordinate block
    xw_ref      : (3*D, num_x)       bf16  x table, hi/mid/lo pieces stacked on rows
    yw_ref      : (3*D, num_y)       bf16  y table, hi/mid/lo pieces stacked on rows
    out_t_ref   : (2*D + C-2, TM)    f32   transposed output block
    """
    coors_t = coors_t_ref[...]                                  # (C, TM)
    tm = coors_t.shape[1]
    num_x = xw_ref.shape[1]
    num_y = yw_ref.shape[1]
    d = emb_dim

    # .long() truncation semantics; kept as (1, TM) rows (lane axis = N).
    kx = coors_t[0:1, :].astype(jnp.int32)                      # (1, TM)
    ky = coors_t[1:2, :].astype(jnp.int32)                      # (1, TM)

    # Split per-table one-hots sharing a single iota; 0/1 is exact in bf16.
    iota = lax.broadcasted_iota(jnp.int32, (num_x, tm), 0)      # (num_x, TM)
    onehot_x = (iota == kx).astype(jnp.bfloat16)                # (num_x, TM)
    if num_y == num_x:
        iota_y = iota                                           # shared (single iota/step)
    else:
        iota_y = lax.broadcasted_iota(jnp.int32, (num_y, tm), 0)
    onehot_y = (iota_y == ky).astype(jnp.bfloat16)              # (num_y, TM)

    # One native bf16 MXU pass per table: (3D, K) @ (K, TM) -> (3D, TM) f32.
    # The hi/mid/lo pieces ride in the same 128-row MXU block, so this costs the same
    # as a single-piece pass while recovering the full f32 weight on summation.
    px = jnp.dot(xw_ref[...], onehot_x, preferred_element_type=jnp.float32)
    py = jnp.dot(yw_ref[...], onehot_y, preferred_element_type=jnp.float32)

    out_t_ref[0:d, :] = px[0:d] + px[d:2 * d] + px[2 * d:3 * d]          # kx_emb rows
    out_t_ref[d:2 * d, :] = py[0:d] + py[d:2 * d] + py[2 * d:3 * d]      # ky_emb rows
    if num_extra > 0:
        out_t_ref[2 * d:, :] = coors_t[2:, :]                            # pass-through


def _stack_bf16_split(w):
    """f32 (num, D) table -> (3*D, num) bf16: hi/mid/lo pieces stacked on the row axis.

    hi + mid + lo == w to within float32 rounding (usually bit-exact), so a single
    bf16 matmul against an exact-in-bf16 one-hot reproduces the f32 gather.
    """
    w = w.astype(jnp.float32)
    hi = w.astype(jnp.bfloat16)
    r1 = w - hi.astype(jnp.float32)
    mid = r1.astype(jnp.bfloat16)
    r2 = r1 - mid.astype(jnp.float32)
    lo = r2.astype(jnp.bfloat16)
    return jnp.concatenate([hi.T, mid.T, lo.T], axis=0)         # (3*D, num)


def _pick_tile_n(n, max_tile=2048):
    """Tile of N: multiple of 128, capped, and >= 2 grid steps (v7x megacore)."""
    half = (n + 1) // 2
    tile = ((half + 127) // 128) * 128
    return max(128, min(max_tile, tile))


def coor_embedding_forward(coors_kspace, x_weight, y_weight, *,
                           max_tile_n=2048, min_pallas_rows=2048):
    """Pallas implementation of coor_embedding.forward.

    Returns (coord_features, x_weight, y_weight), same as the PyTorch module.
    """
    n, c = coors_kspace.shape
    num_x, d = x_weight.shape
    num_y, d_y = y_weight.shape
    assert d == d_y, "x/y embeddings must share embedding_dim"
    num_extra = c - 2
    out_dim = 2 * d + num_extra

    # Small-N dispatch: a fused XLA gather beats launch + transpose overhead.
    if n < min_pallas_rows:
        kx = coors_kspace[:, 0].astype(jnp.int32)
        ky = coors_kspace[:, 1].astype(jnp.int32)
        parts = [jnp.take(x_weight, kx, axis=0), jnp.take(y_weight, ky, axis=0)]
        if num_extra > 0:
            parts.append(coors_kspace[:, 2:].astype(jnp.float32))
        return jnp.concatenate(parts, axis=1), x_weight, y_weight

    # Host prep: hi/mid/lo bf16 weight stacks (tiny), one transpose of the coords.
    xw_stack = _stack_bf16_split(x_weight)                      # (3*D, num_x) bf16
    yw_stack = _stack_bf16_split(y_weight)                      # (3*D, num_y) bf16
    coors_t = coors_kspace.astype(jnp.float32).T                # (C, N) — single pass

    tile_n = _pick_tile_n(n, max_tile_n)
    grid = (pl.cdiv(n, tile_n),)                                # ragged tail masked by Pallas

    kernel = functools.partial(_coor_embedding_kernel, emb_dim=d, num_extra=num_extra)

    out_t = pl.pallas_call(
        kernel,
        out_shape=jax.ShapeDtypeStruct((out_dim, n), jnp.float32),
        grid=grid,
        in_specs=[
            # (C, TM) coordinate tile, pipelined over N (lane axis).
            pl.BlockSpec((c, tile_n), lambda i: (0, i)),
            # Full weight stacks, resident across all grid steps (index map constant).
            pl.BlockSpec((3 * d, num_x), lambda i: (0, 0)),
            pl.BlockSpec((3 * d, num_y), lambda i: (0, 0)),
        ],
        out_specs=pl.BlockSpec((out_dim, tile_n), lambda i: (0, i)),
        compiler_params=pltpu.CompilerParams(
            dimension_semantics=("parallel",),       # shard row tiles across TCs (v7x)
            vmem_limit_bytes=32 * 1024 * 1024,       # safe on v5e/v6e/v7x; ~7 MB live
        ),
    )(coors_t, xw_stack, yw_stack)

    # Back to the module's (N, out_dim) contract (consumers accepting the transposed
    # (out_dim, N) slab could skip this single XLA pass).
    return out_t.T, x_weight, y_weight


def init_params(key, num_x_coords=320, num_y_coords=320, embedding_dim=3):
    """Deterministic init matching nn.Embedding(padding_idx=0): N(0,1), row 0 zeroed."""
    kx, ky = jax.random.split(key)
    x_w = jax.random.normal(kx, (num_x_coords, embedding_dim), dtype=jnp.float32)
    y_w = jax.random.normal(ky, (num_y_coords, embedding_dim), dtype=jnp.float32)
    x_w = x_w.at[0].set(0.0)   # padding_idx=0
    y_w = y_w.at[0].set(0.0)   # padding_idx=0
    return x_w, y_w


def _reference(coors, x_w, y_w):
    kx = coors[:, 0].astype(jnp.int32)
    ky = coors[:, 1].astype(jnp.int32)
    return jnp.concatenate([x_w[kx], y_w[ky], coors[:, 2:]], axis=1)


if __name__ == "__main__":
    key = jax.random.PRNGKey(0)
    k_params, k_idx, k_extra, k_idx2, k_extra2 = jax.random.split(key, 5)

    num_x_coords, num_y_coords, embedding_dim = 320, 320, 3
    x_weight, y_weight = init_params(k_params, num_x_coords, num_y_coords, embedding_dim)

    # --- Pallas path: N=3000, C=5 -> tile_n=1536, grid=2 (ragged last tile). ---
    N, C = 3000, 5
    idx = jax.random.randint(k_idx, (N, 2), minval=0, maxval=num_x_coords)
    idx = idx.at[0].set(jnp.array([0, 0]))  # exercise padding_idx row
    extras = jax.random.normal(k_extra, (N, C - 2), dtype=jnp.float32)
    coors_kspace = jnp.concatenate([idx.astype(jnp.float32), extras], axis=1)  # (N, C)

    coord_features, xw_out, yw_out = coor_embedding_forward(
        coors_kspace, x_weight, y_weight)
    coord_features = jax.block_until_ready(coord_features)

    ref = _reference(coors_kspace, x_weight, y_weight)
    assert coord_features.shape == (N, 2 * embedding_dim + C - 2)
    assert jnp.allclose(coord_features, ref, atol=1e-6, rtol=1e-6), "mismatch vs reference"
    assert jnp.allclose(xw_out, x_weight) and jnp.allclose(yw_out, y_weight)

    # --- Small-N dispatch path (plain XLA gather), N=300. ---
    N2 = 300
    idx2 = jax.random.randint(k_idx2, (N2, 2), minval=0, maxval=num_x_coords)
    extras2 = jax.random.normal(k_extra2, (N2, C - 2), dtype=jnp.float32)
    coors2 = jnp.concatenate([idx2.astype(jnp.float32), extras2], axis=1)
    small_out, _, _ = coor_embedding_forward(coors2, x_weight, y_weight)
    small_out = jax.block_until_ready(small_out)
    assert jnp.allclose(small_out, _reference(coors2, x_weight, y_weight),
                        atol=1e-6, rtol=1e-6), "small-N fallback mismatch"

    print("KERNEL_OK")
</pallas_src>

<mosaic_0001>
module attributes {stable_mosaic.version = 11 : i64} {
  func.func @_coor_embedding_kernel(%arg0: i32, %arg1: memref<5x1536xf32, #tpu.memory_space<vmem>>, %arg2: memref<9x320xbf16, #tpu.memory_space<vmem>>, %arg3: memref<9x320xbf16, #tpu.memory_space<vmem>>, %arg4: memref<9x1536xf32, #tpu.memory_space<vmem>>) attributes {dimension_semantics = [#tpu.dimension_semantics<parallel>], iteration_bounds = array<i64: 2>, scalar_prefetch = 0 : i64, scratch_operands = 0 : i64, tpu.core_type = #tpu.core_type<tc>, window_params = [{transform_indices = @transform_0, window_bounds = array<i64: 5, 1536>}, {pipeline_mode = #tpu.pipeline_mode<synchronous>, transform_indices = @transform_1, window_bounds = array<i64: 9, 320>}, {pipeline_mode = #tpu.pipeline_mode<synchronous>, transform_indices = @transform_2, window_bounds = array<i64: 9, 320>}, {transform_indices = @transform_3, window_bounds = array<i64: 9, 1536>}]} {
    %c0 = arith.constant 0 : index
    %c0_0 = arith.constant 0 : index
    %0 = vector.load %arg1[%c0, %c0_0] : memref<5x1536xf32, #tpu.memory_space<vmem>>, vector<5x1536xf32>
    %1 = vector.extract_strided_slice %0 {offsets = [0, 0], sizes = [1, 1536], strides = [1, 1]} : vector<5x1536xf32> to vector<1x1536xf32>
    %2 = arith.fptosi %1 : vector<1x1536xf32> to vector<1x1536xi32>
    %3 = vector.extract_strided_slice %0 {offsets = [1, 0], sizes = [1, 1536], strides = [1, 1]} : vector<5x1536xf32> to vector<1x1536xf32>
    %4 = arith.fptosi %3 : vector<1x1536xf32> to vector<1x1536xi32>
    %5 = tpu.iota {dimensions = array<i32: 0>} : vector<320x1536xi32>
    %6 = vector.broadcast %2 : vector<1x1536xi32> to vector<320x1536xi32>
    %7 = arith.cmpi eq, %5, %6 : vector<320x1536xi32>
    %8 = arith.extui %7 : vector<320x1536xi1> to vector<320x1536xi32>
    %9 = arith.sitofp %8 : vector<320x1536xi32> to vector<320x1536xf32>
    %10 = arith.truncf %9 : vector<320x1536xf32> to vector<320x1536xbf16>
    %11 = vector.broadcast %4 : vector<1x1536xi32> to vector<320x1536xi32>
    %12 = arith.cmpi eq, %5, %11 : vector<320x1536xi32>
    %13 = arith.extui %12 : vector<320x1536xi1> to vector<320x1536xi32>
    %14 = arith.sitofp %13 : vector<320x1536xi32> to vector<320x1536xf32>
    %15 = arith.truncf %14 : vector<320x1536xf32> to vector<320x1536xbf16>
    %c0_1 = arith.constant 0 : index
    %c0_2 = arith.constant 0 : index
    %16 = vector.load %arg2[%c0_1, %c0_2] : memref<9x320xbf16, #tpu.memory_space<vmem>>, vector<9x320xbf16>
    %cst = arith.constant dense<0.000000e+00> : vector<9x1536xf32>
    %17 = tpu.matmul %16, %10, %cst {dimension_numbers = #tpu.dot_dimension_numbers<[1], [0], [0], [1], [0, 0, 1, 1], [], []>} : vector<9x320xbf16>, vector<320x1536xbf16>, vector<9x1536xf32> -> vector<9x1536xf32>
    %c0_3 = arith.constant 0 : index
    %c0_4 = arith.constant 0 : index
    %18 = vector.load %arg3[%c0_3, %c0_4] : memref<9x320xbf16, #tpu.memory_space<vmem>>, vector<9x320xbf16>
    %cst_5 = arith.constant dense<0.000000e+00> : vector<9x1536xf32>
    %19 = tpu.matmul %18, %15, %cst_5 {dimension_numbers = #tpu.dot_dimension_numbers<[1], [0], [0], [1], [0, 0, 1, 1], [], []>} : vector<9x320xbf16>, vector<320x1536xbf16>, vector<9x1536xf32> -> vector<9x1536xf32>
    %20 = vector.extract_strided_slice %17 {offsets = [0, 0], sizes = [3, 1536], strides = [1, 1]} : vector<9x1536xf32> to vector<3x1536xf32>
    %21 = vector.extract_strided_slice %17 {offsets = [3, 0], sizes = [3, 1536], strides = [1, 1]} : vector<9x1536xf32> to vector<3x1536xf32>
    %22 = arith.addf %20, %21 : vector<3x1536xf32>
    %23 = vector.extract_strided_slice %17 {offsets = [6, 0], sizes = [3, 1536], strides = [1, 1]} : vector<9x1536xf32> to vector<3x1536xf32>
    %24 = arith.addf %22, %23 : vector<3x1536xf32>
    %c0_6 = arith.constant 0 : index
    %c0_7 = arith.constant 0 : index
    %25 = vector.load %arg4[%c0_6, %c0_7] : memref<9x1536xf32, #tpu.memory_space<vmem>>, vector<3x1536xf32>
    tpu.vector_store %arg4[%c0_6, %c0_7], %24 {strides = array<i32>} : memref<9x1536xf32, #tpu.memory_space<vmem>>, vector<3x1536xf32>,
    %26 = vector.extract_strided_slice %19 {offsets = [0, 0], sizes = [3, 1536], strides = [1, 1]} : vector<9x1536xf32> to vector<3x1536xf32>
    %27 = vector.extract_strided_slice %19 {offsets = [3, 0], sizes = [3, 1536], strides = [1, 1]} : vector<9x1536xf32> to vector<3x1536xf32>
    %28 = arith.addf %26, %27 : vector<3x1536xf32>
    %29 = vector.extract_strided_slice %19 {offsets = [6, 0], sizes = [3, 1536], strides = [1, 1]} : vector<9x1536xf32> to vector<3x1536xf32>
    %30 = arith.addf %28, %29 : vector<3x1536xf32>
    %c3 = arith.constant 3 : index
    %c0_8 = arith.constant 0 : index
    %31 = vector.load %arg4[%c3, %c0_8] : memref<9x1536xf32, #tpu.memory_space<vmem>>, vector<3x1536xf32>
    tpu.vector_store %arg4[%c3, %c0_8], %30 {strides = array<i32>} : memref<9x1536xf32, #tpu.memory_space<vmem>>, vector<3x1536xf32>,
    %32 = vector.extract_strided_slice %0 {offsets = [2, 0], sizes = [3, 1536], strides = [1, 1]} : vector<5x1536xf32> to vector<3x1536xf32>
    %c6 = arith.constant 6 : index
    %c0_9 = arith.constant 0 : index
    %33 = vector.load %arg4[%c6, %c0_9] : memref<9x1536xf32, #tpu.memory_space<vmem>>, vector<3x1536xf32>
    tpu.vector_store %arg4[%c6, %c0_9], %32 {strides = array<i32>} : memref<9x1536xf32, #tpu.memory_space<vmem>>, vector<3x1536xf32>,
    return
  }
  func.func @transform_0(%arg0: i32) -> (i32, i32) {
    %c0_i32 = arith.constant 0 : i32
    %c0_i32_0 = arith.constant 0 : i32
    return %c0_i32, %arg0 : i32, i32
  }
  func.func @transform_1(%arg0: i32) -> (i32, i32) {
    %c0_i32 = arith.constant 0 : i32
    %c0_i32_0 = arith.constant 0 : i32
    %c0_i32_1 = arith.constant 0 : i32
    return %c0_i32, %c0_i32_0 : i32, i32
  }
  func.func @transform_2(%arg0: i32) -> (i32, i32) {
    %c0_i32 = arith.constant 0 : i32
    %c0_i32_0 = arith.constant 0 : i32
    %c0_i32_1 = arith.constant 0 : i32
    return %c0_i32, %c0_i32_0 : i32, i32
  }
  func.func @transform_3(%arg0: i32) -> (i32, i32) {
    %c0_i32 = arith.constant 0 : i32
    %c0_i32_0 = arith.constant 0 : i32
    return %c0_i32, %arg0 : i32, i32
  }
}

</mosaic_0001>

<llo_original>
// kernel: tpu_custom_call.1
$region0: #{tpu_custom_call.1}
  #allocation0 [shape = 'u32[]', space=smem, size = 0x4, offset = 0x4, fixed_abs, tag = 'smem constant byte address 0x4 - core index']
  #allocation1 [shape = 'u32[72,128]{1,0:T(1,128)}', space=vmem, size = 0x9000, scoped, tag = 'internal scratch']
  %s0 = inlined_call_operand.hbm [shape: f32[5,3000], index: 0, kind: input, shape index: {}]
  %s1 = inlined_call_operand.hbm [shape: bf16[9,320], index: 1, kind: input, shape index: {}]
  %s2 = inlined_call_operand.hbm [shape: bf16[9,320], index: 2, kind: input, shape index: {}]
  %s3 = inlined_call_operand.hbm [shape: f32[9,3000], index: 3, kind: output, shape index: {}]
  %s4 = sld [smem:[#allocation0]]
  $region57: #{tpu_custom_call.1} parent=0
    _
  %s6 = ssub.s32 1, %s4
  %s7 = scalar_select 0, %s6, %s4
  $region1: #{tpu_custom_call.1} parent=0
    #allocation2 [shape = 'u8[98304]{0}', space=vmem, size = 0x18000, scoped, tag = 'input window, operand 0']
    #allocation3 [shape = 's32[2]{0}', space=sflag, size = 0x8, scoped, tag = 'scoped memory for tpu_custom_call.1']
    #allocation4 [shape = 's32[2]{0}', space=sflag, size = 0x8, scoped, tag = 'scoped memory for tpu_custom_call.1']
    #allocation5 [shape = 'u8[12288]{0}', space=vmem, size = 0x3000, scoped, tag = 'input window, operand 1, single buffered']
    #allocation6 [shape = 's32[1]{0}', space=sflag, size = 0x4, scoped, tag = 'scoped memory for tpu_custom_call.1']
    #allocation7 [shape = 'u8[12288]{0}', space=vmem, size = 0x3000, scoped, tag = 'input window, operand 2, single buffered']
    #allocation8 [shape = 'u8[196608]{0}', space=vmem, size = 0x30000, scoped, tag = 'output window, operand 0']
    %8 = vsyncpa [#allocation3], 0
    %s9 = scalar_lea.sflag [#allocation3], 1
    %10 = vsyncpa %s9, 0
    %11 = vsyncpa [#allocation6], 0
    %12 = vsyncpa [#allocation4], 0
    %s13 = scalar_lea.sflag [#allocation4], 1
    %14 = vsyncpa %s13, 0
    loop: start=0, step=1, limit=4
    $region2: #{tpu_custom_call.1} parent=1 // loop_pre_header
      _
    $region3: #{tpu_custom_call.1} parent=1 // loop_header
      %s16 = sphi 0, %s20
      %p17 = scmp.ge.s32.totalorder %s16, 4
      %s26 = sphi 0, %s28
      %s29 = sphi 0, %s26
      %s30 = sphi 0, %s29
      %s46 = sphi 0, %s30
      %s50 = sphi 0, %s50
      %s52 = sphi 0, %s50
      %s53 = sphi 0, %s52
      %s67 = sphi 0, %s53
      %s71 = sphi 0, %s71
      %s73 = sphi 0, %s71
      %s74 = sphi 0, %s73
      %s88 = sphi 0, %s74
      %s94 = sphi 0, %s96
      %s97 = sphi 0, %s94
      %s98 = sphi 0, %s97
      %s114 = sphi 0, %s98
    $region4: #{tpu_custom_call.1} parent=1 // loop_header_branch
      %19 = sbr.rel (%p17) target = $region8
    $region5: #{tpu_custom_call.1} parent=1 // loop_body
      %s21 = ssub.s32 %s16, 1
      %s22 = ssub.s32 %s16, 2
      %s23 = sadd.s32 %s16, 1
      %s24 = ssub.s32 %s16, %s23
      %p25 = scmp.eq.s32.totalorder %s24, 0
      %s27 = sadd.s32 %s26, 1
      %s28 = scalar_select %p25, %s26, %s27
      %p31 = pneg %p25
      %p32 = scmp.eq.s32.totalorder %s16, 1
      %p33 = por %p31, %p32
      %p34 = scmp.ne.s32.totalorder %s26, %s29
      %p35 = scmp.eq.s32.totalorder %s16, 0
      %p36 = por %p34, %p35
      %p37 = scmp.ne.s32.totalorder %s26, %s29
      %p38 = scmp.eq.s32.totalorder %s21, 1
      %p39 = por %p37, %p38
      %p40 = scmp.ne.s32.totalorder %s29, %s30
      %p41 = scmp.eq.s32.totalorder %s21, 0
      %p42 = por %p40, %p41
      %p43 = scmp.ne.s32.totalorder %s29, %s30
      %p44 = scmp.eq.s32.totalorder %s22, 1
      %p45 = por %p43, %p44
      %p47 = scmp.ne.s32.totalorder %s30, %s46
      %p48 = scmp.eq.s32.totalorder %s22, 0
      %p49 = por %p47, %p48
      %s51 = sadd.s32 %s50, 1
      %p54 = scmp.eq.s32.totalorder %s16, 1
      %p55 = scmp.ne.s32.totalorder %s50, %s52
      %p56 = scmp.eq.s32.totalorder %s16, 0
      %p57 = por %p55, %p56
      %p58 = scmp.ne.s32.totalorder %s50, %s52
      %p59 = scmp.eq.s32.totalorder %s21, 1
      %p60 = por %p58, %p59
      %p61 = scmp.ne.s32.totalorder %s52, %s53
      %p62 = scmp.eq.s32.totalorder %s21, 0
      %p63 = por %p61, %p62
      %p64 = scmp.ne.s32.totalorder %s52, %s53
      %p65 = scmp.eq.s32.totalorder %s22, 1
      %p66 = por %p64, %p65
      %p68 = scmp.ne.s32.totalorder %s53, %s67
      %p69 = scmp.eq.s32.totalorder %s22, 0
      %p70 = por %p68, %p69
      %s72 = sadd.s32 %s71, 1
      %p75 = scmp.eq.s32.totalorder %s16, 1
      %p76 = scmp.ne.s32.totalorder %s71, %s73
      %p77 = scmp.eq.s32.totalorder %s16, 0
      %p78 = por %p76, %p77
      %p79 = scmp.ne.s32.totalorder %s71, %s73
      %p80 = scmp.eq.s32.totalorder %s21, 1
      %p81 = por %p79, %p80
      %p82 = scmp.ne.s32.totalorder %s73, %s74
      %p83 = scmp.eq.s32.totalorder %s21, 0
      %p84 = por %p82, %p83
      %p85 = scmp.ne.s32.totalorder %s73, %s74
      %p86 = scmp.eq.s32.totalorder %s22, 1
      %p87 = por %p85, %p86
      %p89 = scmp.ne.s32.totalorder %s74, %s88
      %p90 = scmp.eq.s32.totalorder %s22, 0
      %p91 = por %p89, %p90
      %s92 = ssub.s32 %s16, %s23
      %p93 = scmp.eq.s32.totalorder %s92, 0
      %s95 = sadd.s32 %s94, 1
      %s96 = scalar_select %p93, %s94, %s95
      %p99 = pneg %p93
      %p100 = scmp.eq.s32.totalorder %s16, 1
      %p101 = por %p99, %p100
      %p102 = scmp.ne.s32.totalorder %s94, %s97
      %p103 = scmp.eq.s32.totalorder %s16, 0
      %p104 = por %p102, %p103
      %p105 = scmp.ne.s32.totalorder %s94, %s97
      %p106 = scmp.eq.s32.totalorder %s21, 1
      %p107 = por %p105, %p106
      %p108 = scmp.ne.s32.totalorder %s97, %s98
      %p109 = scmp.eq.s32.totalorder %s21, 0
      %p110 = por %p108, %p109
      %p111 = scmp.ne.s32.totalorder %s97, %s98
      %p112 = scmp.eq.s32.totalorder %s22, 1
      %p113 = por %p111, %p112
      %p115 = scmp.ne.s32.totalorder %s98, %s114
      %p116 = scmp.eq.s32.totalorder %s22, 0
      %p117 = por %p115, %p116
      %p118 = scmp.le.s32.totalorder 1, %s16
      %p119 = scmp.lt.s32.totalorder %s16, 3
      %p120 = pnand %p118, %p119
      %p121 = pneg %p120
      // Predicated region
      $region9: #{tpu_custom_call.1} parent=5 // pred_check
        _
      $region10: #{tpu_custom_call.1} parent=5 // pred_check_branch
        %123 = sbr.rel (%p120) target = $region12
      $region11: #{tpu_custom_call.1} parent=5 // pred_region
        %s124 = ssub.s32 %s16, 1
        // Predicated region
        $region13: #{tpu_custom_call.1} parent=11 // pred_check
          %p125 = pneg %p63
        $region14: #{tpu_custom_call.1} parent=11 // pred_check_branch
          %127 = sbr.rel (%p125) target = $region16
        $region15: #{tpu_custom_call.1} parent=11 // pred_region
          %129 = vsyncadd [#allocation6], 0
          %s130 = sshll.u32 %s1, 4
          %s131 = int_to_ptr.hbm [resolvable:$true] %s130
          %s132 = sshll.u32 [#allocation5], 4
          %s133 = int_to_ptr.vmem [resolvable:$true] %s132
          %138 = dma.hbm_to_vmem [thread:$0]  %s131, 384, %s133, [#allocation6], 192, 192, 12
        $region16: #{tpu_custom_call.1} parent=11 // pred_fallthru
          _
        // Predicated region
        $region17: #{tpu_custom_call.1} parent=11 // pred_check
          %p139 = pneg %p84
        $region18: #{tpu_custom_call.1} parent=11 // pred_check_branch
          %141 = sbr.rel (%p139) target = $region20
        $region19: #{tpu_custom_call.1} parent=11 // pred_region
          %143 = vsyncadd [#allocation6], 0
          %s144 = sshll.u32 %s2, 4
          %s145 = int_to_ptr.hbm [resolvable:$true] %s144
          %s146 = sshll.u32 [#allocation7], 4
          %s147 = int_to_ptr.vmem [resolvable:$true] %s146
          %152 = dma.hbm_to_vmem [thread:$0]  %s145, 384, %s147, [#allocation6], 192, 192, 12
        $region20: #{tpu_custom_call.1} parent=11 // pred_fallthru
          _
      $region12: #{tpu_custom_call.1} parent=5 // pred_fallthru
        _
      %p153 = scmp.lt.s32.totalorder %s16, 2
      // Predicated region
      $region21: #{tpu_custom_call.1} parent=5 // pred_check
        %p154 = pneg %p153
      $region22: #{tpu_custom_call.1} parent=5 // pred_check_branch
        %156 = sbr.rel (%p154) target = $region24
      $region23: #{tpu_custom_call.1} parent=5 // pred_region
        // Predicated region
        $region25: #{tpu_custom_call.1} parent=23 // pred_check
          %p157 = pneg %p36
        $region26: #{tpu_custom_call.1} parent=23 // pred_check_branch
          %159 = sbr.rel (%p157) target = $region28
        $region27: #{tpu_custom_call.1} parent=23 // pred_region
          %s160 = sand.u32 %s26, 1
          %s161 = scalar_lea.sflag [#allocation3], %s160
          %s162 = sand.u32 %s26, 1
          %s163 = smul.addr %s162, 96
          %s164 = scalar_lea.vmem [#allocation2], %s163
          %s165 = smul.u32 12, %s16
          %167 = vsyncadd %s161, 0
          %s168 = smul.addr %s165, 8
          %s169 = scalar_lea.hbm %s0, %s168
          %s171 = sshll.u32 %s169, 4
          %s172 = int_to_ptr.hbm [resolvable:$true] %s171
          %s173 = sshll.u32 %s164, 4
          %s174 = int_to_ptr.vmem [resolvable:$true] %s173
          %176 = dma.hbm_to_vmem [thread:$0]  %s172, 1536, %s174, %s161
        $region28: #{tpu_custom_call.1} parent=23 // pred_fallthru
          _
      $region24: #{tpu_custom_call.1} parent=5 // pred_fallthru
        _
      %p177 = scmp.le.s32.totalorder 1, %s16
      %p178 = scmp.lt.s32.totalorder %s16, 3
      %p179 = pnand %p177, %p178
      %p180 = pneg %p179
      // Predicated region
      $region29: #{tpu_custom_call.1} parent=5 // pred_check
        _
      $region30: #{tpu_custom_call.1} parent=5 // pred_check_branch
        %182 = sbr.rel (%p179) target = $region32
      $region31: #{tpu_custom_call.1} parent=5 // pred_region
        %s183 = ssub.s32 %s16, 1
        %s184 = sand.u32 %s29, 1
        %s185 = scalar_lea.sflag [#allocation3], %s184
        %s186 = sand.u32 %s29, 1
        %s187 = smul.addr %s186, 96
        %s188 = scalar_lea.vmem [#allocation2], %s187
        // Predicated region
        $region33: #{tpu_custom_call.1} parent=31 // pred_check
          %p189 = pneg %p42
        $region34: #{tpu_custom_call.1} parent=31 // pred_check_branch
          %191 = sbr.rel (%p189) target = $region36
        $region35: #{tpu_custom_call.1} parent=31 // pred_region
          %193 = dma.done %s185, 1536
        $region36: #{tpu_custom_call.1} parent=31 // pred_fallthru
          _
        // Predicated region
        $region37: #{tpu_custom_call.1} parent=31 // pred_check
          %p194 = pneg %p63
        $region38: #{tpu_custom_call.1} parent=31 // pred_check_branch
          %196 = sbr.rel (%p194) target = $region40
        $region39: #{tpu_custom_call.1} parent=31 // pred_region
          %198 = dma.done [#allocation6], 384
        $region40: #{tpu_custom_call.1} parent=31 // pred_fallthru
          _
        // Predicated region
        $region41: #{tpu_custom_call.1} parent=31 // pred_check
          %p199 = pneg %p84
        $region42: #{tpu_custom_call.1} parent=31 // pred_check_branch
          %201 = sbr.rel (%p199) target = $region44
        $region43: #{tpu_custom_call.1} parent=31 // pred_region
          %203 = dma.done [#allocation6], 384
        $region44: #{tpu_custom_call.1} parent=31 // pred_fallthru
          _
        %s204 = sand.u32 %s29, 1
        %s205 = scalar_lea.sflag [#allocation3], %s204
        %s206 = sand.u32 %s29, 1
        %s207 = smul.addr %s206, 96
        %s208 = scalar_lea.vmem [#allocation2], %s207
        %p209 = pneg %p42
        %p210 = pneg %p39
        %p211 = pneg %p63
        %p212 = pneg %p60
        %p213 = pneg %p84
        %p214 = pneg %p81
        %p215 = pneg %p110
        %p216 = pneg %p107
        %s217 = sand.u32 %s97, 1
        %s218 = scalar_lea.sflag [#allocation4], %s217
        %s219 = sand.u32 %s97, 1
        %s220 = smul.addr %s219, 192
        %s221 = scalar_lea.vmem [#allocation8], %s220
        %s222 = smul.u32 12, %s21
        %s223 = smul.u32 12, %s21
        %v225 = vld [vmem:[%s188] sm:$0x1f]
        %v226 = vld [vmem:[%s188 + $0x8] sm:$0x1f]
        %v227 = vld [vmem:[%s188 + $0x10] sm:$0x1f]
        %v228 = vld [vmem:[%s188 + $0x18] sm:$0x1f]
        %v229 = vld [vmem:[%s188 + $0x20] sm:$0x1f]
        %v230 = vld [vmem:[%s188 + $0x28] sm:$0x1f]
        %v231 = vld [vmem:[%s188 + $0x30] sm:$0x1f]
        %v232 = vld [vmem:[%s188 + $0x38] sm:$0x1f]
        %v233 = vld [vmem:[%s188 + $0x40] sm:$0x1f]
        %v234 = vld [vmem:[%s188 + $0x48] sm:$0x1f]
        %v235 = vld [vmem:[%s188 + $0x50] sm:$0x1f]
        %v236 = vld [vmem:[%s188 + $0x58] sm:$0x1f]
        %v237 = vcvt.f32.s32.to.zero.pseudo %v225
        %v238 = vcvt.f32.s32.to.zero.pseudo %v226
        %v239 = vcvt.f32.s32.to.zero.pseudo %v227
        %v240 = vcvt.f32.s32.to.zero.pseudo %v228
        %v241 = vcvt.f32.s32.to.zero.pseudo %v229
        %v242 = vcvt.f32.s32.to.zero.pseudo %v230
        %v243 = vcvt.f32.s32.to.zero.pseudo %v231
        %v244 = vcvt.f32.s32.to.zero.pseudo %v232
        %v245 = vcvt.f32.s32.to.zero.pseudo %v233
        %v246 = vcvt.f32.s32.to.zero.pseudo %v234
        %v247 = vcvt.f32.s32.to.zero.pseudo %v235
        %v248 = vcvt.f32.s32.to.zero.pseudo %v236
        %v249 = vlaneseq
        %v250 = vshrl.u32 %v249, 7
        %v251 = vadd.s32 %v250, 8
        %v252 = vadd.s32 %v250, 16
        %v253 = vadd.s32 %v250, 24
        %v254 = vadd.s32 %v250, 32
        %v255 = vadd.s32 %v250, 40
        %v256 = vadd.s32 %v250, 48
        %v257 = vadd.s32 %v250, 56
        %v258 = vadd.s32 %v250, 64
        %v259 = vadd.s32 %v250, 72
        %v260 = vadd.s32 %v250, 80
        %v261 = vadd.s32 %v250, 88
        %v262 = vadd.s32 %v250, 96
        %v263 = vadd.s32 %v250, 104
        %v264 = vadd.s32 %v250, 112
        %v265 = vadd.s32 %v250, 120
        %v266 = vadd.s32 %v250, 128
        %v267 = vadd.s32 %v250, 136
        %v268 = vadd.s32 %v250, 144
        %v269 = vadd.s32 %v250, 152
        %v270 = vadd.s32 %v250, 160
        %v271 = vadd.s32 %v250, 168
        %v272 = vadd.s32 %v250, 176
        %v273 = vadd.s32 %v250, 184
        %v274 = vadd.s32 %v250, 192
        %v275 = vadd.s32 %v250, 200
        %v276 = vadd.s32 %v250, 208
        %v277 = vadd.s32 %v250, 216
        %v278 = vadd.s32 %v250, 224
        %v279 = vadd.s32 %v250, 232
        %v280 = vadd.s32 %v250, 240
        %v281 = vadd.s32 %v250, 248
        %v282 = vadd.s32 %v250, 256
        %v283 = vadd.s32 %v250, 264
        %v284 = vadd.s32 %v250, 272
        %v285 = vadd.s32 %v250, 280
        %v286 = vadd.s32 %v250, 288
        %v287 = vadd.s32 %v250, 296
        %v288 = vadd.s32 %v250, 304
        %v289 = vadd.s32 %v250, 312
        %v290 = vperm.slane %v237, 0
        %v291 = vperm.slane %v238, 0
        %v292 = vperm.slane %v239, 0
        %v293 = vperm.slane %v240, 0
        %v294 = vperm.slane %v241, 0
        %v295 = vperm.slane %v242, 0
        %v296 = vperm.slane %v243, 0
        %v297 = vperm.slane %v244, 0
        %v298 = vperm.slane %v245, 0
        %v299 = vperm.slane %v246, 0
        %v300 = vperm.slane %v247, 0
        %v301 = vperm.slane %v248, 0
        %vm302 = vcmp.eq.s32.totalorder %v250, %v290
        %vm303 = vcmp.eq.s32.totalorder %v250, %v291
        %vm304 = vcmp.eq.s32.totalorder %v250, %v292
        %vm305 = vcmp.eq.s32.totalorder %v250, %v293
        %vm306 = vcmp.eq.s32.totalorder %v250, %v294
        %vm307 = vcmp.eq.s32.totalorder %v250, %v295
        %vm308 = vcmp.eq.s32.totalorder %v250, %v296
        %vm309 = vcmp.eq.s32.totalorder %v250, %v297
        %vm310 = vcmp.eq.s32.totalorder %v250, %v298
        %vm311 = vcmp.eq.s32.totalorder %v250, %v299
        %vm312 = vcmp.eq.s32.totalorder %v250, %v300
        %vm313 = vcmp.eq.s32.totalorder %v250, %v301
        %vm314 = vcmp.eq.s32.totalorder %v251, %v290
        %vm315 = vcmp.eq.s32.totalorder %v251, %v291
        %vm316 = vcmp.eq.s32.totalorder %v251, %v292
        %vm317 = vcmp.eq.s32.totalorder %v251, %v293
        %vm318 = vcmp.eq.s32.totalorder %v251, %v294
        %vm319 = vcmp.eq.s32.totalorder %v251, %v295
        %vm320 = vcmp.eq.s32.totalorder %v251, %v296
        %vm321 = vcmp.eq.s32.totalorder %v251, %v297
        %vm322 = vcmp.eq.s32.totalorder %v251, %v298
        %vm323 = vcmp.eq.s32.totalorder %v251, %v299
        %vm324 = vcmp.eq.s32.totalorder %v251, %v300
        %vm325 = vcmp.eq.s32.totalorder %v251, %v301
        %vm326 = vcmp.eq.s32.totalorder %v252, %v290
        %vm327 = vcmp.eq.s32.totalorder %v252, %v291
        %vm328 = vcmp.eq.s32.totalorder %v252, %v292
        %vm329 = vcmp.eq.s32.totalorder %v252, %v293
        %vm330 = vcmp.eq.s32.totalorder %v252, %v294
        %vm331 = vcmp.eq.s32.totalorder %v252, %v295
        %vm332 = vcmp.eq.s32.totalorder %v252, %v296
        %vm333 = vcmp.eq.s32.totalorder %v252, %v297
        %vm334 = vcmp.eq.s32.totalorder %v252, %v298
        %vm335 = vcmp.eq.s32.totalorder %v252, %v299
        %vm336 = vcmp.eq.s32.totalorder %v252, %v300
        %vm337 = vcmp.eq.s32.totalorder %v252, %v301
        %vm338 = vcmp.eq.s32.totalorder %v253, %v290
        %vm339 = vcmp.eq.s32.totalorder %v253, %v291
        %vm340 = vcmp.eq.s32.totalorder %v253, %v292
        %vm341 = vcmp.eq.s32.totalorder %v253, %v293
        %vm342 = vcmp.eq.s32.totalorder %v253, %v294
        %vm343 = vcmp.eq.s32.totalorder %v253, %v295
        %vm344 = vcmp.eq.s32.totalorder %v253, %v296
        %vm345 = vcmp.eq.s32.totalorder %v253, %v297
        %vm346 = vcmp.eq.s32.totalorder %v253, %v298
        %vm347 = vcmp.eq.s32.totalorder %v253, %v299
        %vm348 = vcmp.eq.s32.totalorder %v253, %v300
        %vm349 = vcmp.eq.s32.totalorder %v253, %v301
        %vm350 = vcmp.eq.s32.totalorder %v254, %v290
        %vm351 = vcmp.eq.s32.totalorder %v254, %v291
        %vm352 = vcmp.eq.s32.totalorder %v254, %v292
        %vm353 = vcmp.eq.s32.totalorder %v254, %v293
        %vm354 = vcmp.eq.s32.totalorder %v254, %v294
        %vm355 = vcmp.eq.s32.totalorder %v254, %v295
        %vm356 = vcmp.eq.s32.totalorder %v254, %v296
        %vm357 = vcmp.eq.s32.totalorder %v254, %v297
        %vm358 = vcmp.eq.s32.totalorder %v254, %v298
        %vm359 = vcmp.eq.s32.totalorder %v254, %v299
        %vm360 = vcmp.eq.s32.totalorder %v254, %v300
        %vm361 = vcmp.eq.s32.totalorder %v254, %v301
        %vm362 = vcmp.eq.s32.totalorder %v255, %v290
        %vm363 = vcmp.eq.s32.totalorder %v255, %v291
        %vm364 = vcmp.eq.s32.totalorder %v255, %v292
        %vm365 = vcmp.eq.s32.totalorder %v255, %v293
        %vm366 = vcmp.eq.s32.totalorder %v255, %v294
        %vm367 = vcmp.eq.s32.totalorder %v255, %v295
        %vm368 = vcmp.eq.s32.totalorder %v255, %v296
        %vm369 = vcmp.eq.s32.totalorder %v255, %v297
        %vm370 = vcmp.eq.s32.totalorder %v255, %v298
        %vm371 = vcmp.eq.s32.totalorder %v255, %v299
        %vm372 = vcmp.eq.s32.totalorder %v255, %v300
        %vm373 = vcmp.eq.s32.totalorder %v255, %v301
        %vm374 = vcmp.eq.s32.totalorder %v256, %v290
        %vm375 = vcmp.eq.s32.totalorder %v256, %v291
        %vm376 = vcmp.eq.s32.totalorder %v256, %v292
        %vm377 = vcmp.eq.s32.totalorder %v256, %v293
        %vm378 = vcmp.eq.s32.totalorder %v256, %v294
        %vm379 = vcmp.eq.s32.totalorder %v256, %v295
        %vm380 = vcmp.eq.s32.totalorder %v256, %v296
        %vm381 = vcmp.eq.s32.totalorder %v256, %v297
        %vm382 = vcmp.eq.s32.totalorder %v256, %v298
        %vm383 = vcmp.eq.s32.totalorder %v256, %v299
        %vm384 = vcmp.eq.s32.totalorder %v256, %v300
        %vm385 = vcmp.eq.s32.totalorder %v256, %v301
        %vm386 = vcmp.eq.s32.totalorder %v257, %v290
        %vm387 = vcmp.eq.s32.totalorder %v257, %v291
        %vm388 = vcmp.eq.s32.totalorder %v257, %v292
        %vm389 = vcmp.eq.s32.totalorder %v257, %v293
        %vm390 = vcmp.eq.s32.totalorder %v257, %v294
        %vm391 = vcmp.eq.s32.totalorder %v257, %v295
        %vm392 = vcmp.eq.s32.totalorder %v257, %v296
        %vm393 = vcmp.eq.s32.totalorder %v257, %v297
        %vm394 = vcmp.eq.s32.totalorder %v257, %v298
        %vm395 = vcmp.eq.s32.totalorder %v257, %v299
        %vm396 = vcmp.eq.s32.totalorder %v257, %v300
        %vm397 = vcmp.eq.s32.totalorder %v257, %v301
        %vm398 = vcmp.eq.s32.totalorder %v258, %v290
        %vm399 = vcmp.eq.s32.totalorder %v258, %v291
        %vm400 = vcmp.eq.s32.totalorder %v258, %v292
        %vm401 = vcmp.eq.s32.totalorder %v258, %v293
        %vm402 = vcmp.eq.s32.totalorder %v258, %v294
        %vm403 = vcmp.eq.s32.totalorder %v258, %v295
        %vm404 = vcmp.eq.s32.totalorder %v258, %v296
        %vm405 = vcmp.eq.s32.totalorder %v258, %v297
        %vm406 = vcmp.eq.s32.totalorder %v258, %v298
        %vm407 = vcmp.eq.s32.totalorder %v258, %v299
        %vm408 = vcmp.eq.s32.totalorder %v258, %v300
        %vm409 = vcmp.eq.s32.totalorder %v258, %v301
        %vm410 = vcmp.eq.s32.totalorder %v259, %v290
        %vm411 = vcmp.eq.s32.totalorder %v259, %v291
        %vm412 = vcmp.eq.s32.totalorder %v259, %v292
        %vm413 = vcmp.eq.s32.totalorder %v259, %v293
        %vm414 = vcmp.eq.s32.totalorder %v259, %v294
        %vm415 = vcmp.eq.s32.totalorder %v259, %v295
        %vm416 = vcmp.eq.s32.totalorder %v259, %v296
        %vm417 = vcmp.eq.s32.totalorder %v259, %v297
        %vm418 = vcmp.eq.s32.totalorder %v259, %v298
        %vm419 = vcmp.eq.s32.totalorder %v259, %v299
        %vm420 = vcmp.eq.s32.totalorder %v259, %v300
        %vm421 = vcmp.eq.s32.totalorder %v259, %v301
        %vm422 = vcmp.eq.s32.totalorder %v260, %v290
        %vm423 = vcmp.eq.s32.totalorder %v260, %v291
        %vm424 = vcmp.eq.s32.totalorder %v260, %v292
        %vm425 = vcmp.eq.s32.totalorder %v260, %v293
        %vm426 = vcmp.eq.s32.totalorder %v260, %v294
        %vm427 = vcmp.eq.s32.totalorder %v260, %v295
        %vm428 = vcmp.eq.s32.totalorder %v260, %v296
        %vm429 = vcmp.eq.s32.totalorder %v260, %v297
        %vm430 = vcmp.eq.s32.totalorder %v260, %v298
        %vm431 = vcmp.eq.s32.totalorder %v260, %v299
        %vm432 = vcmp.eq.s32.totalorder %v260, %v300
        %vm433 = vcmp.eq.s32.totalorder %v260, %v301
        %vm434 = vcmp.eq.s32.totalorder %v261, %v290
        %vm435 = vcmp.eq.s32.totalorder %v261, %v291
        %vm436 = vcmp.eq.s32.totalorder %v261, %v292
        %vm437 = vcmp.eq.s32.totalorder %v261, %v293
        %vm438 = vcmp.eq.s32.totalorder %v261, %v294
        %vm439 = vcmp.eq.s32.totalorder %v261, %v295
        %vm440 = vcmp.eq.s32.totalorder %v261, %v296
        %vm441 = vcmp.eq.s32.totalorder %v261, %v297
        %vm442 = vcmp.eq.s32.totalorder %v261, %v298
        %vm443 = vcmp.eq.s32.totalorder %v261, %v299
        %vm444 = vcmp.eq.s32.totalorder %v261, %v300
        %vm445 = vcmp.eq.s32.totalorder %v261, %v301
        %vm446 = vcmp.eq.s32.totalorder %v262, %v290
        %vm447 = vcmp.eq.s32.totalorder %v262, %v291
        %vm448 = vcmp.eq.s32.totalorder %v262, %v292
        %vm449 = vcmp.eq.s32.totalorder %v262, %v293
        %vm450 = vcmp.eq.s32.totalorder %v262, %v294
        %vm451 = vcmp.eq.s32.totalorder %v262, %v295
        %vm452 = vcmp.eq.s32.totalorder %v262, %v296
        %vm453 = vcmp.eq.s32.totalorder %v262, %v297
        %vm454 = vcmp.eq.s32.totalorder %v262, %v298
        %vm455 = vcmp.eq.s32.totalorder %v262, %v299
        %vm456 = vcmp.eq.s32.totalorder %v262, %v300
        %vm457 = vcmp.eq.s32.totalorder %v262, %v301
        %vm458 = vcmp.eq.s32.totalorder %v263, %v290
        %vm459 = vcmp.eq.s32.totalorder %v263, %v291
        %vm460 = vcmp.eq.s32.totalorder %v263, %v292
        %vm461 = vcmp.eq.s32.totalorder %v263, %v293
        %vm462 = vcmp.eq.s32.totalorder %v263, %v294
        %vm463 = vcmp.eq.s32.totalorder %v263, %v295
        %vm464 = vcmp.eq.s32.totalorder %v263, %v296
        %vm465 = vcmp.eq.s32.totalorder %v263, %v297
        %vm466 = vcmp.eq.s32.totalorder %v263, %v298
        %vm467 = vcmp.eq.s32.totalorder %v263, %v299
        %vm468 = vcmp.eq.s32.totalorder %v263, %v300
        %vm469 = vcmp.eq.s32.totalorder %v263, %v301
        %vm470 = vcmp.eq.s32.totalorder %v264, %v290
        %vm471 = vcmp.eq.s32.totalorder %v264, %v291
        %vm472 = vcmp.eq.s32.totalorder %v264, %v292
        %vm473 = vcmp.eq.s32.totalorder %v264, %v293
        %vm474 = vcmp.eq.s32.totalorder %v264, %v294
        %vm475 = vcmp.eq.s32.totalorder %v264, %v295
        %vm476 = vcmp.eq.s32.totalorder %v264, %v296
        %vm477 = vcmp.eq.s32.totalorder %v264, %v297
        %vm478 = vcmp.eq.s32.totalorder %v264, %v298
        %vm479 = vcmp.eq.s32.totalorder %v264, %v299
        %vm480 = vcmp.eq.s32.totalorder %v264, %v300
        %vm481 = vcmp.eq.s32.totalorder %v264, %v301
        %vm482 = vcmp.eq.s32.totalorder %v265, %v290
        %vm483 = vcmp.eq.s32.totalorder %v265, %v291
        %vm484 = vcmp.eq.s32.totalorder %v265, %v292
        %vm485 = vcmp.eq.s32.totalorder %v265, %v293
        %vm486 = vcmp.eq.s32.totalorder %v265, %v294
        %vm487 = vcmp.eq.s32.totalorder %v265, %v295
        %vm488 = vcmp.eq.s32.totalorder %v265, %v296
        %vm489 = vcmp.eq.s32.totalorder %v265, %v297
        %vm490 = vcmp.eq.s32.totalorder %v265, %v298
        %vm491 = vcmp.eq.s32.totalorder %v265, %v299
        %vm492 = vcmp.eq.s32.totalorder %v265, %v300
        %vm493 = vcmp.eq.s32.totalorder %v265, %v301
        %vm494 = vcmp.eq.s32.totalorder %v266, %v290
        %vm495 = vcmp.eq.s32.totalorder %v266, %v291
        %vm496 = vcmp.eq.s32.totalorder %v266, %v292
        %vm497 = vcmp.eq.s32.totalorder %v266, %v293
        %vm498 = vcmp.eq.s32.totalorder %v266, %v294
        %vm499 = vcmp.eq.s32.totalorder %v266, %v295
        %vm500 = vcmp.eq.s32.totalorder %v266, %v296
        %vm501 = vcmp.eq.s32.totalorder %v266, %v297
        %vm502 = vcmp.eq.s32.totalorder %v266, %v298
        %vm503 = vcmp.eq.s32.totalorder %v266, %v299
        %vm504 = vcmp.eq.s32.totalorder %v266, %v300
        %vm505 = vcmp.eq.s32.totalorder %v266, %v301
        %vm506 = vcmp.eq.s32.totalorder %v267, %v290
        %vm507 = vcmp.eq.s32.totalorder %v267, %v291
        %vm508 = vcmp.eq.s32.totalorder %v267, %v292
        %vm509 = vcmp.eq.s32.totalorder %v267, %v293
        %vm510 = vcmp.eq.s32.totalorder %v267, %v294
        %vm511 = vcmp.eq.s32.totalorder %v267, %v295
        %vm512 = vcmp.eq.s32.totalorder %v267, %v296
        %vm513 = vcmp.eq.s32.totalorder %v267, %v297
        %vm514 = vcmp.eq.s32.totalorder %v267, %v298
        %vm515 = vcmp.eq.s32.totalorder %v267, %v299
        %vm516 = vcmp.eq.s32.totalorder %v267, %v300
        %vm517 = vcmp.eq.s32.totalorder %v267, %v301
        %vm518 = vcmp.eq.s32.totalorder %v268, %v290
        %vm519 = vcmp.eq.s32.totalorder %v268, %v291
        %vm520 = vcmp.eq.s32.totalorder %v268, %v292
        %vm521 = vcmp.eq.s32.totalorder %v268, %v293
        %vm522 = vcmp.eq.s32.totalorder %v268, %v294
        %vm523 = vcmp.eq.s32.totalorder %v268, %v295
        %vm524 = vcmp.eq.s32.totalorder %v268, %v296
        %vm525 = vcmp.eq.s32.totalorder %v268, %v297
        %vm526 = vcmp.eq.s32.totalorder %v268, %v298
        %vm527 = vcmp.eq.s32.totalorder %v268, %v299
        %vm528 = vcmp.eq.s32.totalorder %v268, %v300
        %vm529 = vcmp.eq.s32.totalorder %v268, %v301
        %vm530 = vcmp.eq.s32.totalorder %v269, %v290
        %vm531 = vcmp.eq.s32.totalorder %v269, %v291
        %vm532 = vcmp.eq.s32.totalorder %v269, %v292
        %vm533 = vcmp.eq.s32.totalorder %v269, %v293
        %vm534 = vcmp.eq.s32.totalorder %v269, %v294
        %vm535 = vcmp.eq.s32.totalorder %v269, %v295
        %vm536 = vcmp.eq.s32.totalorder %v269, %v296
        %vm537 = vcmp.eq.s32.totalorder %v269, %v297
        %vm538 = vcmp.eq.s32.totalorder %v269, %v298
        %vm539 = vcmp.eq.s32.totalorder %v269, %v299
        %vm540 = vcmp.eq.s32.totalorder %v269, %v300
        %vm541 = vcmp.eq.s32.totalorder %v269, %v301
        %vm542 = vcmp.eq.s32.totalorder %v270, %v290
        %vm543 = vcmp.eq.s32.totalorder %v270, %v291
        %vm544 = vcmp.eq.s32.totalorder %v270, %v292
        %vm545 = vcmp.eq.s32.totalorder %v270, %v293
        %vm546 = vcmp.eq.s32.totalorder %v270, %v294
        %vm547 = vcmp.eq.s32.totalorder %v270, %v295
        %vm548 = vcmp.eq.s32.totalorder %v270, %v296
        %vm549 = vcmp.eq.s32.totalorder %v270, %v297
        %vm550 = vcmp.eq.s32.totalorder %v270, %v298
        %vm551 = vcmp.eq.s32.totalorder %v270, %v299
        %vm552 = vcmp.eq.s32.totalorder %v270, %v300
        %vm553 = vcmp.eq.s32.totalorder %v270, %v301
        %vm554 = vcmp.eq.s32.totalorder %v271, %v290
        %vm555 = vcmp.eq.s32.totalorder %v271, %v291
        %vm556 = vcmp.eq.s32.totalorder %v271, %v292
        %vm557 = vcmp.eq.s32.totalorder %v271, %v293
        %vm558 = vcmp.eq.s32.totalorder %v271, %v294
        %vm559 = vcmp.eq.s32.totalorder %v271, %v295
        %vm560 = vcmp.eq.s32.totalorder %v271, %v296
        %vm561 = vcmp.eq.s32.totalorder %v271, %v297
        %vm562 = vcmp.eq.s32.totalorder %v271, %v298
        %vm563 = vcmp.eq.s32.totalorder %v271, %v299
        %vm564 = vcmp.eq.s32.totalorder %v271, %v300
        %vm565 = vcmp.eq.s32.totalorder %v271, %v301
        %vm566 = vcmp.eq.s32.totalorder %v272, %v290
        %vm567 = vcmp.eq.s32.totalorder %v272, %v291
        %vm568 = vcmp.eq.s32.totalorder %v272, %v292
        %vm569 = vcmp.eq.s32.totalorder %v272, %v293
        %vm570 = vcmp.eq.s32.totalorder %v272, %v294
        %vm571 = vcmp.eq.s32.totalorder %v272, %v295
        %vm572 = vcmp.eq.s32.totalorder %v272, %v296
        %vm573 = vcmp.eq.s32.totalorder %v272, %v297
        %vm574 = vcmp.eq.s32.totalorder %v272, %v298
        %vm575 = vcmp.eq.s32.totalorder %v272, %v299
        %vm576 = vcmp.eq.s32.totalorder %v272, %v300
        %vm577 = vcmp.eq.s32.totalorder %v272, %v301
        %vm578 = vcmp.eq.s32.totalorder %v273, %v290
        %vm579 = vcmp.eq.s32.totalorder %v273, %v291
        %vm580 = vcmp.eq.s32.totalorder %v273, %v292
        %vm581 = vcmp.eq.s32.totalorder %v273, %v293
        %vm582 = vcmp.eq.s32.totalorder %v273, %v294
        %vm583 = vcmp.eq.s32.totalorder %v273, %v295
        %vm584 = vcmp.eq.s32.totalorder %v273, %v296
        %vm585 = vcmp.eq.s32.totalorder %v273, %v297
        %vm586 = vcmp.eq.s32.totalorder %v273, %v298
        %vm587 = vcmp.eq.s32.totalorder %v273, %v299
        %vm588 = vcmp.eq.s32.totalorder %v273, %v300
        %vm589 = vcmp.eq.s32.totalorder %v273, %v301
        %vm590 = vcmp.eq.s32.totalorder %v274, %v290
        %vm591 = vcmp.eq.s32.totalorder %v274, %v291
        %vm592 = vcmp.eq.s32.totalorder %v274, %v292
        %vm593 = vcmp.eq.s32.totalorder %v274, %v293
        %vm594 = vcmp.eq.s32.totalorder %v274, %v294
        %vm595 = vcmp.eq.s32.totalorder %v274, %v295
        %vm596 = vcmp.eq.s32.totalorder %v274, %v296
        %vm597 = vcmp.eq.s32.totalorder %v274, %v297
        %vm598 = vcmp.eq.s32.totalorder %v274, %v298
        %vm599 = vcmp.eq.s32.totalorder %v274, %v299
        %vm600 = vcmp.eq.s32.totalorder %v274, %v300
        %vm601 = vcmp.eq.s32.totalorder %v274, %v301
        %vm602 = vcmp.eq.s32.totalorder %v275, %v290
        %vm603 = vcmp.eq.s32.totalorder %v275, %v291
        %vm604 = vcmp.eq.s32.totalorder %v275, %v292
        %vm605 = vcmp.eq.s32.totalorder %v275, %v293
        %vm606 = vcmp.eq.s32.totalorder %v275, %v294
        %vm607 = vcmp.eq.s32.totalorder %v275, %v295
        %vm608 = vcmp.eq.s32.totalorder %v275, %v296
        %vm609 = vcmp.eq.s32.totalorder %v275, %v297
        %vm610 = vcmp.eq.s32.totalorder %v275, %v298
        %vm611 = vcmp.eq.s32.totalorder %v275, %v299
        %vm612 = vcmp.eq.s32.totalorder %v275, %v300
        %vm613 = vcmp.eq.s32.totalorder %v275, %v301
        %vm614 = vcmp.eq.s32.totalorder %v276, %v290
        %vm615 = vcmp.eq.s32.totalorder %v276, %v291
        %vm616 = vcmp.eq.s32.totalorder %v276, %v292
        %vm617 = vcmp.eq.s32.totalorder %v276, %v293
        %vm618 = vcmp.eq.s32.totalorder %v276, %v294
        %vm619 = vcmp.eq.s32.totalorder %v276, %v295
        %vm620 = vcmp.eq.s32.totalorder %v276, %v296
        %vm621 = vcmp.eq.s32.totalorder %v276, %v297
        %vm622 = vcmp.eq.s32.totalorder %v276, %v298
        %vm623 = vcmp.eq.s32.totalorder %v276, %v299
        %vm624 = vcmp.eq.s32.totalorder %v276, %v300
        %vm625 = vcmp.eq.s32.totalorder %v276, %v301
        %vm626 = vcmp.eq.s32.totalorder %v277, %v290
        %vm627 = vcmp.eq.s32.totalorder %v277, %v291
        %vm628 = vcmp.eq.s32.totalorder %v277, %v292
        %vm629 = vcmp.eq.s32.totalorder %v277, %v293
        %vm630 = vcmp.eq.s32.totalorder %v277, %v294
        %vm631 = vcmp.eq.s32.totalorder %v277, %v295
        %vm632 = vcmp.eq.s32.totalorder %v277, %v296
        %vm633 = vcmp.eq.s32.totalorder %v277, %v297
        %vm634 = vcmp.eq.s32.totalorder %v277, %v298
        %vm635 = vcmp.eq.s32.totalorder %v277, %v299
        %vm636 = vcmp.eq.s32.totalorder %v277, %v300
        %vm637 = vcmp.eq.s32.totalorder %v277, %v301
        %vm638 = vcmp.eq.s32.totalorder %v278, %v290
        %vm639 = vcmp.eq.s32.totalorder %v278, %v291
        %vm640 = vcmp.eq.s32.totalorder %v278, %v292
        %vm641 = vcmp.eq.s32.totalorder %v278, %v293
        %vm642 = vcmp.eq.s32.totalorder %v278, %v294
        %vm643 = vcmp.eq.s32.totalorder %v278, %v295
        %vm644 = vcmp.eq.s32.totalorder %v278, %v296
        %vm645 = vcmp.eq.s32.totalorder %v278, %v297
        %vm646 = vcmp.eq.s32.totalorder %v278, %v298
        %vm647 = vcmp.eq.s32.totalorder %v278, %v299
        %vm648 = vcmp.eq.s32.totalorder %v278, %v300
        %vm649 = vcmp.eq.s32.totalorder %v278, %v301
        %vm650 = vcmp.eq.s32.totalorder %v279, %v290
        %vm651 = vcmp.eq.s32.totalorder %v279, %v291
        %vm652 = vcmp.eq.s32.totalorder %v279, %v292
        %vm653 = vcmp.eq.s32.totalorder %v279, %v293
        %vm654 = vcmp.eq.s32.totalorder %v279, %v294
        %vm655 = vcmp.eq.s32.totalorder %v279, %v295
        %vm656 = vcmp.eq.s32.totalorder %v279, %v296
        %vm657 = vcmp.eq.s32.totalorder %v279, %v297
        %vm658 = vcmp.eq.s32.totalorder %v279, %v298
        %vm659 = vcmp.eq.s32.totalorder %v279, %v299
        %vm660 = vcmp.eq.s32.totalorder %v279, %v300
        %vm661 = vcmp.eq.s32.totalorder %v279, %v301
        %vm662 = vcmp.eq.s32.totalorder %v280, %v290
        %vm663 = vcmp.eq.s32.totalorder %v280, %v291
        %vm664 = vcmp.eq.s32.totalorder %v280, %v292
        %vm665 = vcmp.eq.s32.totalorder %v280, %v293
        %vm666 = vcmp.eq.s32.totalorder %v280, %v294
        %vm667 = vcmp.eq.s32.totalorder %v280, %v295
        %vm668 = vcmp.eq.s32.totalorder %v280, %v296
        %vm669 = vcmp.eq.s32.totalorder %v280, %v297
        %vm670 = vcmp.eq.s32.totalorder %v280, %v298
        %vm671 = vcmp.eq.s32.totalorder %v280, %v299
        %vm672 = vcmp.eq.s32.totalorder %v280, %v300
        %vm673 = vcmp.eq.s32.totalorder %v280, %v301
        %vm674 = vcmp.eq.s32.totalorder %v281, %v290
        %vm675 = vcmp.eq.s32.totalorder %v281, %v291
        %vm676 = vcmp.eq.s32.totalorder %v281, %v292
        %vm677 = vcmp.eq.s32.totalorder %v281, %v293
        %vm678 = vcmp.eq.s32.totalorder %v281, %v294
        %vm679 = vcmp.eq.s32.totalorder %v281, %v295
        %vm680 = vcmp.eq.s32.totalorder %v281, %v296
        %vm681 = vcmp.eq.s32.totalorder %v281, %v297
        %vm682 = vcmp.eq.s32.totalorder %v281, %v298
        %vm683 = vcmp.eq.s32.totalorder %v281, %v299
        %vm684 = vcmp.eq.s32.totalorder %v281, %v300
        %vm685 = vcmp.eq.s32.totalorder %v281, %v301
        %vm686 = vcmp.eq.s32.totalorder %v282, %v290
        %vm687 = vcmp.eq.s32.totalorder %v282, %v291
        %vm688 = vcmp.eq.s32.totalorder %v282, %v292
        %vm689 = vcmp.eq.s32.totalorder %v282, %v293
        %vm690 = vcmp.eq.s32.totalorder %v282, %v294
        %vm691 = vcmp.eq.s32.totalorder %v282, %v295
        %vm692 = vcmp.eq.s32.totalorder %v282, %v296
        %vm693 = vcmp.eq.s32.totalorder %v282, %v297
        %vm694 = vcmp.eq.s32.totalorder %v282, %v298
        %vm695 = vcmp.eq.s32.totalorder %v282, %v299
        %vm696 = vcmp.eq.s32.totalorder %v282, %v300
        %vm697 = vcmp.eq.s32.totalorder %v282, %v301
        %vm698 = vcmp.eq.s32.totalorder %v283, %v290
        %vm699 = vcmp.eq.s32.totalorder %v283, %v291
        %vm700 = vcmp.eq.s32.totalorder %v283, %v292
        %vm701 = vcmp.eq.s32.totalorder %v283, %v293
        %vm702 = vcmp.eq.s32.totalorder %v283, %v294
        %vm703 = vcmp.eq.s32.totalorder %v283, %v295
        %vm704 = vcmp.eq.s32.totalorder %v283, %v296
        %vm705 = vcmp.eq.s32.totalorder %v283, %v297
        %vm706 = vcmp.eq.s32.totalorder %v283, %v298
        %vm707 = vcmp.eq.s32.totalorder %v283, %v299
        %vm708 = vcmp.eq.s32.totalorder %v283, %v300
        %vm709 = vcmp.eq.s32.totalorder %v283, %v301
        %vm710 = vcmp.eq.s32.totalorder %v284, %v290
        %vm711 = vcmp.eq.s32.totalorder %v284, %v291
        %vm712 = vcmp.eq.s32.totalorder %v284, %v292
        %vm713 = vcmp.eq.s32.totalorder %v284, %v293
        %vm714 = vcmp.eq.s32.totalorder %v284, %v294
        %vm715 = vcmp.eq.s32.totalorder %v284, %v295
        %vm716 = vcmp.eq.s32.totalorder %v284, %v296
        %vm717 = vcmp.eq.s32.totalorder %v284, %v297
        %vm718 = vcmp.eq.s32.totalorder %v284, %v298
        %vm719 = vcmp.eq.s32.totalorder %v284, %v299
        %vm720 = vcmp.eq.s32.totalorder %v284, %v300
        %vm721 = vcmp.eq.s32.totalorder %v284, %v301
        %vm722 = vcmp.eq.s32.totalorder %v285, %v290
        %vm723 = vcmp.eq.s32.totalorder %v285, %v291
        %vm724 = vcmp.eq.s32.totalorder %v285, %v292
        %vm725 = vcmp.eq.s32.totalorder %v285, %v293
        %vm726 = vcmp.eq.s32.totalorder %v285, %v294
        %vm727 = vcmp.eq.s32.totalorder %v285, %v295
        %vm728 = vcmp.eq.s32.totalorder %v285, %v296
        %vm729 = vcmp.eq.s32.totalorder %v285, %v297
        %vm730 = vcmp.eq.s32.totalorder %v285, %v298
        %vm731 = vcmp.eq.s32.totalorder %v285, %v299
        %vm732 = vcmp.eq.s32.totalorder %v285, %v300
        %vm733 = vcmp.eq.s32.totalorder %v285, %v301
        %vm734 = vcmp.eq.s32.totalorder %v286, %v290
        %vm735 = vcmp.eq.s32.totalorder %v286, %v291
        %vm736 = vcmp.eq.s32.totalorder %v286, %v292
        %vm737 = vcmp.eq.s32.totalorder %v286, %v293
        %vm738 = vcmp.eq.s32.totalorder %v286, %v294
        %vm739 = vcmp.eq.s32.totalorder %v286, %v295
        %vm740 = vcmp.eq.s32.totalorder %v286, %v296
        %vm741 = vcmp.eq.s32.totalorder %v286, %v297
        %vm742 = vcmp.eq.s32.totalorder %v286, %v298
        %vm743 = vcmp.eq.s32.totalorder %v286, %v299
        %vm744 = vcmp.eq.s32.totalorder %v286, %v300
        %vm745 = vcmp.eq.s32.totalorder %v286, %v301
        %vm746 = vcmp.eq.s32.totalorder %v287, %v290
        %vm747 = vcmp.eq.s32.totalorder %v287, %v291
        %vm748 = vcmp.eq.s32.totalorder %v287, %v292
        %vm749 = vcmp.eq.s32.totalorder %v287, %v293
        %vm750 = vcmp.eq.s32.totalorder %v287, %v294
        %vm751 = vcmp.eq.s32.totalorder %v287, %v295
        %vm752 = vcmp.eq.s32.totalorder %v287, %v296
        %vm753 = vcmp.eq.s32.totalorder %v287, %v297
        %vm754 = vcmp.eq.s32.totalorder %v287, %v298
        %vm755 = vcmp.eq.s32.totalorder %v287, %v299
        %vm756 = vcmp.eq.s32.totalorder %v287, %v300
        %vm757 = vcmp.eq.s32.totalorder %v287, %v301
        %vm758 = vcmp.eq.s32.totalorder %v288, %v290
        %vm759 = vcmp.eq.s32.totalorder %v288, %v291
        %vm760 = vcmp.eq.s32.totalorder %v288, %v292
        %vm761 = vcmp.eq.s32.totalorder %v288, %v293
        %vm762 = vcmp.eq.s32.totalorder %v288, %v294
        %vm763 = vcmp.eq.s32.totalorder %v288, %v295
        %vm764 = vcmp.eq.s32.totalorder %v288, %v296
        %vm765 = vcmp.eq.s32.totalorder %v288, %v297
        %vm766 = vcmp.eq.s32.totalorder %v288, %v298
        %vm767 = vcmp.eq.s32.totalorder %v288, %v299
        %vm768 = vcmp.eq.s32.totalorder %v288, %v300
        %vm769 = vcmp.eq.s32.totalorder %v288, %v301
        %vm770 = vcmp.eq.s32.totalorder %v289, %v290
        %vm771 = vcmp.eq.s32.totalorder %v289, %v291
        %vm772 = vcmp.eq.s32.totalorder %v289, %v292
        %vm773 = vcmp.eq.s32.totalorder %v289, %v293
        %vm774 = vcmp.eq.s32.totalorder %v289, %v294
        %vm775 = vcmp.eq.s32.totalorder %v289, %v295
        %vm776 = vcmp.eq.s32.totalorder %v289, %v296
        %vm777 = vcmp.eq.s32.totalorder %v289, %v297
        %vm778 = vcmp.eq.s32.totalorder %v289, %v298
        %vm779 = vcmp.eq.s32.totalorder %v289, %v299
        %vm780 = vcmp.eq.s32.totalorder %v289, %v300
        %vm781 = vcmp.eq.s32.totalorder %v289, %v301
        %v782 = vsel %vm302, 1, 0
        %v783 = vsel %vm303, 1, 0
        %v784 = vsel %vm304, 1, 0
        %v785 = vsel %vm305, 1, 0
        %v786 = vsel %vm306, 1, 0
        %v787 = vsel %vm307, 1, 0
        %v788 = vsel %vm308, 1, 0
        %v789 = vsel %vm309, 1, 0
        %v790 = vsel %vm310, 1, 0
        %v791 = vsel %vm311, 1, 0
        %v792 = vsel %vm312, 1, 0
        %v793 = vsel %vm313, 1, 0
        %v794 = vsel %vm314, 1, 0
        %v795 = vsel %vm315, 1, 0
        %v796 = vsel %vm316, 1, 0
        %v797 = vsel %vm317, 1, 0
        %v798 = vsel %vm318, 1, 0
        %v799 = vsel %vm319, 1, 0
        %v800 = vsel %vm320, 1, 0
        %v801 = vsel %vm321, 1, 0
        %v802 = vsel %vm322, 1, 0
        %v803 = vsel %vm323, 1, 0
        %v804 = vsel %vm324, 1, 0
        %v805 = vsel %vm325, 1, 0
        %v806 = vsel %vm326, 1, 0
        %v807 = vsel %vm327, 1, 0
        %v808 = vsel %vm328, 1, 0
        %v809 = vsel %vm329, 1, 0
        %v810 = vsel %vm330, 1, 0
        %v811 = vsel %vm331, 1, 0
        %v812 = vsel %vm332, 1, 0
        %v813 = vsel %vm333, 1, 0
        %v814 = vsel %vm334, 1, 0
        %v815 = vsel %vm335, 1, 0
        %v816 = vsel %vm336, 1, 0
        %v817 = vsel %vm337, 1, 0
        %v818 = vsel %vm338, 1, 0
        %v819 = vsel %vm339, 1, 0
        %v820 = vsel %vm340, 1, 0
        %v821 = vsel %vm341, 1, 0
        %v822 = vsel %vm342, 1, 0
        %v823 = vsel %vm343, 1, 0
        %v824 = vsel %vm344, 1, 0
        %v825 = vsel %vm345, 1, 0
        %v826 = vsel %vm346, 1, 0
        %v827 = vsel %vm347, 1, 0
        %v828 = vsel %vm348, 1, 0
        %v829 = vsel %vm349, 1, 0
        %v830 = vsel %vm350, 1, 0
        %v831 = vsel %vm351, 1, 0
        %v832 = vsel %vm352, 1, 0
        %v833 = vsel %vm353, 1, 0
        %v834 = vsel %vm354, 1, 0
        %v835 = vsel %vm355, 1, 0
        %v836 = vsel %vm356, 1, 0
        %v837 = vsel %vm357, 1, 0
        %v838 = vsel %vm358, 1, 0
        %v839 = vsel %vm359, 1, 0
        %v840 = vsel %vm360, 1, 0
        %v841 = vsel %vm361, 1, 0
        %v842 = vsel %vm362, 1, 0
        %v843 = vsel %vm363, 1, 0
        %v844 = vsel %vm364, 1, 0
        %v845 = vsel %vm365, 1, 0
        %v846 = vsel %vm366, 1, 0
        %v847 = vsel %vm367, 1, 0
        %v848 = vsel %vm368, 1, 0
        %v849 = vsel %vm369, 1, 0
        %v850 = vsel %vm370, 1, 0
        %v851 = vsel %vm371, 1, 0
        %v852 = vsel %vm372, 1, 0
        %v853 = vsel %vm373, 1, 0
        %v854 = vsel %vm374, 1, 0
        %v855 = vsel %vm375, 1, 0
        %v856 = vsel %vm376, 1, 0
        %v857 = vsel %vm377, 1, 0
        %v858 = vsel %vm378, 1, 0
        %v859 = vsel %vm379, 1, 0
        %v860 = vsel %vm380, 1, 0
        %v861 = vsel %vm381, 1, 0
        %v862 = vsel %vm382, 1, 0
        %v863 = vsel %vm383, 1, 0
        %v864 = vsel %vm384, 1, 0
        %v865 = vsel %vm385, 1, 0
        %v866 = vsel %vm386, 1, 0
        %v867 = vsel %vm387, 1, 0
        %v868 = vsel %vm388, 1, 0
        %v869 = vsel %vm389, 1, 0
        %v870 = vsel %vm390, 1, 0
        %v871 = vsel %vm391, 1, 0
        %v872 = vsel %vm392, 1, 0
        %v873 = vsel %vm393, 1, 0
        %v874 = vsel %vm394, 1, 0
        %v875 = vsel %vm395, 1, 0
        %v876 = vsel %vm396, 1, 0
        %v877 = vsel %vm397, 1, 0
        %v878 = vsel %vm398, 1, 0
        %v879 = vsel %vm399, 1, 0
        %v880 = vsel %vm400, 1, 0
        %v881 = vsel %vm401, 1, 0
        %v882 = vsel %vm402, 1, 0
        %v883 = vsel %vm403, 1, 0
        %v884 = vsel %vm404, 1, 0
        %v885 = vsel %vm405, 1, 0
        %v886 = vsel %vm406, 1, 0
        %v887 = vsel %vm407, 1, 0
        %v888 = vsel %vm408, 1, 0
        %v889 = vsel %vm409, 1, 0
        %v890 = vsel %vm410, 1, 0
        %v891 = vsel %vm411, 1, 0
        %v892 = vsel %vm412, 1, 0
        %v893 = vsel %vm413, 1, 0
        %v894 = vsel %vm414, 1, 0
        %v895 = vsel %vm415, 1, 0
        %v896 = vsel %vm416, 1, 0
        %v897 = vsel %vm417, 1, 0
        %v898 = vsel %vm418, 1, 0
        %v899 = vsel %vm419, 1, 0
        %v900 = vsel %vm420, 1, 0
        %v901 = vsel %vm421, 1, 0
        %v902 = vsel %vm422, 1, 0
        %v903 = vsel %vm423, 1, 0
        %v904 = vsel %vm424, 1, 0
        %v905 = vsel %vm425, 1, 0
        %v906 = vsel %vm426, 1, 0
        %v907 = vsel %vm427, 1, 0
        %v908 = vsel %vm428, 1, 0
        %v909 = vsel %vm429, 1, 0
        %v910 = vsel %vm430, 1, 0
        %v911 = vsel %vm431, 1, 0
        %v912 = vsel %vm432, 1, 0
        %v913 = vsel %vm433, 1, 0
        %v914 = vsel %vm434, 1, 0
        %v915 = vsel %vm435, 1, 0
        %v916 = vsel %vm436, 1, 0
        %v917 = vsel %vm437, 1, 0
        %v918 = vsel %vm438, 1, 0
        %v919 = vsel %vm439, 1, 0
        %v920 = vsel %vm440, 1, 0
        %v921 = vsel %vm441, 1, 0
        %v922 = vsel %vm442, 1, 0
        %v923 = vsel %vm443, 1, 0
        %v924 = vsel %vm444, 1, 0
        %v925 = vsel %vm445, 1, 0
        %v926 = vsel %vm446, 1, 0
        %v927 = vsel %vm447, 1, 0
        %v928 = vsel %vm448, 1, 0
        %v929 = vsel %vm449, 1, 0
        %v930 = vsel %vm450, 1, 0
        %v931 = vsel %vm451, 1, 0
        %v932 = vsel %vm452, 1, 0
        %v933 = vsel %vm453, 1, 0
        %v934 = vsel %vm454, 1, 0
        %v935 = vsel %vm455, 1, 0
        %v936 = vsel %vm456, 1, 0
        %v937 = vsel %vm457, 1, 0
        %v938 = vsel %vm458, 1, 0
        %v939 = vsel %vm459, 1, 0
        %v940 = vsel %vm460, 1, 0
        %v941 = vsel %vm461, 1, 0
        %v942 = vsel %vm462, 1, 0
        %v943 = vsel %vm463, 1, 0
        %v944 = vsel %vm464, 1, 0
        %v945 = vsel %vm465, 1, 0
        %v946 = vsel %vm466, 1, 0
        %v947 = vsel %vm467, 1, 0
        %v948 = vsel %vm468, 1, 0
        %v949 = vsel %vm469, 1, 0
        %v950 = vsel %vm470, 1, 0
        %v951 = vsel %vm471, 1, 0
        %v952 = vsel %vm472, 1, 0
        %v953 = vsel %vm473, 1, 0
        %v954 = vsel %vm474, 1, 0
        %v955 = vsel %vm475, 1, 0
        %v956 = vsel %vm476, 1, 0
        %v957 = vsel %vm477, 1, 0
        %v958 = vsel %vm478, 1, 0
        %v959 = vsel %vm479, 1, 0
        %v960 = vsel %vm480, 1, 0
        %v961 = vsel %vm481, 1, 0
        %v962 = vsel %vm482, 1, 0
        %v963 = vsel %vm483, 1, 0
        %v964 = vsel %vm484, 1, 0
        %v965 = vsel %vm485, 1, 0
        %v966 = vsel %vm486, 1, 0
        %v967 = vsel %vm487, 1, 0
        %v968 = vsel %vm488, 1, 0
        %v969 = vsel %vm489, 1, 0
        %v970 = vsel %vm490, 1, 0
        %v971 = vsel %vm491, 1, 0
        %v972 = vsel %vm492, 1, 0
        %v973 = vsel %vm493, 1, 0
        %v974 = vsel %vm494, 1, 0
        %v975 = vsel %vm495, 1, 0
        %v976 = vsel %vm496, 1, 0
        %v977 = vsel %vm497, 1, 0
        %v978 = vsel %vm498, 1, 0
        %v979 = vsel %vm499, 1, 0
        %v980 = vsel %vm500, 1, 0
        %v981 = vsel %vm501, 1, 0
        %v982 = vsel %vm502, 1, 0
        %v983 = vsel %vm503, 1, 0
        %v984 = vsel %vm504, 1, 0
        %v985 = vsel %vm505, 1, 0
        %v986 = vsel %vm506, 1, 0
        %v987 = vsel %vm507, 1, 0
        %v988 = vsel %vm508, 1, 0
        %v989 = vsel %vm509, 1, 0
        %v990 = vsel %vm510, 1, 0
        %v991 = vsel %vm511, 1, 0
        %v992 = vsel %vm512, 1, 0
        %v993 = vsel %vm513, 1, 0
        %v994 = vsel %vm514, 1, 0
        %v995 = vsel %vm515, 1, 0
        %v996 = vsel %vm516, 1, 0
        %v997 = vsel %vm517, 1, 0
        %v998 = vsel %vm518, 1, 0
        %v999 = vsel %vm519, 1, 0
        %v1000 = vsel %vm520, 1, 0
        %v1001 = vsel %vm521, 1, 0
        %v1002 = vsel %vm522, 1, 0
        %v1003 = vsel %vm523, 1, 0
        %v1004 = vsel %vm524, 1, 0
        %v1005 = vsel %vm525, 1, 0
        %v1006 = vsel %vm526, 1, 0
        %v1007 = vsel %vm527, 1, 0
        %v1008 = vsel %vm528, 1, 0
        %v1009 = vsel %vm529, 1, 0
        %v1010 = vsel %vm530, 1, 0
        %v1011 = vsel %vm531, 1, 0
        %v1012 = vsel %vm532, 1, 0
        %v1013 = vsel %vm533, 1, 0
        %v1014 = vsel %vm534, 1, 0
        %v1015 = vsel %vm535, 1, 0
        %v1016 = vsel %vm536, 1, 0
        %v1017 = vsel %vm537, 1, 0
        %v1018 = vsel %vm538, 1, 0
        %v1019 = vsel %vm539, 1, 0
        %v1020 = vsel %vm540, 1, 0
        %v1021 = vsel %vm541, 1, 0
        %v1022 = vsel %vm542, 1, 0
        %v1023 = vsel %vm543, 1, 0
        %v1024 = vsel %vm544, 1, 0
        %v1025 = vsel %vm545, 1, 0
        %v1026 = vsel %vm546, 1, 0
        %v1027 = vsel %vm547, 1, 0
        %v1028 = vsel %vm548, 1, 0
        %v1029 = vsel %vm549, 1, 0
        %v1030 = vsel %vm550, 1, 0
        %v1031 = vsel %vm551, 1, 0
        %v1032 = vsel %vm552, 1, 0
        %v1033 = vsel %vm553, 1, 0
        %v1034 = vsel %vm554, 1, 0
        %v1035 = vsel %vm555, 1, 0
        %v1036 = vsel %vm556, 1, 0
        %v1037 = vsel %vm557, 1, 0
        %v1038 = vsel %vm558, 1, 0
        %v1039 = vsel %vm559, 1, 0
        %v1040 = vsel %vm560, 1, 0
        %v1041 = vsel %vm561, 1, 0
        %v1042 = vsel %vm562, 1, 0
        %v1043 = vsel %vm563, 1, 0
        %v1044 = vsel %vm564, 1, 0
        %v1045 = vsel %vm565, 1, 0
        %v1046 = vsel %vm566, 1, 0
        %v1047 = vsel %vm567, 1, 0
        %v1048 = vsel %vm568, 1, 0
        %v1049 = vsel %vm569, 1, 0
        %v1050 = vsel %vm570, 1, 0
        %v1051 = vsel %vm571, 1, 0
        %v1052 = vsel %vm572, 1, 0
        %v1053 = vsel %vm573, 1, 0
        %v1054 = vsel %vm574, 1, 0
        %v1055 = vsel %vm575, 1, 0
        %v1056 = vsel %vm576, 1, 0
        %v1057 = vsel %vm577, 1, 0
        %v1058 = vsel %vm578, 1, 0
        %v1059 = vsel %vm579, 1, 0
        %v1060 = vsel %vm580, 1, 0
        %v1061 = vsel %vm581, 1, 0
        %v1062 = vsel %vm582, 1, 0
        %v1063 = vsel %vm583, 1, 0
        %v1064 = vsel %vm584, 1, 0
        %v1065 = vsel %vm585, 1, 0
        %v1066 = vsel %vm586, 1, 0
        %v1067 = vsel %vm587, 1, 0
        %v1068 = vsel %vm588, 1, 0
        %v1069 = vsel %vm589, 1, 0
        %v1070 = vsel %vm590, 1, 0
        %v1071 = vsel %vm591, 1, 0
        %v1072 = vsel %vm592, 1, 0
        %v1073 = vsel %vm593, 1, 0
        %v1074 = vsel %vm594, 1, 0
        %v1075 = vsel %vm595, 1, 0
        %v1076 = vsel %vm596, 1, 0
        %v1077 = vsel %vm597, 1, 0
        %v1078 = vsel %vm598, 1, 0
        %v1079 = vsel %vm599, 1, 0
        %v1080 = vsel %vm600, 1, 0
        %v1081 = vsel %vm601, 1, 0
        %v1082 = vsel %vm602, 1, 0
        %v1083 = vsel %vm603, 1, 0
        %v1084 = vsel %vm604, 1, 0
        %v1085 = vsel %vm605, 1, 0
        %v1086 = vsel %vm606, 1, 0
        %v1087 = vsel %vm607, 1, 0
        %v1088 = vsel %vm608, 1, 0
        %v1089 = vsel %vm609, 1, 0
        %v1090 = vsel %vm610, 1, 0
        %v1091 = vsel %vm611, 1, 0
        %v1092 = vsel %vm612, 1, 0
        %v1093 = vsel %vm613, 1, 0
        %v1094 = vsel %vm614, 1, 0
        %v1095 = vsel %vm615, 1, 0
        %v1096 = vsel %vm616, 1, 0
        %v1097 = vsel %vm617, 1, 0
        %v1098 = vsel %vm618, 1, 0
        %v1099 = vsel %vm619, 1, 0
        %v1100 = vsel %vm620, 1, 0
        %v1101 = vsel %vm621, 1, 0
        %v1102 = vsel %vm622, 1, 0
        %v1103 = vsel %vm623, 1, 0
        %v1104 = vsel %vm624, 1, 0
        %v1105 = vsel %vm625, 1, 0
        %v1106 = vsel %vm626, 1, 0
        %v1107 = vsel %vm627, 1, 0
        %v1108 = vsel %vm628, 1, 0
        %v1109 = vsel %vm629, 1, 0
        %v1110 = vsel %vm630, 1, 0
        %v1111 = vsel %vm631, 1, 0
        %v1112 = vsel %vm632, 1, 0
        %v1113 = vsel %vm633, 1, 0
        %v1114 = vsel %vm634, 1, 0
        %v1115 = vsel %vm635, 1, 0
        %v1116 = vsel %vm636, 1, 0
        %v1117 = vsel %vm637, 1, 0
        %v1118 = vsel %vm638, 1, 0
        %v1119 = vsel %vm639, 1, 0
        %v1120 = vsel %vm640, 1, 0
        %v1121 = vsel %vm641, 1, 0
        %v1122 = vsel %vm642, 1, 0
        %v1123 = vsel %vm643, 1, 0
        %v1124 = vsel %vm644, 1, 0
        %v1125 = vsel %vm645, 1, 0
        %v1126 = vsel %vm646, 1, 0
        %v1127 = vsel %vm647, 1, 0
        %v1128 = vsel %vm648, 1, 0
        %v1129 = vsel %vm649, 1, 0
        %v1130 = vsel %vm650, 1, 0
        %v1131 = vsel %vm651, 1, 0
        %v1132 = vsel %vm652, 1, 0
        %v1133 = vsel %vm653, 1, 0
        %v1134 = vsel %vm654, 1, 0
        %v1135 = vsel %vm655, 1, 0
        %v1136 = vsel %vm656, 1, 0
        %v1137 = vsel %vm657, 1, 0
        %v1138 = vsel %vm658, 1, 0
        %v1139 = vsel %vm659, 1, 0
        %v1140 = vsel %vm660, 1, 0
        %v1141 = vsel %vm661, 1, 0
        %v1142 = vsel %vm662, 1, 0
        %v1143 = vsel %vm663, 1, 0
        %v1144 = vsel %vm664, 1, 0
        %v1145 = vsel %vm665, 1, 0
        %v1146 = vsel %vm666, 1, 0
        %v1147 = vsel %vm667, 1, 0
        %v1148 = vsel %vm668, 1, 0
        %v1149 = vsel %vm669, 1, 0
        %v1150 = vsel %vm670, 1, 0
        %v1151 = vsel %vm671, 1, 0
        %v1152 = vsel %vm672, 1, 0
        %v1153 = vsel %vm673, 1, 0
        %v1154 = vsel %vm674, 1, 0
        %v1155 = vsel %vm675, 1, 0
        %v1156 = vsel %vm676, 1, 0
        %v1157 = vsel %vm677, 1, 0
        %v1158 = vsel %vm678, 1, 0
        %v1159 = vsel %vm679, 1, 0
        %v1160 = vsel %vm680, 1, 0
        %v1161 = vsel %vm681, 1, 0
        %v1162 = vsel %vm682, 1, 0
        %v1163 = vsel %vm683, 1, 0
        %v1164 = vsel %vm684, 1, 0
        %v1165 = vsel %vm685, 1, 0
        %v1166 = vsel %vm686, 1, 0
        %v1167 = vsel %vm687, 1, 0
        %v1168 = vsel %vm688, 1, 0
        %v1169 = vsel %vm689, 1, 0
        %v1170 = vsel %vm690, 1, 0
        %v1171 = vsel %vm691, 1, 0
        %v1172 = vsel %vm692, 1, 0
        %v1173 = vsel %vm693, 1, 0
        %v1174 = vsel %vm694, 1, 0
        %v1175 = vsel %vm695, 1, 0
        %v1176 = vsel %vm696, 1, 0
        %v1177 = vsel %vm697, 1, 0
        %v1178 = vsel %vm698, 1, 0
        %v1179 = vsel %vm699, 1, 0
        %v1180 = vsel %vm700, 1, 0
        %v1181 = vsel %vm701, 1, 0
        %v1182 = vsel %vm702, 1, 0
        %v1183 = vsel %vm703, 1, 0
        %v1184 = vsel %vm704, 1, 0
        %v1185 = vsel %vm705, 1, 0
        %v1186 = vsel %vm706, 1, 0
        %v1187 = vsel %vm707, 1, 0
        %v1188 = vsel %vm708, 1, 0
        %v1189 = vsel %vm709, 1, 0
        %v1190 = vsel %vm710, 1, 0
        %v1191 = vsel %vm711, 1, 0
        %v1192 = vsel %vm712, 1, 0
        %v1193 = vsel %vm713, 1, 0
        %v1194 = vsel %vm714, 1, 0
        %v1195 = vsel %vm715, 1, 0
        %v1196 = vsel %vm716, 1, 0
        %v1197 = vsel %vm717, 1, 0
        %v1198 = vsel %vm718, 1, 0
        %v1199 = vsel %vm719, 1, 0
        %v1200 = vsel %vm720, 1, 0
        %v1201 = vsel %vm721, 1, 0
        %v1202 = vsel %vm722, 1, 0
        %v1203 = vsel %vm723, 1, 0
        %v1204 = vsel %vm724, 1, 0
        %v1205 = vsel %vm725, 1, 0
        %v1206 = vsel %vm726, 1, 0
        %v1207 = vsel %vm727, 1, 0
        %v1208 = vsel %vm728, 1, 0
        %v1209 = vsel %vm729, 1, 0
        %v1210 = vsel %vm730, 1, 0
        %v1211 = vsel %vm731, 1, 0
        %v1212 = vsel %vm732, 1, 0
        %v1213 = vsel %vm733, 1, 0
        %v1214 = vsel %vm734, 1, 0
        %v1215 = vsel %vm735, 1, 0
        %v1216 = vsel %vm736, 1, 0
        %v1217 = vsel %vm737, 1, 0
        %v1218 = vsel %vm738, 1, 0
        %v1219 = vsel %vm739, 1, 0
        %v1220 = vsel %vm740, 1, 0
        %v1221 = vsel %vm741, 1, 0
        %v1222 = vsel %vm742, 1, 0
        %v1223 = vsel %vm743, 1, 0
        %v1224 = vsel %vm744, 1, 0
        %v1225 = vsel %vm745, 1, 0
        %v1226 = vsel %vm746, 1, 0
        %v1227 = vsel %vm747, 1, 0
        %v1228 = vsel %vm748, 1, 0
        %v1229 = vsel %vm749, 1, 0
        %v1230 = vsel %vm750, 1, 0
        %v1231 = vsel %vm751, 1, 0
        %v1232 = vsel %vm752, 1, 0
        %v1233 = vsel %vm753, 1, 0
        %v1234 = vsel %vm754, 1, 0
        %v1235 = vsel %vm755, 1, 0
        %v1236 = vsel %vm756, 1, 0
        %v1237 = vsel %vm757, 1, 0
        %v1238 = vsel %vm758, 1, 0
        %v1239 = vsel %vm759, 1, 0
        %v1240 = vsel %vm760, 1, 0
        %v1241 = vsel %vm761, 1, 0
        %v1242 = vsel %vm762, 1, 0
        %v1243 = vsel %vm763, 1, 0
        %v1244 = vsel %vm764, 1, 0
        %v1245 = vsel %vm765, 1, 0
        %v1246 = vsel %vm766, 1, 0
        %v1247 = vsel %vm767, 1, 0
        %v1248 = vsel %vm768, 1, 0
        %v1249 = vsel %vm769, 1, 0
        %v1250 = vsel %vm770, 1, 0
        %v1251 = vsel %vm771, 1, 0
        %v1252 = vsel %vm772, 1, 0
        %v1253 = vsel %vm773, 1, 0
        %v1254 = vsel %vm774, 1, 0
        %v1255 = vsel %vm775, 1, 0
        %v1256 = vsel %vm776, 1, 0
        %v1257 = vsel %vm777, 1, 0
        %v1258 = vsel %vm778, 1, 0
        %v1259 = vsel %vm779, 1, 0
        %v1260 = vsel %vm780, 1, 0
        %v1261 = vsel %vm781, 1, 0
        %v1262 = vcvt.s32.f32 %v782
        %v1263 = vcvt.s32.f32 %v783
        %v1264 = vcvt.s32.f32 %v784
        %v1265 = vcvt.s32.f32 %v785
        %v1266 = vcvt.s32.f32 %v786
        %v1267 = vcvt.s32.f32 %v787
        %v1268 = vcvt.s32.f32 %v788
        %v1269 = vcvt.s32.f32 %v789
        %v1270 = vcvt.s32.f32 %v790
        %v1271 = vcvt.s32.f32 %v791
        %v1272 = vcvt.s32.f32 %v792
        %v1273 = vcvt.s32.f32 %v793
        %v1274 = vcvt.s32.f32 %v794
        %v1275 = vcvt.s32.f32 %v795
        %v1276 = vcvt.s32.f32 %v796
        %v1277 = vcvt.s32.f32 %v797
        %v1278 = vcvt.s32.f32 %v798
        %v1279 = vcvt.s32.f32 %v799
        %v1280 = vcvt.s32.f32 %v800
        %v1281 = vcvt.s32.f32 %v801
        %v1282 = vcvt.s32.f32 %v802
        %v1283 = vcvt.s32.f32 %v803
        %v1284 = vcvt.s32.f32 %v804
        %v1285 = vcvt.s32.f32 %v805
        %v1286 = vcvt.s32.f32 %v806
        %v1287 = vcvt.s32.f32 %v807
        %v1288 = vcvt.s32.f32 %v808
        %v1289 = vcvt.s32.f32 %v809
        %v1290 = vcvt.s32.f32 %v810
        %v1291 = vcvt.s32.f32 %v811
        %v1292 = vcvt.s32.f32 %v812
        %v1293 = vcvt.s32.f32 %v813
        %v1294 = vcvt.s32.f32 %v814
        %v1295 = vcvt.s32.f32 %v815
        %v1296 = vcvt.s32.f32 %v816
        %v1297 = vcvt.s32.f32 %v817
        %v1298 = vcvt.s32.f32 %v818
        %v1299 = vcvt.s32.f32 %v819
        %v1300 = vcvt.s32.f32 %v820
        %v1301 = vcvt.s32.f32 %v821
        %v1302 = vcvt.s32.f32 %v822
        %v1303 = vcvt.s32.f32 %v823
        %v1304 = vcvt.s32.f32 %v824
        %v1305 = vcvt.s32.f32 %v825
        %v1306 = vcvt.s32.f32 %v826
        %v1307 = vcvt.s32.f32 %v827
        %v1308 = vcvt.s32.f32 %v828
        %v1309 = vcvt.s32.f32 %v829
        %v1310 = vcvt.s32.f32 %v830
        %v1311 = vcvt.s32.f32 %v831
        %v1312 = vcvt.s32.f32 %v832
        %v1313 = vcvt.s32.f32 %v833
        %v1314 = vcvt.s32.f32 %v834
        %v1315 = vcvt.s32.f32 %v835
        %v1316 = vcvt.s32.f32 %v836
        %v1317 = vcvt.s32.f32 %v837
        %v1318 = vcvt.s32.f32 %v838
        %v1319 = vcvt.s32.f32 %v839
        %v1320 = vcvt.s32.f32 %v840
        %v1321 = vcvt.s32.f32 %v841
        %v1322 = vcvt.s32.f32 %v842
        %v1323 = vcvt.s32.f32 %v843
        %v1324 = vcvt.s32.f32 %v844
        %v1325 = vcvt.s32.f32 %v845
        %v1326 = vcvt.s32.f32 %v846
        %v1327 = vcvt.s32.f32 %v847
        %v1328 = vcvt.s32.f32 %v848
        %v1329 = vcvt.s32.f32 %v849
        %v1330 = vcvt.s32.f32 %v850
        %v1331 = vcvt.s32.f32 %v851
        %v1332 = vcvt.s32.f32 %v852
        %v1333 = vcvt.s32.f32 %v853
        %v1334 = vcvt.s32.f32 %v854
        %v1335 = vcvt.s32.f32 %v855
        %v1336 = vcvt.s32.f32 %v856
        %v1337 = vcvt.s32.f32 %v857
        %v1338 = vcvt.s32.f32 %v858
        %v1339 = vcvt.s32.f32 %v859
        %v1340 = vcvt.s32.f32 %v860
        %v1341 = vcvt.s32.f32 %v861
        %v1342 = vcvt.s32.f32 %v862
        %v1343 = vcvt.s32.f32 %v863
        %v1344 = vcvt.s32.f32 %v864
        %v1345 = vcvt.s32.f32 %v865
        %v1346 = vcvt.s32.f32 %v866
        %v1347 = vcvt.s32.f32 %v867
        %v1348 = vcvt.s32.f32 %v868
        %v1349 = vcvt.s32.f32 %v869
        %v1350 = vcvt.s32.f32 %v870
        %v1351 = vcvt.s32.f32 %v871
        %v1352 = vcvt.s32.f32 %v872
        %v1353 = vcvt.s32.f32 %v873
        %v1354 = vcvt.s32.f32 %v874
        %v1355 = vcvt.s32.f32 %v875
        %v1356 = vcvt.s32.f32 %v876
        %v1357 = vcvt.s32.f32 %v877
        %v1358 = vcvt.s32.f32 %v878
        %v1359 = vcvt.s32.f32 %v879
        %v1360 = vcvt.s32.f32 %v880
        %v1361 = vcvt.s32.f32 %v881
        %v1362 = vcvt.s32.f32 %v882
        %v1363 = vcvt.s32.f32 %v883
        %v1364 = vcvt.s32.f32 %v884
        %v1365 = vcvt.s32.f32 %v885
        %v1366 = vcvt.s32.f32 %v886
        %v1367 = vcvt.s32.f32 %v887
        %v1368 = vcvt.s32.f32 %v888
        %v1369 = vcvt.s32.f32 %v889
        %v1370 = vcvt.s32.f32 %v890
        %v1371 = vcvt.s32.f32 %v891
        %v1372 = vcvt.s32.f32 %v892
        %v1373 = vcvt.s32.f32 %v893
        %v1374 = vcvt.s32.f32 %v894
        %v1375 = vcvt.s32.f32 %v895
        %v1376 = vcvt.s32.f32 %v896
        %v1377 = vcvt.s32.f32 %v897
        %v1378 = vcvt.s32.f32 %v898
        %v1379 = vcvt.s32.f32 %v899
        %v1380 = vcvt.s32.f32 %v900
        %v1381 = vcvt.s32.f32 %v901
        %v1382 = vcvt.s32.f32 %v902
        %v1383 = vcvt.s32.f32 %v903
        %v1384 = vcvt.s32.f32 %v904
        %v1385 = vcvt.s32.f32 %v905
        %v1386 = vcvt.s32.f32 %v906
        %v1387 = vcvt.s32.f32 %v907
        %v1388 = vcvt.s32.f32 %v908
        %v1389 = vcvt.s32.f32 %v909
        %v1390 = vcvt.s32.f32 %v910
        %v1391 = vcvt.s32.f32 %v911
        %v1392 = vcvt.s32.f32 %v912
        %v1393 = vcvt.s32.f32 %v913
        %v1394 = vcvt.s32.f32 %v914
        %v1395 = vcvt.s32.f32 %v915
        %v1396 = vcvt.s32.f32 %v916
        %v1397 = vcvt.s32.f32 %v917
        %v1398 = vcvt.s32.f32 %v918
        %v1399 = vcvt.s32.f32 %v919
        %v1400 = vcvt.s32.f32 %v920
        %v1401 = vcvt.s32.f32 %v921
        %v1402 = vcvt.s32.f32 %v922
        %v1403 = vcvt.s32.f32 %v923
        %v1404 = vcvt.s32.f32 %v924
        %v1405 = vcvt.s32.f32 %v925
        %v1406 = vcvt.s32.f32 %v926
        %v1407 = vcvt.s32.f32 %v927
        %v1408 = vcvt.s32.f32 %v928
        %v1409 = vcvt.s32.f32 %v929
        %v1410 = vcvt.s32.f32 %v930
        %v1411 = vcvt.s32.f32 %v931
        %v1412 = vcvt.s32.f32 %v932
        %v1413 = vcvt.s32.f32 %v933
        %v1414 = vcvt.s32.f32 %v934
        %v1415 = vcvt.s32.f32 %v935
        %v1416 = vcvt.s32.f32 %v936
        %v1417 = vcvt.s32.f32 %v937
        %v1418 = vcvt.s32.f32 %v938
        %v1419 = vcvt.s32.f32 %v939
        %v1420 = vcvt.s32.f32 %v940
        %v1421 = vcvt.s32.f32 %v941
        %v1422 = vcvt.s32.f32 %v942
        %v1423 = vcvt.s32.f32 %v943
        %v1424 = vcvt.s32.f32 %v944
        %v1425 = vcvt.s32.f32 %v945
        %v1426 = vcvt.s32.f32 %v946
        %v1427 = vcvt.s32.f32 %v947
        %v1428 = vcvt.s32.f32 %v948
        %v1429 = vcvt.s32.f32 %v949
        %v1430 = vcvt.s32.f32 %v950
        %v1431 = vcvt.s32.f32 %v951
        %v1432 = vcvt.s32.f32 %v952
        %v1433 = vcvt.s32.f32 %v953
        %v1434 = vcvt.s32.f32 %v954
        %v1435 = vcvt.s32.f32 %v955
        %v1436 = vcvt.s32.f32 %v956
        %v1437 = vcvt.s32.f32 %v957
        %v1438 = vcvt.s32.f32 %v958
        %v1439 = vcvt.s32.f32 %v959
        %v1440 = vcvt.s32.f32 %v960
        %v1441 = vcvt.s32.f32 %v961
        %v1442 = vcvt.s32.f32 %v962
        %v1443 = vcvt.s32.f32 %v963
        %v1444 = vcvt.s32.f32 %v964
        %v1445 = vcvt.s32.f32 %v965
        %v1446 = vcvt.s32.f32 %v966
        %v1447 = vcvt.s32.f32 %v967
        %v1448 = vcvt.s32.f32 %v968
        %v1449 = vcvt.s32.f32 %v969
        %v1450 = vcvt.s32.f32 %v970
        %v1451 = vcvt.s32.f32 %v971
        %v1452 = vcvt.s32.f32 %v972
        %v1453 = vcvt.s32.f32 %v973
        %v1454 = vcvt.s32.f32 %v974
        %v1455 = vcvt.s32.f32 %v975
        %v1456 = vcvt.s32.f32 %v976
        %v1457 = vcvt.s32.f32 %v977
        %v1458 = vcvt.s32.f32 %v978
        %v1459 = vcvt.s32.f32 %v979
        %v1460 = vcvt.s32.f32 %v980
        %v1461 = vcvt.s32.f32 %v981
        %v1462 = vcvt.s32.f32 %v982
        %v1463 = vcvt.s32.f32 %v983
        %v1464 = vcvt.s32.f32 %v984
        %v1465 = vcvt.s32.f32 %v985
        %v1466 = vcvt.s32.f32 %v986
        %v1467 = vcvt.s32.f32 %v987
        %v1468 = vcvt.s32.f32 %v988
        %v1469 = vcvt.s32.f32 %v989
        %v1470 = vcvt.s32.f32 %v990
        %v1471 = vcvt.s32.f32 %v991
        %v1472 = vcvt.s32.f32 %v992
        %v1473 = vcvt.s32.f32 %v993
        %v1474 = vcvt.s32.f32 %v994
        %v1475 = vcvt.s32.f32 %v995
        %v1476 = vcvt.s32.f32 %v996
        %v1477 = vcvt.s32.f32 %v997
        %v1478 = vcvt.s32.f32 %v998
        %v1479 = vcvt.s32.f32 %v999
        %v1480 = vcvt.s32.f32 %v1000
        %v1481 = vcvt.s32.f32 %v1001
        %v1482 = vcvt.s32.f32 %v1002
        %v1483 = vcvt.s32.f32 %v1003
        %v1484 = vcvt.s32.f32 %v1004
        %v1485 = vcvt.s32.f32 %v1005
        %v1486 = vcvt.s32.f32 %v1006
        %v1487 = vcvt.s32.f32 %v1007
        %v1488 = vcvt.s32.f32 %v1008
        %v1489 = vcvt.s32.f32 %v1009
        %v1490 = vcvt.s32.f32 %v1010
        %v1491 = vcvt.s32.f32 %v1011
        %v1492 = vcvt.s32.f32 %v1012
        %v1493 = vcvt.s32.f32 %v1013
        %v1494 = vcvt.s32.f32 %v1014
        %v1495 = vcvt.s32.f32 %v1015
        %v1496 = vcvt.s32.f32 %v1016
        %v1497 = vcvt.s32.f32 %v1017
        %v1498 = vcvt.s32.f32 %v1018
        %v1499 = vcvt.s32.f32 %v1019
        %v1500 = vcvt.s32.f32 %v1020
        %v1501 = vcvt.s32.f32 %v1021
        %v1502 = vcvt.s32.f32 %v1022
        %v1503 = vcvt.s32.f32 %v1023
        %v1504 = vcvt.s32.f32 %v1024
        %v1505 = vcvt.s32.f32 %v1025
        %v1506 = vcvt.s32.f32 %v1026
        %v1507 = vcvt.s32.f32 %v1027
        %v1508 = vcvt.s32.f32 %v1028
        %v1509 = vcvt.s32.f32 %v1029
        %v1510 = vcvt.s32.f32 %v1030
        %v1511 = vcvt.s32.f32 %v1031
        %v1512 = vcvt.s32.f32 %v1032
        %v1513 = vcvt.s32.f32 %v1033
        %v1514 = vcvt.s32.f32 %v1034
        %v1515 = vcvt.s32.f32 %v1035
        %v1516 = vcvt.s32.f32 %v1036
        %v1517 = vcvt.s32.f32 %v1037
        %v1518 = vcvt.s32.f32 %v1038
        %v1519 = vcvt.s32.f32 %v1039
        %v1520 = vcvt.s32.f32 %v1040
        %v1521 = vcvt.s32.f32 %v1041
        %v1522 = vcvt.s32.f32 %v1042
        %v1523 = vcvt.s32.f32 %v1043
        %v1524 = vcvt.s32.f32 %v1044
        %v1525 = vcvt.s32.f32 %v1045
        %v1526 = vcvt.s32.f32 %v1046
        %v1527 = vcvt.s32.f32 %v1047
        %v1528 = vcvt.s32.f32 %v1048
        %v1529 = vcvt.s32.f32 %v1049
        %v1530 = vcvt.s32.f32 %v1050
        %v1531 = vcvt.s32.f32 %v1051
        %v1532 = vcvt.s32.f32 %v1052
        %v1533 = vcvt.s32.f32 %v1053
        %v1534 = vcvt.s32.f32 %v1054
        %v1535 = vcvt.s32.f32 %v1055
        %v1536 = vcvt.s32.f32 %v1056
        %v1537 = vcvt.s32.f32 %v1057
        %v1538 = vcvt.s32.f32 %v1058
        %v1539 = vcvt.s32.f32 %v1059
        %v1540 = vcvt.s32.f32 %v1060
        %v1541 = vcvt.s32.f32 %v1061
        %v1542 = vcvt.s32.f32 %v1062
        %v1543 = vcvt.s32.f32 %v1063
        %v1544 = vcvt.s32.f32 %v1064
        %v1545 = vcvt.s32.f32 %v1065
        %v1546 = vcvt.s32.f32 %v1066
        %v1547 = vcvt.s32.f32 %v1067
        %v1548 = vcvt.s32.f32 %v1068
        %v1549 = vcvt.s32.f32 %v1069
        %v1550 = vcvt.s32.f32 %v1070
        %v1551 = vcvt.s32.f32 %v1071
        %v1552 = vcvt.s32.f32 %v1072
        %v1553 = vcvt.s32.f32 %v1073
        %v1554 = vcvt.s32.f32 %v1074
        %v1555 = vcvt.s32.f32 %v1075
        %v1556 = vcvt.s32.f32 %v1076
        %v1557 = vcvt.s32.f32 %v1077
        %v1558 = vcvt.s32.f32 %v1078
        %v1559 = vcvt.s32.f32 %v1079
        %v1560 = vcvt.s32.f32 %v1080
        %v1561 = vcvt.s32.f32 %v1081
        %v1562 = vcvt.s32.f32 %v1082
        %v1563 = vcvt.s32.f32 %v1083
        %v1564 = vcvt.s32.f32 %v1084
        %v1565 = vcvt.s32.f32 %v1085
        %v1566 = vcvt.s32.f32 %v1086
        %v1567 = vcvt.s32.f32 %v1087
        %v1568 = vcvt.s32.f32 %v1088
        %v1569 = vcvt.s32.f32 %v1089
        %v1570 = vcvt.s32.f32 %v1090
        %v1571 = vcvt.s32.f32 %v1091
        %v1572 = vcvt.s32.f32 %v1092
        %v1573 = vcvt.s32.f32 %v1093
        %v1574 = vcvt.s32.f32 %v1094
        %v1575 = vcvt.s32.f32 %v1095
        %v1576 = vcvt.s32.f32 %v1096
        %v1577 = vcvt.s32.f32 %v1097
        %v1578 = vcvt.s32.f32 %v1098
        %v1579 = vcvt.s32.f32 %v1099
        %v1580 = vcvt.s32.f32 %v1100
        %v1581 = vcvt.s32.f32 %v1101
        %v1582 = vcvt.s32.f32 %v1102
        %v1583 = vcvt.s32.f32 %v1103
        %v1584 = vcvt.s32.f32 %v1104
        %v1585 = vcvt.s32.f32 %v1105
        %v1586 = vcvt.s32.f32 %v1106
        %v1587 = vcvt.s32.f32 %v1107
        %v1588 = vcvt.s32.f32 %v1108
        %v1589 = vcvt.s32.f32 %v1109
        %v1590 = vcvt.s32.f32 %v1110
        %v1591 = vcvt.s32.f32 %v1111
        %v1592 = vcvt.s32.f32 %v1112
        %v1593 = vcvt.s32.f32 %v1113
        %v1594 = vcvt.s32.f32 %v1114
        %v1595 = vcvt.s32.f32 %v1115
        %v1596 = vcvt.s32.f32 %v1116
        %v1597 = vcvt.s32.f32 %v1117
        %v1598 = vcvt.s32.f32 %v1118
        %v1599 = vcvt.s32.f32 %v1119
        %v1600 = vcvt.s32.f32 %v1120
        %v1601 = vcvt.s32.f32 %v1121
        %v1602 = vcvt.s32.f32 %v1122
        %v1603 = vcvt.s32.f32 %v1123
        %v1604 = vcvt.s32.f32 %v1124
        %v1605 = vcvt.s32.f32 %v1125
        %v1606 = vcvt.s32.f32 %v1126
        %v1607 = vcvt.s32.f32 %v1127
        %v1608 = vcvt.s32.f32 %v1128
        %v1609 = vcvt.s32.f32 %v1129
        %v1610 = vcvt.s32.f32 %v1130
        %v1611 = vcvt.s32.f32 %v1131
        %v1612 = vcvt.s32.f32 %v1132
        %v1613 = vcvt.s32.f32 %v1133
        %v1614 = vcvt.s32.f32 %v1134
        %v1615 = vcvt.s32.f32 %v1135
        %v1616 = vcvt.s32.f32 %v1136
        %v1617 = vcvt.s32.f32 %v1137
        %v1618 = vcvt.s32.f32 %v1138
        %v1619 = vcvt.s32.f32 %v1139
        %v1620 = vcvt.s32.f32 %v1140
        %v1621 = vcvt.s32.f32 %v1141
        %v1622 = vcvt.s32.f32 %v1142
        %v1623 = vcvt.s32.f32 %v1143
        %v1624 = vcvt.s32.f32 %v1144
        %v1625 = vcvt.s32.f32 %v1145
        %v1626 = vcvt.s32.f32 %v1146
        %v1627 = vcvt.s32.f32 %v1147
        %v1628 = vcvt.s32.f32 %v1148
        %v1629 = vcvt.s32.f32 %v1149
        %v1630 = vcvt.s32.f32 %v1150
        %v1631 = vcvt.s32.f32 %v1151
        %v1632 = vcvt.s32.f32 %v1152
        %v1633 = vcvt.s32.f32 %v1153
        %v1634 = vcvt.s32.f32 %v1154
        %v1635 = vcvt.s32.f32 %v1155
        %v1636 = vcvt.s32.f32 %v1156
        %v1637 = vcvt.s32.f32 %v1157
        %v1638 = vcvt.s32.f32 %v1158
        %v1639 = vcvt.s32.f32 %v1159
        %v1640 = vcvt.s32.f32 %v1160
        %v1641 = vcvt.s32.f32 %v1161
        %v1642 = vcvt.s32.f32 %v1162
        %v1643 = vcvt.s32.f32 %v1163
        %v1644 = vcvt.s32.f32 %v1164
        %v1645 = vcvt.s32.f32 %v1165
        %v1646 = vcvt.s32.f32 %v1166
        %v1647 = vcvt.s32.f32 %v1167
        %v1648 = vcvt.s32.f32 %v1168
        %v1649 = vcvt.s32.f32 %v1169
        %v1650 = vcvt.s32.f32 %v1170
        %v1651 = vcvt.s32.f32 %v1171
        %v1652 = vcvt.s32.f32 %v1172
        %v1653 = vcvt.s32.f32 %v1173
        %v1654 = vcvt.s32.f32 %v1174
        %v1655 = vcvt.s32.f32 %v1175
        %v1656 = vcvt.s32.f32 %v1176
        %v1657 = vcvt.s32.f32 %v1177
        %v1658 = vcvt.s32.f32 %v1178
        %v1659 = vcvt.s32.f32 %v1179
        %v1660 = vcvt.s32.f32 %v1180
        %v1661 = vcvt.s32.f32 %v1181
        %v1662 = vcvt.s32.f32 %v1182
        %v1663 = vcvt.s32.f32 %v1183
        %v1664 = vcvt.s32.f32 %v1184
        %v1665 = vcvt.s32.f32 %v1185
        %v1666 = vcvt.s32.f32 %v1186
        %v1667 = vcvt.s32.f32 %v1187
        %v1668 = vcvt.s32.f32 %v1188
        %v1669 = vcvt.s32.f32 %v1189
        %v1670 = vcvt.s32.f32 %v1190
        %v1671 = vcvt.s32.f32 %v1191
        %v1672 = vcvt.s32.f32 %v1192
        %v1673 = vcvt.s32.f32 %v1193
        %v1674 = vcvt.s32.f32 %v1194
        %v1675 = vcvt.s32.f32 %v1195
        %v1676 = vcvt.s32.f32 %v1196
        %v1677 = vcvt.s32.f32 %v1197
        %v1678 = vcvt.s32.f32 %v1198
        %v1679 = vcvt.s32.f32 %v1199
        %v1680 = vcvt.s32.f32 %v1200
        %v1681 = vcvt.s32.f32 %v1201
        %v1682 = vcvt.s32.f32 %v1202
        %v1683 = vcvt.s32.f32 %v1203
        %v1684 = vcvt.s32.f32 %v1204
        %v1685 = vcvt.s32.f32 %v1205
        %v1686 = vcvt.s32.f32 %v1206
        %v1687 = vcvt.s32.f32 %v1207
        %v1688 = vcvt.s32.f32 %v1208
        %v1689 = vcvt.s32.f32 %v1209
        %v1690 = vcvt.s32.f32 %v1210
        %v1691 = vcvt.s32.f32 %v1211
        %v1692 = vcvt.s32.f32 %v1212
        %v1693 = vcvt.s32.f32 %v1213
        %v1694 = vcvt.s32.f32 %v1214
        %v1695 = vcvt.s32.f32 %v1215
        %v1696 = vcvt.s32.f32 %v1216
        %v1697 = vcvt.s32.f32 %v1217
        %v1698 = vcvt.s32.f32 %v1218
        %v1699 = vcvt.s32.f32 %v1219
        %v1700 = vcvt.s32.f32 %v1220
        %v1701 = vcvt.s32.f32 %v1221
        %v1702 = vcvt.s32.f32 %v1222
        %v1703 = vcvt.s32.f32 %v1223
        %v1704 = vcvt.s32.f32 %v1224
        %v1705 = vcvt.s32.f32 %v1225
        %v1706 = vcvt.s32.f32 %v1226
        %v1707 = vcvt.s32.f32 %v1227
        %v1708 = vcvt.s32.f32 %v1228
        %v1709 = vcvt.s32.f32 %v1229
        %v1710 = vcvt.s32.f32 %v1230
        %v1711 = vcvt.s32.f32 %v1231
        %v1712 = vcvt.s32.f32 %v1232
        %v1713 = vcvt.s32.f32 %v1233
        %v1714 = vcvt.s32.f32 %v1234
        %v1715 = vcvt.s32.f32 %v1235
        %v1716 = vcvt.s32.f32 %v1236
        %v1717 = vcvt.s32.f32 %v1237
        %v1718 = vcvt.s32.f32 %v1238
        %v1719 = vcvt.s32.f32 %v1239
        %v1720 = vcvt.s32.f32 %v1240
        %v1721 = vcvt.s32.f32 %v1241
        %v1722 = vcvt.s32.f32 %v1242
        %v1723 = vcvt.s32.f32 %v1243
        %v1724 = vcvt.s32.f32 %v1244
        %v1725 = vcvt.s32.f32 %v1245
        %v1726 = vcvt.s32.f32 %v1246
        %v1727 = vcvt.s32.f32 %v1247
        %v1728 = vcvt.s32.f32 %v1248
        %v1729 = vcvt.s32.f32 %v1249
        %v1730 = vcvt.s32.f32 %v1250
        %v1731 = vcvt.s32.f32 %v1251
        %v1732 = vcvt.s32.f32 %v1252
        %v1733 = vcvt.s32.f32 %v1253
        %v1734 = vcvt.s32.f32 %v1254
        %v1735 = vcvt.s32.f32 %v1255
        %v1736 = vcvt.s32.f32 %v1256
        %v1737 = vcvt.s32.f32 %v1257
        %v1738 = vcvt.s32.f32 %v1258
        %v1739 = vcvt.s32.f32 %v1259
        %v1740 = vcvt.s32.f32 %v1260
        %v1741 = vcvt.s32.f32 %v1261
        %v1742 = vpack.c.bf16 %v1274, %v1262
        %v1743 = vpack.c.bf16 %v1275, %v1263
        %v1744 = vpack.c.bf16 %v1276, %v1264
        %v1745 = vpack.c.bf16 %v1277, %v1265
        %v1746 = vpack.c.bf16 %v1278, %v1266
        %v1747 = vpack.c.bf16 %v1279, %v1267
        %v1748 = vpack.c.bf16 %v1280, %v1268
        %v1749 = vpack.c.bf16 %v1281, %v1269
        %v1750 = vpack.c.bf16 %v1282, %v1270
        %v1751 = vpack.c.bf16 %v1283, %v1271
        %v1752 = vpack.c.bf16 %v1284, %v1272
        %v1753 = vpack.c.bf16 %v1285, %v1273
        %v1754 = vpack.c.bf16 %v1298, %v1286
        %v1755 = vpack.c.bf16 %v1299, %v1287
        %v1756 = vpack.c.bf16 %v1300, %v1288
        %v1757 = vpack.c.bf16 %v1301, %v1289
        %v1758 = vpack.c.bf16 %v1302, %v1290
        %v1759 = vpack.c.bf16 %v1303, %v1291
        %v1760 = vpack.c.bf16 %v1304, %v1292
        %v1761 = vpack.c.bf16 %v1305, %v1293
        %v1762 = vpack.c.bf16 %v1306, %v1294
        %v1763 = vpack.c.bf16 %v1307, %v1295
        %v1764 = vpack.c.bf16 %v1308, %v1296
        %v1765 = vpack.c.bf16 %v1309, %v1297
        %v1766 = vpack.c.bf16 %v1322, %v1310
        %v1767 = vpack.c.bf16 %v1323, %v1311
        %v1768 = vpack.c.bf16 %v1324, %v1312
        %v1769 = vpack.c.bf16 %v1325, %v1313
        %v1770 = vpack.c.bf16 %v1326, %v1314
        %v1771 = vpack.c.bf16 %v1327, %v1315
        %v1772 = vpack.c.bf16 %v1328, %v1316
        %v1773 = vpack.c.bf16 %v1329, %v1317
        %v1774 = vpack.c.bf16 %v1330, %v1318
        %v1775 = vpack.c.bf16 %v1331, %v1319
        %v1776 = vpack.c.bf16 %v1332, %v1320
        %v1777 = vpack.c.bf16 %v1333, %v1321
        %v1778 = vpack.c.bf16 %v1346, %v1334
        %v1779 = vpack.c.bf16 %v1347, %v1335
        %v1780 = vpack.c.bf16 %v1348, %v1336
        %v1781 = vpack.c.bf16 %v1349, %v1337
        %v1782 = vpack.c.bf16 %v1350, %v1338
        %v1783 = vpack.c.bf16 %v1351, %v1339
        %v1784 = vpack.c.bf16 %v1352, %v1340
        %v1785 = vpack.c.bf16 %v1353, %v1341
        %v1786 = vpack.c.bf16 %v1354, %v1342
        %v1787 = vpack.c.bf16 %v1355, %v1343
        %v1788 = vpack.c.bf16 %v1356, %v1344
        %v1789 = vpack.c.bf16 %v1357, %v1345
        %v1790 = vpack.c.bf16 %v1370, %v1358
        %v1791 = vpack.c.bf16 %v1371, %v1359
        %v1792 = vpack.c.bf16 %v1372, %v1360
        %v1793 = vpack.c.bf16 %v1373, %v1361
        %v1794 = vpack.c.bf16 %v1374, %v1362
        %v1795 = vpack.c.bf16 %v1375, %v1363
        %v1796 = vpack.c.bf16 %v1376, %v1364
        %v1797 = vpack.c.bf16 %v1377, %v1365
        %v1798 = vpack.c.bf16 %v1378, %v1366
        %v1799 = vpack.c.bf16 %v1379, %v1367
        %v1800 = vpack.c.bf16 %v1380, %v1368
        %v1801 = vpack.c.bf16 %v1381, %v1369
        %v1802 = vpack.c.bf16 %v1394, %v1382
        %v1803 = vpack.c.bf16 %v1395, %v1383
        %v1804 = vpack.c.bf16 %v1396, %v1384
        %v1805 = vpack.c.bf16 %v1397, %v1385
        %v1806 = vpack.c.bf16 %v1398, %v1386
        %v1807 = vpack.c.bf16 %v1399, %v1387
        %v1808 = vpack.c.bf16 %v1400, %v1388
        %v1809 = vpack.c.bf16 %v1401, %v1389
        %v1810 = vpack.c.bf16 %v1402, %v1390
        %v1811 = vpack.c.bf16 %v1403, %v1391
        %v1812 = vpack.c.bf16 %v1404, %v1392
        %v1813 = vpack.c.bf16 %v1405, %v1393
        %v1814 = vpack.c.bf16 %v1418, %v1406
        %v1815 = vpack.c.bf16 %v1419, %v1407
        %v1816 = vpack.c.bf16 %v1420, %v1408
        %v1817 = vpack.c.bf16 %v1421, %v1409
        %v1818 = vpack.c.bf16 %v1422, %v1410
        %v1819 = vpack.c.bf16 %v1423, %v1411
        %v1820 = vpack.c.bf16 %v1424, %v1412
        %v1821 = vpack.c.bf16 %v1425, %v1413
        %v1822 = vpack.c.bf16 %v1426, %v1414
        %v1823 = vpack.c.bf16 %v1427, %v1415
        %v1824 = vpack.c.bf16 %v1428, %v1416
        %v1825 = vpack.c.bf16 %v1429, %v1417
        %v1826 = vpack.c.bf16 %v1442, %v1430
        %v1827 = vpack.c.bf16 %v1443, %v1431
        %v1828 = vpack.c.bf16 %v1444, %v1432
        %v1829 = vpack.c.bf16 %v1445, %v1433
        %v1830 = vpack.c.bf16 %v1446, %v1434
        %v1831 = vpack.c.bf16 %v1447, %v1435
        %v1832 = vpack.c.bf16 %v1448, %v1436
        %v1833 = vpack.c.bf16 %v1449, %v1437
        %v1834 = vpack.c.bf16 %v1450, %v1438
        %v1835 = vpack.c.bf16 %v1451, %v1439
        %v1836 = vpack.c.bf16 %v1452, %v1440
        %v1837 = vpack.c.bf16 %v1453, %v1441
        %v1838 = vpack.c.bf16 %v1466, %v1454
        %v1839 = vpack.c.bf16 %v1467, %v1455
        %v1840 = vpack.c.bf16 %v1468, %v1456
        %v1841 = vpack.c.bf16 %v1469, %v1457
        %v1842 = vpack.c.bf16 %v1470, %v1458
        %v1843 = vpack.c.bf16 %v1471, %v1459
        %v1844 = vpack.c.bf16 %v1472, %v1460
        %v1845 = vpack.c.bf16 %v1473, %v1461
        %v1846 = vpack.c.bf16 %v1474, %v1462
        %v1847 = vpack.c.bf16 %v1475, %v1463
        %v1848 = vpack.c.bf16 %v1476, %v1464
        %v1849 = vpack.c.bf16 %v1477, %v1465
        %v1850 = vpack.c.bf16 %v1490, %v1478
        %v1851 = vpack.c.bf16 %v1491, %v1479
        %v1852 = vpack.c.bf16 %v1492, %v1480
        %v1853 = vpack.c.bf16 %v1493, %v1481
        %v1854 = vpack.c.bf16 %v1494, %v1482
        %v1855 = vpack.c.bf16 %v1495, %v1483
        %v1856 = vpack.c.bf16 %v1496, %v1484
        %v1857 = vpack.c.bf16 %v1497, %v1485
        %v1858 = vpack.c.bf16 %v1498, %v1486
        %v1859 = vpack.c.bf16 %v1499, %v1487
        %v1860 = vpack.c.bf16 %v1500, %v1488
        %v1861 = vpack.c.bf16 %v1501, %v1489
        %v1862 = vpack.c.bf16 %v1514, %v1502
        %v1863 = vpack.c.bf16 %v1515, %v1503
        %v1864 = vpack.c.bf16 %v1516, %v1504
        %v1865 = vpack.c.bf16 %v1517, %v1505
        %v1866 = vpack.c.bf16 %v1518, %v1506
        %v1867 = vpack.c.bf16 %v1519, %v1507
        %v1868 = vpack.c.bf16 %v1520, %v1508
        %v1869 = vpack.c.bf16 %v1521, %v1509
        %v1870 = vpack.c.bf16 %v1522, %v1510
        %v1871 = vpack.c.bf16 %v1523, %v1511
        %v1872 = vpack.c.bf16 %v1524, %v1512
        %v1873 = vpack.c.bf16 %v1525, %v1513
        %v1874 = vpack.c.bf16 %v1538, %v1526
        %v1875 = vpack.c.bf16 %v1539, %v1527
        %v1876 = vpack.c.bf16 %v1540, %v1528
        %v1877 = vpack.c.bf16 %v1541, %v1529
        %v1878 = vpack.c.bf16 %v1542, %v1530
        %v1879 = vpack.c.bf16 %v1543, %v1531
        %v1880 = vpack.c.bf16 %v1544, %v1532
        %v1881 = vpack.c.bf16 %v1545, %v1533
        %v1882 = vpack.c.bf16 %v1546, %v1534
        %v1883 = vpack.c.bf16 %v1547, %v1535
        %v1884 = vpack.c.bf16 %v1548, %v1536
        %v1885 = vpack.c.bf16 %v1549, %v1537
        %v1886 = vpack.c.bf16 %v1562, %v1550
        %v1887 = vpack.c.bf16 %v1563, %v1551
        %v1888 = vpack.c.bf16 %v1564, %v1552
        %v1889 = vpack.c.bf16 %v1565, %v1553
        %v1890 = vpack.c.bf16 %v1566, %v1554
        %v1891 = vpack.c.bf16 %v1567, %v1555
        %v1892 = vpack.c.bf16 %v1568, %v1556
        %v1893 = vpack.c.bf16 %v1569, %v1557
        %v1894 = vpack.c.bf16 %v1570, %v1558
        %v1895 = vpack.c.bf16 %v1571, %v1559
        %v1896 = vpack.c.bf16 %v1572, %v1560
        %v1897 = vpack.c.bf16 %v1573, %v1561
        %v1898 = vpack.c.bf16 %v1586, %v1574
        %v1899 = vpack.c.bf16 %v1587, %v1575
        %v1900 = vpack.c.bf16 %v1588, %v1576
        %v1901 = vpack.c.bf16 %v1589, %v1577
        %v1902 = vpack.c.bf16 %v1590, %v1578
        %v1903 = vpack.c.bf16 %v1591, %v1579
        %v1904 = vpack.c.bf16 %v1592, %v1580
        %v1905 = vpack.c.bf16 %v1593, %v1581
        %v1906 = vpack.c.bf16 %v1594, %v1582
        %v1907 = vpack.c.bf16 %v1595, %v1583
        %v1908 = vpack.c.bf16 %v1596, %v1584
        %v1909 = vpack.c.bf16 %v1597, %v1585
        %v1910 = vpack.c.bf16 %v1610, %v1598
        %v1911 = vpack.c.bf16 %v1611, %v1599
        %v1912 = vpack.c.bf16 %v1612, %v1600
        %v1913 = vpack.c.bf16 %v1613, %v1601
        %v1914 = vpack.c.bf16 %v1614, %v1602
        %v1915 = vpack.c.bf16 %v1615, %v1603
        %v1916 = vpack.c.bf16 %v1616, %v1604
        %v1917 = vpack.c.bf16 %v1617, %v1605
        %v1918 = vpack.c.bf16 %v1618, %v1606
        %v1919 = vpack.c.bf16 %v1619, %v1607
        %v1920 = vpack.c.bf16 %v1620, %v1608
        %v1921 = vpack.c.bf16 %v1621, %v1609
        %v1922 = vpack.c.bf16 %v1634, %v1622
        %v1923 = vpack.c.bf16 %v1635, %v1623
        %v1924 = vpack.c.bf16 %v1636, %v1624
        %v1925 = vpack.c.bf16 %v1637, %v1625
        %v1926 = vpack.c.bf16 %v1638, %v1626
        %v1927 = vpack.c.bf16 %v1639, %v1627
        %v1928 = vpack.c.bf16 %v1640, %v1628
        %v1929 = vpack.c.bf16 %v1641, %v1629
        %v1930 = vpack.c.bf16 %v1642, %v1630
        %v1931 = vpack.c.bf16 %v1643, %v1631
        %v1932 = vpack.c.bf16 %v1644, %v1632
        %v1933 = vpack.c.bf16 %v1645, %v1633
        %v1934 = vpack.c.bf16 %v1658, %v1646
        %v1935 = vpack.c.bf16 %v1659, %v1647
        %v1936 = vpack.c.bf16 %v1660, %v1648
        %v1937 = vpack.c.bf16 %v1661, %v1649
        %v1938 = vpack.c.bf16 %v1662, %v1650
        %v1939 = vpack.c.bf16 %v1663, %v1651
        %v1940 = vpack.c.bf16 %v1664, %v1652
        %v1941 = vpack.c.bf16 %v1665, %v1653
        %v1942 = vpack.c.bf16 %v1666, %v1654
        %v1943 = vpack.c.bf16 %v1667, %v1655
        %v1944 = vpack.c.bf16 %v1668, %v1656
        %v1945 = vpack.c.bf16 %v1669, %v1657
        %v1946 = vpack.c.bf16 %v1682, %v1670
        %v1947 = vpack.c.bf16 %v1683, %v1671
        %v1948 = vpack.c.bf16 %v1684, %v1672
        %v1949 = vpack.c.bf16 %v1685, %v1673
        %v1950 = vpack.c.bf16 %v1686, %v1674
        %v1951 = vpack.c.bf16 %v1687, %v1675
        %v1952 = vpack.c.bf16 %v1688, %v1676
        %v1953 = vpack.c.bf16 %v1689, %v1677
        %v1954 = vpack.c.bf16 %v1690, %v1678
        %v1955 = vpack.c.bf16 %v1691, %v1679
        %v1956 = vpack.c.bf16 %v1692, %v1680
        %v1957 = vpack.c.bf16 %v1693, %v1681
        %v1958 = vpack.c.bf16 %v1706, %v1694
        %v1959 = vpack.c.bf16 %v1707, %v1695
        %v1960 = vpack.c.bf16 %v1708, %v1696
        %v1961 = vpack.c.bf16 %v1709, %v1697
        %v1962 = vpack.c.bf16 %v1710, %v1698
        %v1963 = vpack.c.bf16 %v1711, %v1699
        %v1964 = vpack.c.bf16 %v1712, %v1700
        %v1965 = vpack.c.bf16 %v1713, %v1701
        %v1966 = vpack.c.bf16 %v1714, %v1702
        %v1967 = vpack.c.bf16 %v1715, %v1703
        %v1968 = vpack.c.bf16 %v1716, %v1704
        %v1969 = vpack.c.bf16 %v1717, %v1705
        %v1970 = vpack.c.bf16 %v1730, %v1718
        %v1971 = vpack.c.bf16 %v1731, %v1719
        %v1972 = vpack.c.bf16 %v1732, %v1720
        %v1973 = vpack.c.bf16 %v1733, %v1721
        %v1974 = vpack.c.bf16 %v1734, %v1722
        %v1975 = vpack.c.bf16 %v1735, %v1723
        %v1976 = vpack.c.bf16 %v1736, %v1724
        %v1977 = vpack.c.bf16 %v1737, %v1725
        %v1978 = vpack.c.bf16 %v1738, %v1726
        %v1979 = vpack.c.bf16 %v1739, %v1727
        %v1980 = vpack.c.bf16 %v1740, %v1728
        %v1981 = vpack.c.bf16 %v1741, %v1729
        %v1982 = vperm.slane %v237, 1
        %v1983 = vperm.slane %v238, 1
        %v1984 = vperm.slane %v239, 1
        %v1985 = vperm.slane %v240, 1
        %v1986 = vperm.slane %v241, 1
        %v1987 = vperm.slane %v242, 1
        %v1988 = vperm.slane %v243, 1
        %v1989 = vperm.slane %v244, 1
        %v1990 = vperm.slane %v245, 1
        %v1991 = vperm.slane %v246, 1
        %v1992 = vperm.slane %v247, 1
        %v1993 = vperm.slane %v248, 1
        %vm1994 = vcmp.eq.s32.totalorder %v250, %v1982
        %vm1995 = vcmp.eq.s32.totalorder %v250, %v1983
        %vm1996 = vcmp.eq.s32.totalorder %v250, %v1984
        %vm1997 = vcmp.eq.s32.totalorder %v250, %v1985
        %vm1998 = vcmp.eq.s32.totalorder %v250, %v1986
        %vm1999 = vcmp.eq.s32.totalorder %v250, %v1987
        %vm2000 = vcmp.eq.s32.totalorder %v250, %v1988
        %vm2001 = vcmp.eq.s32.totalorder %v250, %v1989
        %vm2002 = vcmp.eq.s32.totalorder %v250, %v1990
        %vm2003 = vcmp.eq.s32.totalorder %v250, %v1991
        %vm2004 = vcmp.eq.s32.totalorder %v250, %v1992
        %vm2005 = vcmp.eq.s32.totalorder %v250, %v1993
        %vm2006 = vcmp.eq.s32.totalorder %v251, %v1982
        %vm2007 = vcmp.eq.s32.totalorder %v251, %v1983
        %vm2008 = vcmp.eq.s32.totalorder %v251, %v1984
        %vm2009 = vcmp.eq.s32.totalorder %v251, %v1985
        %vm2010 = vcmp.eq.s32.totalorder %v251, %v1986
        %vm2011 = vcmp.eq.s32.totalorder %v251, %v1987
        %vm2012 = vcmp.eq.s32.totalorder %v251, %v1988
        %vm2013 = vcmp.eq.s32.totalorder %v251, %v1989
        %vm2014 = vcmp.eq.s32.totalorder %v251, %v1990
        %vm2015 = vcmp.eq.s32.totalorder %v251, %v1991
        %vm2016 = vcmp.eq.s32.totalorder %v251, %v1992
        %vm2017 = vcmp.eq.s32.totalorder %v251, %v1993
        %vm2018 = vcmp.eq.s32.totalorder %v252, %v1982
        %vm2019 = vcmp.eq.s32.totalorder %v252, %v1983
        %vm2020 = vcmp.eq.s32.totalorder %v252, %v1984
        %vm2021 = vcmp.eq.s32.totalorder %v252, %v1985
        %vm2022 = vcmp.eq.s32.totalorder %v252, %v1986
        %vm2023 = vcmp.eq.s32.totalorder %v252, %v1987
        %vm2024 = vcmp.eq.s32.totalorder %v252, %v1988
        %vm2025 = vcmp.eq.s32.totalorder %v252, %v1989
        %vm2026 = vcmp.eq.s32.totalorder %v252, %v1990
        %vm2027 = vcmp.eq.s32.totalorder %v252, %v1991
        %vm2028 = vcmp.eq.s32.totalorder %v252, %v1992
        %vm2029 = vcmp.eq.s32.totalorder %v252, %v1993
        %vm2030 = vcmp.eq.s32.totalorder %v253, %v1982
        %vm2031 = vcmp.eq.s32.totalorder %v253, %v1983
        %vm2032 = vcmp.eq.s32.totalorder %v253, %v1984
        %vm2033 = vcmp.eq.s32.totalorder %v253, %v1985
        %vm2034 = vcmp.eq.s32.totalorder %v253, %v1986
        %vm2035 = vcmp.eq.s32.totalorder %v253, %v1987
        %vm2036 = vcmp.eq.s32.totalorder %v253, %v1988
        %vm2037 = vcmp.eq.s32.totalorder %v253, %v1989
        %vm2038 = vcmp.eq.s32.totalorder %v253, %v1990
        %vm2039 = vcmp.eq.s32.totalorder %v253, %v1991
        %vm2040 = vcmp.eq.s32.totalorder %v253, %v1992
        %vm2041 = vcmp.eq.s32.totalorder %v253, %v1993
        %vm2042 = vcmp.eq.s32.totalorder %v254, %v1982
        %vm2043 = vcmp.eq.s32.totalorder %v254, %v1983
        %vm2044 = vcmp.eq.s32.totalorder %v254, %v1984
        %vm2045 = vcmp.eq.s32.totalorder %v254, %v1985
        %vm2046 = vcmp.eq.s32.totalorder %v254, %v1986
        %vm2047 = vcmp.eq.s32.totalorder %v254, %v1987
        %vm2048 = vcmp.eq.s32.totalorder %v254, %v1988
        %vm2049 = vcmp.eq.s32.totalorder %v254, %v1989
        %vm2050 = vcmp.eq.s32.totalorder %v254, %v1990
        %vm2051 = vcmp.eq.s32.totalorder %v254, %v1991
        %vm2052 = vcmp.eq.s32.totalorder %v254, %v1992
        %vm2053 = vcmp.eq.s32.totalorder %v254, %v1993
        %vm2054 = vcmp.eq.s32.totalorder %v255, %v1982
        %vm2055 = vcmp.eq.s32.totalorder %v255, %v1983
        %vm2056 = vcmp.eq.s32.totalorder %v255, %v1984
        %vm2057 = vcmp.eq.s32.totalorder %v255, %v1985
        %vm2058 = vcmp.eq.s32.totalorder %v255, %v1986
        %vm2059 = vcmp.eq.s32.totalorder %v255, %v1987
        %vm2060 = vcmp.eq.s32.totalorder %v255, %v1988
        %vm2061 = vcmp.eq.s32.totalorder %v255, %v1989
        %vm2062 = vcmp.eq.s32.totalorder %v255, %v1990
        %vm2063 = vcmp.eq.s32.totalorder %v255, %v1991
        %vm2064 = vcmp.eq.s32.totalorder %v255, %v1992
        %vm2065 = vcmp.eq.s32.totalorder %v255, %v1993
        %vm2066 = vcmp.eq.s32.totalorder %v256, %v1982
        %vm2067 = vcmp.eq.s32.totalorder %v256, %v1983
        %vm2068 = vcmp.eq.s32.totalorder %v256, %v1984
        %vm2069 = vcmp.eq.s32.totalorder %v256, %v1985
        %vm2070 = vcmp.eq.s32.totalorder %v256, %v1986
        %vm2071 = vcmp.eq.s32.totalorder %v256, %v1987
        %vm2072 = vcmp.eq.s32.totalorder %v256, %v1988
        %vm2073 = vcmp.eq.s32.totalorder %v256, %v1989
        %vm2074 = vcmp.eq.s32.totalorder %v256, %v1990
        %vm2075 = vcmp.eq.s32.totalorder %v256, %v1991
        %vm2076 = vcmp.eq.s32.totalorder %v256, %v1992
        %vm2077 = vcmp.eq.s32.totalorder %v256, %v1993
        %vm2078 = vcmp.eq.s32.totalorder %v257, %v1982
        %vm2079 = vcmp.eq.s32.totalorder %v257, %v1983
        %vm2080 = vcmp.eq.s32.totalorder %v257, %v1984
        %vm2081 = vcmp.eq.s32.totalorder %v257, %v1985
        %vm2082 = vcmp.eq.s32.totalorder %v257, %v1986
        %vm2083 = vcmp.eq.s32.totalorder %v257, %v1987
        %vm2084 = vcmp.eq.s32.totalorder %v257, %v1988
        %vm2085 = vcmp.eq.s32.totalorder %v257, %v1989
        %vm2086 = vcmp.eq.s32.totalorder %v257, %v1990
        %vm2087 = vcmp.eq.s32.totalorder %v257, %v1991
        %vm2088 = vcmp.eq.s32.totalorder %v257, %v1992
        %vm2089 = vcmp.eq.s32.totalorder %v257, %v1993
        %vm2090 = vcmp.eq.s32.totalorder %v258, %v1982
        %vm2091 = vcmp.eq.s32.totalorder %v258, %v1983
        %vm2092 = vcmp.eq.s32.totalorder %v258, %v1984
        %vm2093 = vcmp.eq.s32.totalorder %v258, %v1985
        %vm2094 = vcmp.eq.s32.totalorder %v258, %v1986
        %vm2095 = vcmp.eq.s32.totalorder %v258, %v1987
        %vm2096 = vcmp.eq.s32.totalorder %v258, %v1988
        %vm2097 = vcmp.eq.s32.totalorder %v258, %v1989
        %vm2098 = vcmp.eq.s32.totalorder %v258, %v1990
        %vm2099 = vcmp.eq.s32.totalorder %v258, %v1991
        %vm2100 = vcmp.eq.s32.totalorder %v258, %v1992
        %vm2101 = vcmp.eq.s32.totalorder %v258, %v1993
        %vm2102 = vcmp.eq.s32.totalorder %v259, %v1982
        %vm2103 = vcmp.eq.s32.totalorder %v259, %v1983
        %vm2104 = vcmp.eq.s32.totalorder %v259, %v1984
        %vm2105 = vcmp.eq.s32.totalorder %v259, %v1985
        %vm2106 = vcmp.eq.s32.totalorder %v259, %v1986
        %vm2107 = vcmp.eq.s32.totalorder %v259, %v1987
        %vm2108 = vcmp.eq.s32.totalorder %v259, %v1988
        %vm2109 = vcmp.eq.s32.totalorder %v259, %v1989
        %vm2110 = vcmp.eq.s32.totalorder %v259, %v1990
        %vm2111 = vcmp.eq.s32.totalorder %v259, %v1991
        %vm2112 = vcmp.eq.s32.totalorder %v259, %v1992
        %vm2113 = vcmp.eq.s32.totalorder %v259, %v1993
        %vm2114 = vcmp.eq.s32.totalorder %v260, %v1982
        %vm2115 = vcmp.eq.s32.totalorder %v260, %v1983
        %vm2116 = vcmp.eq.s32.totalorder %v260, %v1984
        %vm2117 = vcmp.eq.s32.totalorder %v260, %v1985
        %vm2118 = vcmp.eq.s32.totalorder %v260, %v1986
        %vm2119 = vcmp.eq.s32.totalorder %v260, %v1987
        %vm2120 = vcmp.eq.s32.totalorder %v260, %v1988
        %vm2121 = vcmp.eq.s32.totalorder %v260, %v1989
        %vm2122 = vcmp.eq.s32.totalorder %v260, %v1990
        %vm2123 = vcmp.eq.s32.totalorder %v260, %v1991
        %vm2124 = vcmp.eq.s32.totalorder %v260, %v1992
        %vm2125 = vcmp.eq.s32.totalorder %v260, %v1993
        %vm2126 = vcmp.eq.s32.totalorder %v261, %v1982
        %vm2127 = vcmp.eq.s32.totalorder %v261, %v1983
        %vm2128 = vcmp.eq.s32.totalorder %v261, %v1984
        %vm2129 = vcmp.eq.s32.totalorder %v261, %v1985
        %vm2130 = vcmp.eq.s32.totalorder %v261, %v1986
        %vm2131 = vcmp.eq.s32.totalorder %v261, %v1987
        %vm2132 = vcmp.eq.s32.totalorder %v261, %v1988
        %vm2133 = vcmp.eq.s32.totalorder %v261, %v1989
        %vm2134 = vcmp.eq.s32.totalorder %v261, %v1990
        %vm2135 = vcmp.eq.s32.totalorder %v261, %v1991
        %vm2136 = vcmp.eq.s32.totalorder %v261, %v1992
        %vm2137 = vcmp.eq.s32.totalorder %v261, %v1993
        %vm2138 = vcmp.eq.s32.totalorder %v262, %v1982
        %vm2139 = vcmp.eq.s32.totalorder %v262, %v1983
        %vm2140 = vcmp.eq.s32.totalorder %v262, %v1984
        %vm2141 = vcmp.eq.s32.totalorder %v262, %v1985
        %vm2142 = vcmp.eq.s32.totalorder %v262, %v1986
        %vm2143 = vcmp.eq.s32.totalorder %v262, %v1987
        %vm2144 = vcmp.eq.s32.totalorder %v262, %v1988
        %vm2145 = vcmp.eq.s32.totalorder %v262, %v1989
        %vm2146 = vcmp.eq.s32.totalorder %v262, %v1990
        %vm2147 = vcmp.eq.s32.totalorder %v262, %v1991
        %vm2148 = vcmp.eq.s32.totalorder %v262, %v1992
        %vm2149 = vcmp.eq.s32.totalorder %v262, %v1993
        %vm2150 = vcmp.eq.s32.totalorder %v263, %v1982
        %vm2151 = vcmp.eq.s32.totalorder %v263, %v1983
        %vm2152 = vcmp.eq.s32.totalorder %v263, %v1984
        %vm2153 = vcmp.eq.s32.totalorder %v263, %v1985
        %vm2154 = vcmp.eq.s32.totalorder %v263, %v1986
        %vm2155 = vcmp.eq.s32.totalorder %v263, %v1987
        %vm2156 = vcmp.eq.s32.totalorder %v263, %v1988
        %vm2157 = vcmp.eq.s32.totalorder %v263, %v1989
        %vm2158 = vcmp.eq.s32.totalorder %v263, %v1990
        %vm2159 = vcmp.eq.s32.totalorder %v263, %v1991
        %vm2160 = vcmp.eq.s32.totalorder %v263, %v1992
        %vm2161 = vcmp.eq.s32.totalorder %v263, %v1993
        %vm2162 = vcmp.eq.s32.totalorder %v264, %v1982
        %vm2163 = vcmp.eq.s32.totalorder %v264, %v1983
        %vm2164 = vcmp.eq.s32.totalorder %v264, %v1984
        %vm2165 = vcmp.eq.s32.totalorder %v264, %v1985
        %vm2166 = vcmp.eq.s32.totalorder %v264, %v1986
        %vm2167 = vcmp.eq.s32.totalorder %v264, %v1987
        %vm2168 = vcmp.eq.s32.totalorder %v264, %v1988
        %vm2169 = vcmp.eq.s32.totalorder %v264, %v1989
        %vm2170 = vcmp.eq.s32.totalorder %v264, %v1990
        %vm2171 = vcmp.eq.s32.totalorder %v264, %v1991
        %vm2172 = vcmp.eq.s32.totalorder %v264, %v1992
        %vm2173 = vcmp.eq.s32.totalorder %v264, %v1993
        %vm2174 = vcmp.eq.s32.totalorder %v265, %v1982
        %vm2175 = vcmp.eq.s32.totalorder %v265, %v1983
        %vm2176 = vcmp.eq.s32.totalorder %v265, %v1984
        %vm2177 = vcmp.eq.s32.totalorder %v265, %v1985
        %vm2178 = vcmp.eq.s32.totalorder %v265, %v1986
        %vm2179 = vcmp.eq.s32.totalorder %v265, %v1987
        %vm2180 = vcmp.eq.s32.totalorder %v265, %v1988
        %vm2181 = vcmp.eq.s32.totalorder %v265, %v1989
        %vm2182 = vcmp.eq.s32.totalorder %v265, %v1990
        %vm2183 = vcmp.eq.s32.totalorder %v265, %v1991
        %vm2184 = vcmp.eq.s32.totalorder %v265, %v1992
        %vm2185 = vcmp.eq.s32.totalorder %v265, %v1993
        %vm2186 = vcmp.eq.s32.totalorder %v266, %v1982
        %vm2187 = vcmp.eq.s32.totalorder %v266, %v1983
        %vm2188 = vcmp.eq.s32.totalorder %v266, %v1984
        %vm2189 = vcmp.eq.s32.totalorder %v266, %v1985
        %vm2190 = vcmp.eq.s32.totalorder %v266, %v1986
        %vm2191 = vcmp.eq.s32.totalorder %v266, %v1987
        %vm2192 = vcmp.eq.s32.totalorder %v266, %v1988
        %vm2193 = vcmp.eq.s32.totalorder %v266, %v1989
        %vm2194 = vcmp.eq.s32.totalorder %v266, %v1990
        %vm2195 = vcmp.eq.s32.totalorder %v266, %v1991
        %vm2196 = vcmp.eq.s32.totalorder %v266, %v1992
        %vm2197 = vcmp.eq.s32.totalorder %v266, %v1993
        %vm2198 = vcmp.eq.s32.totalorder %v267, %v1982
        %vm2199 = vcmp.eq.s32.totalorder %v267, %v1983
        %vm2200 = vcmp.eq.s32.totalorder %v267, %v1984
        %vm2201 = vcmp.eq.s32.totalorder %v267, %v1985
        %vm2202 = vcmp.eq.s32.totalorder %v267, %v1986
        %vm2203 = vcmp.eq.s32.totalorder %v267, %v1987
        %vm2204 = vcmp.eq.s32.totalorder %v267, %v1988
        %vm2205 = vcmp.eq.s32.totalorder %v267, %v1989
        %vm2206 = vcmp.eq.s32.totalorder %v267, %v1990
        %vm2207 = vcmp.eq.s32.totalorder %v267, %v1991
        %vm2208 = vcmp.eq.s32.totalorder %v267, %v1992
        %vm2209 = vcmp.eq.s32.totalorder %v267, %v1993
        %vm2210 = vcmp.eq.s32.totalorder %v268, %v1982
        %vm2211 = vcmp.eq.s32.totalorder %v268, %v1983
        %vm2212 = vcmp.eq.s32.totalorder %v268, %v1984
        %vm2213 = vcmp.eq.s32.totalorder %v268, %v1985
        %vm2214 = vcmp.eq.s32.totalorder %v268, %v1986
        %vm2215 = vcmp.eq.s32.totalorder %v268, %v1987
        %vm2216 = vcmp.eq.s32.totalorder %v268, %v1988
        %vm2217 = vcmp.eq.s32.totalorder %v268, %v1989
        %vm2218 = vcmp.eq.s32.totalorder %v268, %v1990
        %vm2219 = vcmp.eq.s32.totalorder %v268, %v1991
        %vm2220 = vcmp.eq.s32.totalorder %v268, %v1992
        %vm2221 = vcmp.eq.s32.totalorder %v268, %v1993
        %vm2222 = vcmp.eq.s32.totalorder %v269, %v1982
        %vm2223 = vcmp.eq.s32.totalorder %v269, %v1983
        %vm2224 = vcmp.eq.s32.totalorder %v269, %v1984
        %vm2225 = vcmp.eq.s32.totalorder %v269, %v1985
        %vm2226 = vcmp.eq.s32.totalorder %v269, %v1986
        %vm2227 = vcmp.eq.s32.totalorder %v269, %v1987
        %vm2228 = vcmp.eq.s32.totalorder %v269, %v1988
        %vm2229 = vcmp.eq.s32.totalorder %v269, %v1989
        %vm2230 = vcmp.eq.s32.totalorder %v269, %v1990
        %vm2231 = vcmp.eq.s32.totalorder %v269, %v1991
        %vm2232 = vcmp.eq.s32.totalorder %v269, %v1992
        %vm2233 = vcmp.eq.s32.totalorder %v269, %v1993
        %vm2234 = vcmp.eq.s32.totalorder %v270, %v1982
        %vm2235 = vcmp.eq.s32.totalorder %v270, %v1983
        %vm2236 = vcmp.eq.s32.totalorder %v270, %v1984
        %vm2237 = vcmp.eq.s32.totalorder %v270, %v1985
        %vm2238 = vcmp.eq.s32.totalorder %v270, %v1986
        %vm2239 = vcmp.eq.s32.totalorder %v270, %v1987
        %vm2240 = vcmp.eq.s32.totalorder %v270, %v1988
        %vm2241 = vcmp.eq.s32.totalorder %v270, %v1989
        %vm2242 = vcmp.eq.s32.totalorder %v270, %v1990
        %vm2243 = vcmp.eq.s32.totalorder %v270, %v1991
        %vm2244 = vcmp.eq.s32.totalorder %v270, %v1992
        %vm2245 = vcmp.eq.s32.totalorder %v270, %v1993
        %vm2246 = vcmp.eq.s32.totalorder %v271, %v1982
        %vm2247 = vcmp.eq.s32.totalorder %v271, %v1983
        %vm2248 = vcmp.eq.s32.totalorder %v271, %v1984
        %vm2249 = vcmp.eq.s32.totalorder %v271, %v1985
        %vm2250 = vcmp.eq.s32.totalorder %v271, %v1986
        %vm2251 = vcmp.eq.s32.totalorder %v271, %v1987
        %vm2252 = vcmp.eq.s32.totalorder %v271, %v1988
        %vm2253 = vcmp.eq.s32.totalorder %v271, %v1989
        %vm2254 = vcmp.eq.s32.totalorder %v271, %v1990
        %vm2255 = vcmp.eq.s32.totalorder %v271, %v1991
        %vm2256 = vcmp.eq.s32.totalorder %v271, %v1992
        %vm2257 = vcmp.eq.s32.totalorder %v271, %v1993
        %vm2258 = vcmp.eq.s32.totalorder %v272, %v1982
        %vm2259 = vcmp.eq.s32.totalorder %v272, %v1983
        %vm2260 = vcmp.eq.s32.totalorder %v272, %v1984
        %vm2261 = vcmp.eq.s32.totalorder %v272, %v1985
        %vm2262 = vcmp.eq.s32.totalorder %v272, %v1986
        %vm2263 = vcmp.eq.s32.totalorder %v272, %v1987
        %vm2264 = vcmp.eq.s32.totalorder %v272, %v1988
        %vm2265 = vcmp.eq.s32.totalorder %v272, %v1989
        %vm2266 = vcmp.eq.s32.totalorder %v272, %v1990
        %vm2267 = vcmp.eq.s32.totalorder %v272, %v1991
        %vm2268 = vcmp.eq.s32.totalorder %v272, %v1992
        %vm2269 = vcmp.eq.s32.totalorder %v272, %v1993
        %vm2270 = vcmp.eq.s32.totalorder %v273, %v1982
        %vm2271 = vcmp.eq.s32.totalorder %v273, %v1983
        %vm2272 = vcmp.eq.s32.totalorder %v273, %v1984
        %vm2273 = vcmp.eq.s32.totalorder %v273, %v1985
        %vm2274 = vcmp.eq.s32.totalorder %v273, %v1986
        %vm2275 = vcmp.eq.s32.totalorder %v273, %v1987
        %vm2276 = vcmp.eq.s32.totalorder %v273, %v1988
        %vm2277 = vcmp.eq.s32.totalorder %v273, %v1989
        %vm2278 = vcmp.eq.s32.totalorder %v273, %v1990
        %vm2279 = vcmp.eq.s32.totalorder %v273, %v1991
        %vm2280 = vcmp.eq.s32.totalorder %v273, %v1992
        %vm2281 = vcmp.eq.s32.totalorder %v273, %v1993
        %vm2282 = vcmp.eq.s32.totalorder %v274, %v1982
        %vm2283 = vcmp.eq.s32.totalorder %v274, %v1983
        %vm2284 = vcmp.eq.s32.totalorder %v274, %v1984
        %vm2285 = vcmp.eq.s32.totalorder %v274, %v1985
        %vm2286 = vcmp.eq.s32.totalorder %v274, %v1986
        %vm2287 = vcmp.eq.s32.totalorder %v274, %v1987
        %vm2288 = vcmp.eq.s32.totalorder %v274, %v1988
        %vm2289 = vcmp.eq.s32.totalorder %v274, %v1989
        %vm2290 = vcmp.eq.s32.totalorder %v274, %v1990
        %vm2291 = vcmp.eq.s32.totalorder %v274, %v1991
        %vm2292 = vcmp.eq.s32.totalorder %v274, %v1992
        %vm2293 = vcmp.eq.s32.totalorder %v274, %v1993
        %vm2294 = vcmp.eq.s32.totalorder %v275, %v1982
        %vm2295 = vcmp.eq.s32.totalorder %v275, %v1983
        %vm2296 = vcmp.eq.s32.totalorder %v275, %v1984
        %vm2297 = vcmp.eq.s32.totalorder %v275, %v1985
        %vm2298 = vcmp.eq.s32.totalorder %v275, %v1986
        %vm2299 = vcmp.eq.s32.totalorder %v275, %v1987
        %vm2300 = vcmp.eq.s32.totalorder %v275, %v1988
        %vm2301 = vcmp.eq.s32.totalorder %v275, %v1989
        %vm2302 = vcmp.eq.s32.totalorder %v275, %v1990
        %vm2303 = vcmp.eq.s32.totalorder %v275, %v1991
        %vm2304 = vcmp.eq.s32.totalorder %v275, %v1992
        %vm2305 = vcmp.eq.s32.totalorder %v275, %v1993
        %vm2306 = vcmp.eq.s32.totalorder %v276, %v1982
        %vm2307 = vcmp.eq.s32.totalorder %v276, %v1983
        %vm2308 = vcmp.eq.s32.totalorder %v276, %v1984
        %vm2309 = vcmp.eq.s32.totalorder %v276, %v1985
        %vm2310 = vcmp.eq.s32.totalorder %v276, %v1986
        %vm2311 = vcmp.eq.s32.totalorder %v276, %v1987
        %vm2312 = vcmp.eq.s32.totalorder %v276, %v1988
        %vm2313 = vcmp.eq.s32.totalorder %v276, %v1989
        %vm2314 = vcmp.eq.s32.totalorder %v276, %v1990
        %vm2315 = vcmp.eq.s32.totalorder %v276, %v1991
        %vm2316 = vcmp.eq.s32.totalorder %v276, %v1992
        %vm2317 = vcmp.eq.s32.totalorder %v276, %v1993
        %vm2318 = vcmp.eq.s32.totalorder %v277, %v1982
        %vm2319 = vcmp.eq.s32.totalorder %v277, %v1983
        %vm2320 = vcmp.eq.s32.totalorder %v277, %v1984
        %vm2321 = vcmp.eq.s32.totalorder %v277, %v1985
        %vm2322 = vcmp.eq.s32.totalorder %v277, %v1986
        %vm2323 = vcmp.eq.s32.totalorder %v277, %v1987
        %vm2324 = vcmp.eq.s32.totalorder %v277, %v1988
        %vm2325 = vcmp.eq.s32.totalorder %v277, %v1989
        %vm2326 = vcmp.eq.s32.totalorder %v277, %v1990
        %vm2327 = vcmp.eq.s32.totalorder %v277, %v1991
        %vm2328 = vcmp.eq.s32.totalorder %v277, %v1992
        %vm2329 = vcmp.eq.s32.totalorder %v277, %v1993
        %vm2330 = vcmp.eq.s32.totalorder %v278, %v1982
        %vm2331 = vcmp.eq.s32.totalorder %v278, %v1983
        %vm2332 = vcmp.eq.s32.totalorder %v278, %v1984
        %vm2333 = vcmp.eq.s32.totalorder %v278, %v1985
        %vm2334 = vcmp.eq.s32.totalorder %v278, %v1986
        %vm2335 = vcmp.eq.s32.totalorder %v278, %v1987
        %vm2336 = vcmp.eq.s32.totalorder %v278, %v1988
        %vm2337 = vcmp.eq.s32.totalorder %v278, %v1989
        %vm2338 = vcmp.eq.s32.totalorder %v278, %v1990
        %vm2339 = vcmp.eq.s32.totalorder %v278, %v1991
        %vm2340 = vcmp.eq.s32.totalorder %v278, %v1992
        %vm2341 = vcmp.eq.s32.totalorder %v278, %v1993
        %vm2342 = vcmp.eq.s32.totalorder %v279, %v1982
        %vm2343 = vcmp.eq.s32.totalorder %v279, %v1983
        %vm2344 = vcmp.eq.s32.totalorder %v279, %v1984
        %vm2345 = vcmp.eq.s32.totalorder %v279, %v1985
        %vm2346 = vcmp.eq.s32.totalorder %v279, %v1986
        %vm2347 = vcmp.eq.s32.totalorder %v279, %v1987
        %vm2348 = vcmp.eq.s32.totalorder %v279, %v1988
        %vm2349 = vcmp.eq.s32.totalorder %v279, %v1989
        %vm2350 = vcmp.eq.s32.totalorder %v279, %v1990
        %vm2351 = vcmp.eq.s32.totalorder %v279, %v1991
        %vm2352 = vcmp.eq.s32.totalorder %v279, %v1992
        %vm2353 = vcmp.eq.s32.totalorder %v279, %v1993
        %vm2354 = vcmp.eq.s32.totalorder %v280, %v1982
        %vm2355 = vcmp.eq.s32.totalorder %v280, %v1983
        %vm2356 = vcmp.eq.s32.totalorder %v280, %v1984
        %vm2357 = vcmp.eq.s32.totalorder %v280, %v1985
        %vm2358 = vcmp.eq.s32.totalorder %v280, %v1986
        %vm2359 = vcmp.eq.s32.totalorder %v280, %v1987
        %vm2360 = vcmp.eq.s32.totalorder %v280, %v1988
        %vm2361 = vcmp.eq.s32.totalorder %v280, %v1989
        %vm2362 = vcmp.eq.s32.totalorder %v280, %v1990
        %vm2363 = vcmp.eq.s32.totalorder %v280, %v1991
        %vm2364 = vcmp.eq.s32.totalorder %v280, %v1992
        %vm2365 = vcmp.eq.s32.totalorder %v280, %v1993
        %vm2366 = vcmp.eq.s32.totalorder %v281, %v1982
        %vm2367 = vcmp.eq.s32.totalorder %v281, %v1983
        %vm2368 = vcmp.eq.s32.totalorder %v281, %v1984
        %vm2369 = vcmp.eq.s32.totalorder %v281, %v1985
        %vm2370 = vcmp.eq.s32.totalorder %v281, %v1986
        %vm2371 = vcmp.eq.s32.totalorder %v281, %v1987
        %vm2372 = vcmp.eq.s32.totalorder %v281, %v1988
        %vm2373 = vcmp.eq.s32.totalorder %v281, %v1989
        %vm2374 = vcmp.eq.s32.totalorder %v281, %v1990
        %vm2375 = vcmp.eq.s32.totalorder %v281, %v1991
        %vm2376 = vcmp.eq.s32.totalorder %v281, %v1992
        %vm2377 = vcmp.eq.s32.totalorder %v281, %v1993
        %vm2378 = vcmp.eq.s32.totalorder %v282, %v1982
        %vm2379 = vcmp.eq.s32.totalorder %v282, %v1983
        %vm2380 = vcmp.eq.s32.totalorder %v282, %v1984
        %vm2381 = vcmp.eq.s32.totalorder %v282, %v1985
        %vm2382 = vcmp.eq.s32.totalorder %v282, %v1986
        %vm2383 = vcmp.eq.s32.totalorder %v282, %v1987
        %vm2384 = vcmp.eq.s32.totalorder %v282, %v1988
        %vm2385 = vcmp.eq.s32.totalorder %v282, %v1989
        %vm2386 = vcmp.eq.s32.totalorder %v282, %v1990
        %vm2387 = vcmp.eq.s32.totalorder %v282, %v1991
        %vm2388 = vcmp.eq.s32.totalorder %v282, %v1992
        %vm2389 = vcmp.eq.s32.totalorder %v282, %v1993
        %vm2390 = vcmp.eq.s32.totalorder %v283, %v1982
        %vm2391 = vcmp.eq.s32.totalorder %v283, %v1983
        %vm2392 = vcmp.eq.s32.totalorder %v283, %v1984
        %vm2393 = vcmp.eq.s32.totalorder %v283, %v1985
        %vm2394 = vcmp.eq.s32.totalorder %v283, %v1986
        %vm2395 = vcmp.eq.s32.totalorder %v283, %v1987
        %vm2396 = vcmp.eq.s32.totalorder %v283, %v1988
        %vm2397 = vcmp.eq.s32.totalorder %v283, %v1989
        %vm2398 = vcmp.eq.s32.totalorder %v283, %v1990
        %vm2399 = vcmp.eq.s32.totalorder %v283, %v1991
        %vm2400 = vcmp.eq.s32.totalorder %v283, %v1992
        %vm2401 = vcmp.eq.s32.totalorder %v283, %v1993
        %vm2402 = vcmp.eq.s32.totalorder %v284, %v1982
        %vm2403 = vcmp.eq.s32.totalorder %v284, %v1983
        %vm2404 = vcmp.eq.s32.totalorder %v284, %v1984
        %vm2405 = vcmp.eq.s32.totalorder %v284, %v1985
        %vm2406 = vcmp.eq.s32.totalorder %v284, %v1986
        %vm2407 = vcmp.eq.s32.totalorder %v284, %v1987
        %vm2408 = vcmp.eq.s32.totalorder %v284, %v1988
        %vm2409 = vcmp.eq.s32.totalorder %v284, %v1989
        %vm2410 = vcmp.eq.s32.totalorder %v284, %v1990
        %vm2411 = vcmp.eq.s32.totalorder %v284, %v1991
        %vm2412 = vcmp.eq.s32.totalorder %v284, %v1992
        %vm2413 = vcmp.eq.s32.totalorder %v284, %v1993
        %vm2414 = vcmp.eq.s32.totalorder %v285, %v1982
        %vm2415 = vcmp.eq.s32.totalorder %v285, %v1983
        %vm2416 = vcmp.eq.s32.totalorder %v285, %v1984
        %vm2417 = vcmp.eq.s32.totalorder %v285, %v1985
        %vm2418 = vcmp.eq.s32.totalorder %v285, %v1986
        %vm2419 = vcmp.eq.s32.totalorder %v285, %v1987
        %vm2420 = vcmp.eq.s32.totalorder %v285, %v1988
        %vm2421 = vcmp.eq.s32.totalorder %v285, %v1989
        %vm2422 = vcmp.eq.s32.totalorder %v285, %v1990
        %vm2423 = vcmp.eq.s32.totalorder %v285, %v1991
        %vm2424 = vcmp.eq.s32.totalorder %v285, %v1992
        %vm2425 = vcmp.eq.s32.totalorder %v285, %v1993
        %vm2426 = vcmp.eq.s32.totalorder %v286, %v1982
        %vm2427 = vcmp.eq.s32.totalorder %v286, %v1983
        %vm2428 = vcmp.eq.s32.totalorder %v286, %v1984
        %vm2429 = vcmp.eq.s32.totalorder %v286, %v1985
        %vm2430 = vcmp.eq.s32.totalorder %v286, %v1986
        %vm2431 = vcmp.eq.s32.totalorder %v286, %v1987
        %vm2432 = vcmp.eq.s32.totalorder %v286, %v1988
        %vm2433 = vcmp.eq.s32.totalorder %v286, %v1989
        %vm2434 = vcmp.eq.s32.totalorder %v286, %v1990
        %vm2435 = vcmp.eq.s32.totalorder %v286, %v1991
        %vm2436 = vcmp.eq.s32.totalorder %v286, %v1992
        %vm2437 = vcmp.eq.s32.totalorder %v286, %v1993
        %vm2438 = vcmp.eq.s32.totalorder %v287, %v1982
        %vm2439 = vcmp.eq.s32.totalorder %v287, %v1983
        %vm2440 = vcmp.eq.s32.totalorder %v287, %v1984
        %vm2441 = vcmp.eq.s32.totalorder %v287, %v1985
        %vm2442 = vcmp.eq.s32.totalorder %v287, %v1986
        %vm2443 = vcmp.eq.s32.totalorder %v287, %v1987
        %vm2444 = vcmp.eq.s32.totalorder %v287, %v1988
        %vm2445 = vcmp.eq.s32.totalorder %v287, %v1989
        %vm2446 = vcmp.eq.s32.totalorder %v287, %v1990
        %vm2447 = vcmp.eq.s32.totalorder %v287, %v1991
        %vm2448 = vcmp.eq.s32.totalorder %v287, %v1992
        %vm2449 = vcmp.eq.s32.totalorder %v287, %v1993
        %vm2450 = vcmp.eq.s32.totalorder %v288, %v1982
        %vm2451 = vcmp.eq.s32.totalorder %v288, %v1983
        %vm2452 = vcmp.eq.s32.totalorder %v288, %v1984
        %vm2453 = vcmp.eq.s32.totalorder %v288, %v1985
        %vm2454 = vcmp.eq.s32.totalorder %v288, %v1986
        %vm2455 = vcmp.eq.s32.totalorder %v288, %v1987
        %vm2456 = vcmp.eq.s32.totalorder %v288, %v1988
        %vm2457 = vcmp.eq.s32.totalorder %v288, %v1989
        %vm2458 = vcmp.eq.s32.totalorder %v288, %v1990
        %vm2459 = vcmp.eq.s32.totalorder %v288, %v1991
        %vm2460 = vcmp.eq.s32.totalorder %v288, %v1992
        %vm2461 = vcmp.eq.s32.totalorder %v288, %v1993
        %vm2462 = vcmp.eq.s32.totalorder %v289, %v1982
        %vm2463 = vcmp.eq.s32.totalorder %v289, %v1983
        %vm2464 = vcmp.eq.s32.totalorder %v289, %v1984
        %vm2465 = vcmp.eq.s32.totalorder %v289, %v1985
        %vm2466 = vcmp.eq.s32.totalorder %v289, %v1986
        %vm2467 = vcmp.eq.s32.totalorder %v289, %v1987
        %vm2468 = vcmp.eq.s32.totalorder %v289, %v1988
        %vm2469 = vcmp.eq.s32.totalorder %v289, %v1989
        %vm2470 = vcmp.eq.s32.totalorder %v289, %v1990
        %vm2471 = vcmp.eq.s32.totalorder %v289, %v1991
        %vm2472 = vcmp.eq.s32.totalorder %v289, %v1992
        %vm2473 = vcmp.eq.s32.totalorder %v289, %v1993
        %v2474 = vsel %vm1994, 1, 0
        %v2475 = vsel %vm1995, 1, 0
        %v2476 = vsel %vm1996, 1, 0
        %v2477 = vsel %vm1997, 1, 0
        %v2478 = vsel %vm1998, 1, 0
        %v2479 = vsel %vm1999, 1, 0
        %v2480 = vsel %vm2000, 1, 0
        %v2481 = vsel %vm2001, 1, 0
        %v2482 = vsel %vm2002, 1, 0
        %v2483 = vsel %vm2003, 1, 0
        %v2484 = vsel %vm2004, 1, 0
        %v2485 = vsel %vm2005, 1, 0
        %v2486 = vsel %vm2006, 1, 0
        %v2487 = vsel %vm2007, 1, 0
        %v2488 = vsel %vm2008, 1, 0
        %v2489 = vsel %vm2009, 1, 0
        %v2490 = vsel %vm2010, 1, 0
        %v2491 = vsel %vm2011, 1, 0
        %v2492 = vsel %vm2012, 1, 0
        %v2493 = vsel %vm2013, 1, 0
        %v2494 = vsel %vm2014, 1, 0
        %v2495 = vsel %vm2015, 1, 0
        %v2496 = vsel %vm2016, 1, 0
        %v2497 = vsel %vm2017, 1, 0
        %v2498 = vsel %vm2018, 1, 0
        %v2499 = vsel %vm2019, 1, 0
        %v2500 = vsel %vm2020, 1, 0
        %v2501 = vsel %vm2021, 1, 0
        %v2502 = vsel %vm2022, 1, 0
        %v2503 = vsel %vm2023, 1, 0
        %v2504 = vsel %vm2024, 1, 0
        %v2505 = vsel %vm2025, 1, 0
        %v2506 = vsel %vm2026, 1, 0
        %v2507 = vsel %vm2027, 1, 0
        %v2508 = vsel %vm2028, 1, 0
        %v2509 = vsel %vm2029, 1, 0
        %v2510 = vsel %vm2030, 1, 0
        %v2511 = vsel %vm2031, 1, 0
        %v2512 = vsel %vm2032, 1, 0
        %v2513 = vsel %vm2033, 1, 0
        %v2514 = vsel %vm2034, 1, 0
        %v2515 = vsel %vm2035, 1, 0
        %v2516 = vsel %vm2036, 1, 0
        %v2517 = vsel %vm2037, 1, 0
        %v2518 = vsel %vm2038, 1, 0
        %v2519 = vsel %vm2039, 1, 0
        %v2520 = vsel %vm2040, 1, 0
        %v2521 = vsel %vm2041, 1, 0
        %v2522 = vsel %vm2042, 1, 0
        %v2523 = vsel %vm2043, 1, 0
        %v2524 = vsel %vm2044, 1, 0
        %v2525 = vsel %vm2045, 1, 0
        %v2526 = vsel %vm2046, 1, 0
        %v2527 = vsel %vm2047, 1, 0
        %v2528 = vsel %vm2048, 1, 0
        %v2529 = vsel %vm2049, 1, 0
        %v2530 = vsel %vm2050, 1, 0
        %v2531 = vsel %vm2051, 1, 0
        %v2532 = vsel %vm2052, 1, 0
        %v2533 = vsel %vm2053, 1, 0
        %v2534 = vsel %vm2054, 1, 0
        %v2535 = vsel %vm2055, 1, 0
        %v2536 = vsel %vm2056, 1, 0
        %v2537 = vsel %vm2057, 1, 0
        %v2538 = vsel %vm2058, 1, 0
        %v2539 = vsel %vm2059, 1, 0
        %v2540 = vsel %vm2060, 1, 0
        %v2541 = vsel %vm2061, 1, 0
        %v2542 = vsel %vm2062, 1, 0
        %v2543 = vsel %vm2063, 1, 0
        %v2544 = vsel %vm2064, 1, 0
        %v2545 = vsel %vm2065, 1, 0
        %v2546 = vsel %vm2066, 1, 0
        %v2547 = vsel %vm2067, 1, 0
        %v2548 = vsel %vm2068, 1, 0
        %v2549 = vsel %vm2069, 1, 0
        %v2550 = vsel %vm2070, 1, 0
        %v2551 = vsel %vm2071, 1, 0
        %v2552 = vsel %vm2072, 1, 0
        %v2553 = vsel %vm2073, 1, 0
        %v2554 = vsel %vm2074, 1, 0
        %v2555 = vsel %vm2075, 1, 0
        %v2556 = vsel %vm2076, 1, 0
        %v2557 = vsel %vm2077, 1, 0
        %v2558 = vsel %vm2078, 1, 0
        %v2559 = vsel %vm2079, 1, 0
        %v2560 = vsel %vm2080, 1, 0
        %v2561 = vsel %vm2081, 1, 0
        %v2562 = vsel %vm2082, 1, 0
        %v2563 = vsel %vm2083, 1, 0
        %v2564 = vsel %vm2084, 1, 0
        %v2565 = vsel %vm2085, 1, 0
        %v2566 = vsel %vm2086, 1, 0
        %v2567 = vsel %vm2087, 1, 0
        %v2568 = vsel %vm2088, 1, 0
        %v2569 = vsel %vm2089, 1, 0
        %v2570 = vsel %vm2090, 1, 0
        %v2571 = vsel %vm2091, 1, 0
        %v2572 = vsel %vm2092, 1, 0
        %v2573 = vsel %vm2093, 1, 0
        %v2574 = vsel %vm2094, 1, 0
        %v2575 = vsel %vm2095, 1, 0
        %v2576 = vsel %vm2096, 1, 0
        %v2577 = vsel %vm2097, 1, 0
        %v2578 = vsel %vm2098, 1, 0
        %v2579 = vsel %vm2099, 1, 0
        %v2580 = vsel %vm2100, 1, 0
        %v2581 = vsel %vm2101, 1, 0
        %v2582 = vsel %vm2102, 1, 0
        %v2583 = vsel %vm2103, 1, 0
        %v2584 = vsel %vm2104, 1, 0
        %v2585 = vsel %vm2105, 1, 0
        %v2586 = vsel %vm2106, 1, 0
        %v2587 = vsel %vm2107, 1, 0
        %v2588 = vsel %vm2108, 1, 0
        %v2589 = vsel %vm2109, 1, 0
        %v2590 = vsel %vm2110, 1, 0
        %v2591 = vsel %vm2111, 1, 0
        %v2592 = vsel %vm2112, 1, 0
        %v2593 = vsel %vm2113, 1, 0
        %v2594 = vsel %vm2114, 1, 0
        %v2595 = vsel %vm2115, 1, 0
        %v2596 = vsel %vm2116, 1, 0
        %v2597 = vsel %vm2117, 1, 0
        %v2598 = vsel %vm2118, 1, 0
        %v2599 = vsel %vm2119, 1, 0
        %v2600 = vsel %vm2120, 1, 0
        %v2601 = vsel %vm2121, 1, 0
        %v2602 = vsel %vm2122, 1, 0
        %v2603 = vsel %vm2123, 1, 0
        %v2604 = vsel %vm2124, 1, 0
        %v2605 = vsel %vm2125, 1, 0
        %v2606 = vsel %vm2126, 1, 0
        %v2607 = vsel %vm2127, 1, 0
        %v2608 = vsel %vm2128, 1, 0
        %v2609 = vsel %vm2129, 1, 0
        %v2610 = vsel %vm2130, 1, 0
        %v2611 = vsel %vm2131, 1, 0
        %v2612 = vsel %vm2132, 1, 0
        %v2613 = vsel %vm2133, 1, 0
        %v2614 = vsel %vm2134, 1, 0
        %v2615 = vsel %vm2135, 1, 0
        %v2616 = vsel %vm2136, 1, 0
        %v2617 = vsel %vm2137, 1, 0
        %v2618 = vsel %vm2138, 1, 0
        %v2619 = vsel %vm2139, 1, 0
        %v2620 = vsel %vm2140, 1, 0
        %v2621 = vsel %vm2141, 1, 0
        %v2622 = vsel %vm2142, 1, 0
        %v2623 = vsel %vm2143, 1, 0
        %v2624 = vsel %vm2144, 1, 0
        %v2625 = vsel %vm2145, 1, 0
        %v2626 = vsel %vm2146, 1, 0
        %v2627 = vsel %vm2147, 1, 0
        %v2628 = vsel %vm2148, 1, 0
        %v2629 = vsel %vm2149, 1, 0
        %v2630 = vsel %vm2150, 1, 0
        %v2631 = vsel %vm2151, 1, 0
        %v2632 = vsel %vm2152, 1, 0
        %v2633 = vsel %vm2153, 1, 0
        %v2634 = vsel %vm2154, 1, 0
        %v2635 = vsel %vm2155, 1, 0
        %v2636 = vsel %vm2156, 1, 0
        %v2637 = vsel %vm2157, 1, 0
        %v2638 = vsel %vm2158, 1, 0
        %v2639 = vsel %vm2159, 1, 0
        %v2640 = vsel %vm2160, 1, 0
        %v2641 = vsel %vm2161, 1, 0
        %v2642 = vsel %vm2162, 1, 0
        %v2643 = vsel %vm2163, 1, 0
        %v2644 = vsel %vm2164, 1, 0
        %v2645 = vsel %vm2165, 1, 0
        %v2646 = vsel %vm2166, 1, 0
        %v2647 = vsel %vm2167, 1, 0
        %v2648 = vsel %vm2168, 1, 0
        %v2649 = vsel %vm2169, 1, 0
        %v2650 = vsel %vm2170, 1, 0
        %v2651 = vsel %vm2171, 1, 0
        %v2652 = vsel %vm2172, 1, 0
        %v2653 = vsel %vm2173, 1, 0
        %v2654 = vsel %vm2174, 1, 0
        %v2655 = vsel %vm2175, 1, 0
        %v2656 = vsel %vm2176, 1, 0
        %v2657 = vsel %vm2177, 1, 0
        %v2658 = vsel %vm2178, 1, 0
        %v2659 = vsel %vm2179, 1, 0
        %v2660 = vsel %vm2180, 1, 0
        %v2661 = vsel %vm2181, 1, 0
        %v2662 = vsel %vm2182, 1, 0
        %v2663 = vsel %vm2183, 1, 0
        %v2664 = vsel %vm2184, 1, 0
        %v2665 = vsel %vm2185, 1, 0
        %v2666 = vsel %vm2186, 1, 0
        %v2667 = vsel %vm2187, 1, 0
        %v2668 = vsel %vm2188, 1, 0
        %v2669 = vsel %vm2189, 1, 0
        %v2670 = vsel %vm2190, 1, 0
        %v2671 = vsel %vm2191, 1, 0
        %v2672 = vsel %vm2192, 1, 0
        %v2673 = vsel %vm2193, 1, 0
        %v2674 = vsel %vm2194, 1, 0
        %v2675 = vsel %vm2195, 1, 0
        %v2676 = vsel %vm2196, 1, 0
        %v2677 = vsel %vm2197, 1, 0
        %v2678 = vsel %vm2198, 1, 0
        %v2679 = vsel %vm2199, 1, 0
        %v2680 = vsel %vm2200, 1, 0
        %v2681 = vsel %vm2201, 1, 0
        %v2682 = vsel %vm2202, 1, 0
        %v2683 = vsel %vm2203, 1, 0
        %v2684 = vsel %vm2204, 1, 0
        %v2685 = vsel %vm2205, 1, 0
        %v2686 = vsel %vm2206, 1, 0
        %v2687 = vsel %vm2207, 1, 0
        %v2688 = vsel %vm2208, 1, 0
        %v2689 = vsel %vm2209, 1, 0
        %v2690 = vsel %vm2210, 1, 0
        %v2691 = vsel %vm2211, 1, 0
        %v2692 = vsel %vm2212, 1, 0
        %v2693 = vsel %vm2213, 1, 0
        %v2694 = vsel %vm2214, 1, 0
        %v2695 = vsel %vm2215, 1, 0
        %v2696 = vsel %vm2216, 1, 0
        %v2697 = vsel %vm2217, 1, 0
        %v2698 = vsel %vm2218, 1, 0
        %v2699 = vsel %vm2219, 1, 0
        %v2700 = vsel %vm2220, 1, 0
        %v2701 = vsel %vm2221, 1, 0
        %v2702 = vsel %vm2222, 1, 0
        %v2703 = vsel %vm2223, 1, 0
        %v2704 = vsel %vm2224, 1, 0
        %v2705 = vsel %vm2225, 1, 0
        %v2706 = vsel %vm2226, 1, 0
        %v2707 = vsel %vm2227, 1, 0
        %v2708 = vsel %vm2228, 1, 0
        %v2709 = vsel %vm2229, 1, 0
        %v2710 = vsel %vm2230, 1, 0
        %v2711 = vsel %vm2231, 1, 0
        %v2712 = vsel %vm2232, 1, 0
        %v2713 = vsel %vm2233, 1, 0
        %v2714 = vsel %vm2234, 1, 0
        %v2715 = vsel %vm2235, 1, 0
        %v2716 = vsel %vm2236, 1, 0
        %v2717 = vsel %vm2237, 1, 0
        %v2718 = vsel %vm2238, 1, 0
        %v2719 = vsel %vm2239, 1, 0
        %v2720 = vsel %vm2240, 1, 0
        %v2721 = vsel %vm2241, 1, 0
        %v2722 = vsel %vm2242, 1, 0
        %v2723 = vsel %vm2243, 1, 0
        %v2724 = vsel %vm2244, 1, 0
        %v2725 = vsel %vm2245, 1, 0
        %v2726 = vsel %vm2246, 1, 0
        %v2727 = vsel %vm2247, 1, 0
        %v2728 = vsel %vm2248, 1, 0
        %v2729 = vsel %vm2249, 1, 0
        %v2730 = vsel %vm2250, 1, 0
        %v2731 = vsel %vm2251, 1, 0
        %v2732 = vsel %vm2252, 1, 0
        %v2733 = vsel %vm2253, 1, 0
        %v2734 = vsel %vm2254, 1, 0
        %v2735 = vsel %vm2255, 1, 0
        %v2736 = vsel %vm2256, 1, 0
        %v2737 = vsel %vm2257, 1, 0
        %v2738 = vsel %vm2258, 1, 0
        %v2739 = vsel %vm2259, 1, 0
        %v2740 = vsel %vm2260, 1, 0
        %v2741 = vsel %vm2261, 1, 0
        %v2742 = vsel %vm2262, 1, 0
        %v2743 = vsel %vm2263, 1, 0
        %v2744 = vsel %vm2264, 1, 0
        %v2745 = vsel %vm2265, 1, 0
        %v2746 = vsel %vm2266, 1, 0
        %v2747 = vsel %vm2267, 1, 0
        %v2748 = vsel %vm2268, 1, 0
        %v2749 = vsel %vm2269, 1, 0
        %v2750 = vsel %vm2270, 1, 0
        %v2751 = vsel %vm2271, 1, 0
        %v2752 = vsel %vm2272, 1, 0
        %v2753 = vsel %vm2273, 1, 0
        %v2754 = vsel %vm2274, 1, 0
        %v2755 = vsel %vm2275, 1, 0
        %v2756 = vsel %vm2276, 1, 0
        %v2757 = vsel %vm2277, 1, 0
        %v2758 = vsel %vm2278, 1, 0
        %v2759 = vsel %vm2279, 1, 0
        %v2760 = vsel %vm2280, 1, 0
        %v2761 = vsel %vm2281, 1, 0
        %v2762 = vsel %vm2282, 1, 0
        %v2763 = vsel %vm2283, 1, 0
        %v2764 = vsel %vm2284, 1, 0
        %v2765 = vsel %vm2285, 1, 0
        %v2766 = vsel %vm2286, 1, 0
        %v2767 = vsel %vm2287, 1, 0
        %v2768 = vsel %vm2288, 1, 0
        %v2769 = vsel %vm2289, 1, 0
        %v2770 = vsel %vm2290, 1, 0
        %v2771 = vsel %vm2291, 1, 0
        %v2772 = vsel %vm2292, 1, 0
        %v2773 = vsel %vm2293, 1, 0
        %v2774 = vsel %vm2294, 1, 0
        %v2775 = vsel %vm2295, 1, 0
        %v2776 = vsel %vm2296, 1, 0
        %v2777 = vsel %vm2297, 1, 0
        %v2778 = vsel %vm2298, 1, 0
        %v2779 = vsel %vm2299, 1, 0
        %v2780 = vsel %vm2300, 1, 0
        %v2781 = vsel %vm2301, 1, 0
        %v2782 = vsel %vm2302, 1, 0
        %v2783 = vsel %vm2303, 1, 0
        %v2784 = vsel %vm2304, 1, 0
        %v2785 = vsel %vm2305, 1, 0
        %v2786 = vsel %vm2306, 1, 0
        %v2787 = vsel %vm2307, 1, 0
        %v2788 = vsel %vm2308, 1, 0
        %v2789 = vsel %vm2309, 1, 0
        %v2790 = vsel %vm2310, 1, 0
        %v2791 = vsel %vm2311, 1, 0
        %v2792 = vsel %vm2312, 1, 0
        %v2793 = vsel %vm2313, 1, 0
        %v2794 = vsel %vm2314, 1, 0
        %v2795 = vsel %vm2315, 1, 0
        %v2796 = vsel %vm2316, 1, 0
        %v2797 = vsel %vm2317, 1, 0
        %v2798 = vsel %vm2318, 1, 0
        %v2799 = vsel %vm2319, 1, 0
        %v2800 = vsel %vm2320, 1, 0
        %v2801 = vsel %vm2321, 1, 0
        %v2802 = vsel %vm2322, 1, 0
        %v2803 = vsel %vm2323, 1, 0
        %v2804 = vsel %vm2324, 1, 0
        %v2805 = vsel %vm2325, 1, 0
        %v2806 = vsel %vm2326, 1, 0
        %v2807 = vsel %vm2327, 1, 0
        %v2808 = vsel %vm2328, 1, 0
        %v2809 = vsel %vm2329, 1, 0
        %v2810 = vsel %vm2330, 1, 0
        %v2811 = vsel %vm2331, 1, 0
        %v2812 = vsel %vm2332, 1, 0
        %v2813 = vsel %vm2333, 1, 0
        %v2814 = vsel %vm2334, 1, 0
        %v2815 = vsel %vm2335, 1, 0
        %v2816 = vsel %vm2336, 1, 0
        %v2817 = vsel %vm2337, 1, 0
        %v2818 = vsel %vm2338, 1, 0
        %v2819 = vsel %vm2339, 1, 0
        %v2820 = vsel %vm2340, 1, 0
        %v2821 = vsel %vm2341, 1, 0
        %v2822 = vsel %vm2342, 1, 0
        %v2823 = vsel %vm2343, 1, 0
        %v2824 = vsel %vm2344, 1, 0
        %v2825 = vsel %vm2345, 1, 0
        %v2826 = vsel %vm2346, 1, 0
        %v2827 = vsel %vm2347, 1, 0
        %v2828 = vsel %vm2348, 1, 0
        %v2829 = vsel %vm2349, 1, 0
        %v2830 = vsel %vm2350, 1, 0
        %v2831 = vsel %vm2351, 1, 0
        %v2832 = vsel %vm2352, 1, 0
        %v2833 = vsel %vm2353, 1, 0
        %v2834 = vsel %vm2354, 1, 0
        %v2835 = vsel %vm2355, 1, 0
        %v2836 = vsel %vm2356, 1, 0
        %v2837 = vsel %vm2357, 1, 0
        %v2838 = vsel %vm2358, 1, 0
        %v2839 = vsel %vm2359, 1, 0
        %v2840 = vsel %vm2360, 1, 0
        %v2841 = vsel %vm2361, 1, 0
        %v2842 = vsel %vm2362, 1, 0
        %v2843 = vsel %vm2363, 1, 0
        %v2844 = vsel %vm2364, 1, 0
        %v2845 = vsel %vm2365, 1, 0
        %v2846 = vsel %vm2366, 1, 0
        %v2847 = vsel %vm2367, 1, 0
        %v2848 = vsel %vm2368, 1, 0
        %v2849 = vsel %vm2369, 1, 0
        %v2850 = vsel %vm2370, 1, 0
        %v2851 = vsel %vm2371, 1, 0
        %v2852 = vsel %vm2372, 1, 0
        %v2853 = vsel %vm2373, 1, 0
        %v2854 = vsel %vm2374, 1, 0
        %v2855 = vsel %vm2375, 1, 0
        %v2856 = vsel %vm2376, 1, 0
        %v2857 = vsel %vm2377, 1, 0
        %v2858 = vsel %vm2378, 1, 0
        %v2859 = vsel %vm2379, 1, 0
        %v2860 = vsel %vm2380, 1, 0
        %v2861 = vsel %vm2381, 1, 0
        %v2862 = vsel %vm2382, 1, 0
        %v2863 = vsel %vm2383, 1, 0
        %v2864 = vsel %vm2384, 1, 0
        %v2865 = vsel %vm2385, 1, 0
        %v2866 = vsel %vm2386, 1, 0
        %v2867 = vsel %vm2387, 1, 0
        %v2868 = vsel %vm2388, 1, 0
        %v2869 = vsel %vm2389, 1, 0
        %v2870 = vsel %vm2390, 1, 0
        %v2871 = vsel %vm2391, 1, 0
        %v2872 = vsel %vm2392, 1, 0
        %v2873 = vsel %vm2393, 1, 0
        %v2874 = vsel %vm2394, 1, 0
        %v2875 = vsel %vm2395, 1, 0
        %v2876 = vsel %vm2396, 1, 0
        %v2877 = vsel %vm2397, 1, 0
        %v2878 = vsel %vm2398, 1, 0
        %v2879 = vsel %vm2399, 1, 0
        %v2880 = vsel %vm2400, 1, 0
        %v2881 = vsel %vm2401, 1, 0
        %v2882 = vsel %vm2402, 1, 0
        %v2883 = vsel %vm2403, 1, 0
        %v2884 = vsel %vm2404, 1, 0
        %v2885 = vsel %vm2405, 1, 0
        %v2886 = vsel %vm2406, 1, 0
        %v2887 = vsel %vm2407, 1, 0
        %v2888 = vsel %vm2408, 1, 0
        %v2889 = vsel %vm2409, 1, 0
        %v2890 = vsel %vm2410, 1, 0
        %v2891 = vsel %vm2411, 1, 0
        %v2892 = vsel %vm2412, 1, 0
        %v2893 = vsel %vm2413, 1, 0
        %v2894 = vsel %vm2414, 1, 0
        %v2895 = vsel %vm2415, 1, 0
        %v2896 = vsel %vm2416, 1, 0
        %v2897 = vsel %vm2417, 1, 0
        %v2898 = vsel %vm2418, 1, 0
        %v2899 = vsel %vm2419, 1, 0
        %v2900 = vsel %vm2420, 1, 0
        %v2901 = vsel %vm2421, 1, 0
        %v2902 = vsel %vm2422, 1, 0
        %v2903 = vsel %vm2423, 1, 0
        %v2904 = vsel %vm2424, 1, 0
        %v2905 = vsel %vm2425, 1, 0
        %v2906 = vsel %vm2426, 1, 0
        %v2907 = vsel %vm2427, 1, 0
        %v2908 = vsel %vm2428, 1, 0
        %v2909 = vsel %vm2429, 1, 0
        %v2910 = vsel %vm2430, 1, 0
        %v2911 = vsel %vm2431, 1, 0
        %v2912 = vsel %vm2432, 1, 0
        %v2913 = vsel %vm2433, 1, 0
        %v2914 = vsel %vm2434, 1, 0
        %v2915 = vsel %vm2435, 1, 0
        %v2916 = vsel %vm2436, 1, 0
        %v2917 = vsel %vm2437, 1, 0
        %v2918 = vsel %vm2438, 1, 0
        %v2919 = vsel %vm2439, 1, 0
        %v2920 = vsel %vm2440, 1, 0
        %v2921 = vsel %vm2441, 1, 0
        %v2922 = vsel %vm2442, 1, 0
        %v2923 = vsel %vm2443, 1, 0
        %v2924 = vsel %vm2444, 1, 0
        %v2925 = vsel %vm2445, 1, 0
        %v2926 = vsel %vm2446, 1, 0
        %v2927 = vsel %vm2447, 1, 0
        %v2928 = vsel %vm2448, 1, 0
        %v2929 = vsel %vm2449, 1, 0
        %v2930 = vsel %vm2450, 1, 0
        %v2931 = vsel %vm2451, 1, 0
        %v2932 = vsel %vm2452, 1, 0
        %v2933 = vsel %vm2453, 1, 0
        %v2934 = vsel %vm2454, 1, 0
        %v2935 = vsel %vm2455, 1, 0
        %v2936 = vsel %vm2456, 1, 0
        %v2937 = vsel %vm2457, 1, 0
        %v2938 = vsel %vm2458, 1, 0
        %v2939 = vsel %vm2459, 1, 0
        %v2940 = vsel %vm2460, 1, 0
        %v2941 = vsel %vm2461, 1, 0
        %v2942 = vsel %vm2462, 1, 0
        %v2943 = vsel %vm2463, 1, 0
        %v2944 = vsel %vm2464, 1, 0
        %v2945 = vsel %vm2465, 1, 0
        %v2946 = vsel %vm2466, 1, 0
        %v2947 = vsel %vm2467, 1, 0
        %v2948 = vsel %vm2468, 1, 0
        %v2949 = vsel %vm2469, 1, 0
        %v2950 = vsel %vm2470, 1, 0
        %v2951 = vsel %vm2471, 1, 0
        %v2952 = vsel %vm2472, 1, 0
        %v2953 = vsel %vm2473, 1, 0
        %v2954 = vcvt.s32.f32 %v2474
        %v2955 = vcvt.s32.f32 %v2475
        %v2956 = vcvt.s32.f32 %v2476
        %v2957 = vcvt.s32.f32 %v2477
        %v2958 = vcvt.s32.f32 %v2478
        %v2959 = vcvt.s32.f32 %v2479
        %v2960 = vcvt.s32.f32 %v2480
        %v2961 = vcvt.s32.f32 %v2481
        %v2962 = vcvt.s32.f32 %v2482
        %v2963 = vcvt.s32.f32 %v2483
        %v2964 = vcvt.s32.f32 %v2484
        %v2965 = vcvt.s32.f32 %v2485
        %v2966 = vcvt.s32.f32 %v2486
        %v2967 = vcvt.s32.f32 %v2487
        %v2968 = vcvt.s32.f32 %v2488
        %v2969 = vcvt.s32.f32 %v2489
        %v2970 = vcvt.s32.f32 %v2490
        %v2971 = vcvt.s32.f32 %v2491
        %v2972 = vcvt.s32.f32 %v2492
        %v2973 = vcvt.s32.f32 %v2493
        %v2974 = vcvt.s32.f32 %v2494
        %v2975 = vcvt.s32.f32 %v2495
        %v2976 = vcvt.s32.f32 %v2496
        %v2977 = vcvt.s32.f32 %v2497
        %v2978 = vcvt.s32.f32 %v2498
        %v2979 = vcvt.s32.f32 %v2499
        %v2980 = vcvt.s32.f32 %v2500
        %v2981 = vcvt.s32.f32 %v2501
        %v2982 = vcvt.s32.f32 %v2502
        %v2983 = vcvt.s32.f32 %v2503
        %v2984 = vcvt.s32.f32 %v2504
        %v2985 = vcvt.s32.f32 %v2505
        %v2986 = vcvt.s32.f32 %v2506
        %v2987 = vcvt.s32.f32 %v2507
        %v2988 = vcvt.s32.f32 %v2508
        %v2989 = vcvt.s32.f32 %v2509
        %v2990 = vcvt.s32.f32 %v2510
        %v2991 = vcvt.s32.f32 %v2511
        %v2992 = vcvt.s32.f32 %v2512
        %v2993 = vcvt.s32.f32 %v2513
        %v2994 = vcvt.s32.f32 %v2514
        %v2995 = vcvt.s32.f32 %v2515
        %v2996 = vcvt.s32.f32 %v2516
        %v2997 = vcvt.s32.f32 %v2517
        %v2998 = vcvt.s32.f32 %v2518
        %v2999 = vcvt.s32.f32 %v2519
        %v3000 = vcvt.s32.f32 %v2520
        %v3001 = vcvt.s32.f32 %v2521
        %v3002 = vcvt.s32.f32 %v2522
        %v3003 = vcvt.s32.f32 %v2523
        %v3004 = vcvt.s32.f32 %v2524
        %v3005 = vcvt.s32.f32 %v2525
        %v3006 = vcvt.s32.f32 %v2526
        %v3007 = vcvt.s32.f32 %v2527
        %v3008 = vcvt.s32.f32 %v2528
        %v3009 = vcvt.s32.f32 %v2529
        %v3010 = vcvt.s32.f32 %v2530
        %v3011 = vcvt.s32.f32 %v2531
        %v3012 = vcvt.s32.f32 %v2532
        %v3013 = vcvt.s32.f32 %v2533
        %v3014 = vcvt.s32.f32 %v2534
        %v3015 = vcvt.s32.f32 %v2535
        %v3016 = vcvt.s32.f32 %v2536
        %v3017 = vcvt.s32.f32 %v2537
        %v3018 = vcvt.s32.f32 %v2538
        %v3019 = vcvt.s32.f32 %v2539
        %v3020 = vcvt.s32.f32 %v2540
        %v3021 = vcvt.s32.f32 %v2541
        %v3022 = vcvt.s32.f32 %v2542
        %v3023 = vcvt.s32.f32 %v2543
        %v3024 = vcvt.s32.f32 %v2544
        %v3025 = vcvt.s32.f32 %v2545
        %v3026 = vcvt.s32.f32 %v2546
        %v3027 = vcvt.s32.f32 %v2547
        %v3028 = vcvt.s32.f32 %v2548
        %v3029 = vcvt.s32.f32 %v2549
        %v3030 = vcvt.s32.f32 %v2550
        %v3031 = vcvt.s32.f32 %v2551
        %v3032 = vcvt.s32.f32 %v2552
        %v3033 = vcvt.s32.f32 %v2553
        %v3034 = vcvt.s32.f32 %v2554
        %v3035 = vcvt.s32.f32 %v2555
        %v3036 = vcvt.s32.f32 %v2556
        %v3037 = vcvt.s32.f32 %v2557
        %v3038 = vcvt.s32.f32 %v2558
        %v3039 = vcvt.s32.f32 %v2559
        %v3040 = vcvt.s32.f32 %v2560
        %v3041 = vcvt.s32.f32 %v2561
        %v3042 = vcvt.s32.f32 %v2562
        %v3043 = vcvt.s32.f32 %v2563
        %v3044 = vcvt.s32.f32 %v2564
        %v3045 = vcvt.s32.f32 %v2565
        %v3046 = vcvt.s32.f32 %v2566
        %v3047 = vcvt.s32.f32 %v2567
        %v3048 = vcvt.s32.f32 %v2568
        %v3049 = vcvt.s32.f32 %v2569
        %v3050 = vcvt.s32.f32 %v2570
        %v3051 = vcvt.s32.f32 %v2571
        %v3052 = vcvt.s32.f32 %v2572
        %v3053 = vcvt.s32.f32 %v2573
        %v3054 = vcvt.s32.f32 %v2574
        %v3055 = vcvt.s32.f32 %v2575
        %v3056 = vcvt.s32.f32 %v2576
        %v3057 = vcvt.s32.f32 %v2577
        %v3058 = vcvt.s32.f32 %v2578
        %v3059 = vcvt.s32.f32 %v2579
        %v3060 = vcvt.s32.f32 %v2580
        %v3061 = vcvt.s32.f32 %v2581
        %v3062 = vcvt.s32.f32 %v2582
        %v3063 = vcvt.s32.f32 %v2583
        %v3064 = vcvt.s32.f32 %v2584
        %v3065 = vcvt.s32.f32 %v2585
        %v3066 = vcvt.s32.f32 %v2586
        %v3067 = vcvt.s32.f32 %v2587
        %v3068 = vcvt.s32.f32 %v2588
        %v3069 = vcvt.s32.f32 %v2589
        %v3070 = vcvt.s32.f32 %v2590
        %v3071 = vcvt.s32.f32 %v2591
        %v3072 = vcvt.s32.f32 %v2592
        %v3073 = vcvt.s32.f32 %v2593
        %v3074 = vcvt.s32.f32 %v2594
        %v3075 = vcvt.s32.f32 %v2595
        %v3076 = vcvt.s32.f32 %v2596
        %v3077 = vcvt.s32.f32 %v2597
        %v3078 = vcvt.s32.f32 %v2598
        %v3079 = vcvt.s32.f32 %v2599
        %v3080 = vcvt.s32.f32 %v2600
        %v3081 = vcvt.s32.f32 %v2601
        %v3082 = vcvt.s32.f32 %v2602
        %v3083 = vcvt.s32.f32 %v2603
        %v3084 = vcvt.s32.f32 %v2604
        %v3085 = vcvt.s32.f32 %v2605
        %v3086 = vcvt.s32.f32 %v2606
        %v3087 = vcvt.s32.f32 %v2607
        %v3088 = vcvt.s32.f32 %v2608
        %v3089 = vcvt.s32.f32 %v2609
        %v3090 = vcvt.s32.f32 %v2610
        %v3091 = vcvt.s32.f32 %v2611
        %v3092 = vcvt.s32.f32 %v2612
        %v3093 = vcvt.s32.f32 %v2613
        %v3094 = vcvt.s32.f32 %v2614
        %v3095 = vcvt.s32.f32 %v2615
        %v3096 = vcvt.s32.f32 %v2616
        %v3097 = vcvt.s32.f32 %v2617
        %v3098 = vcvt.s32.f32 %v2618
        %v3099 = vcvt.s32.f32 %v2619
        %v3100 = vcvt.s32.f32 %v2620
        %v3101 = vcvt.s32.f32 %v2621
        %v3102 = vcvt.s32.f32 %v2622
        %v3103 = vcvt.s32.f32 %v2623
        %v3104 = vcvt.s32.f32 %v2624
        %v3105 = vcvt.s32.f32 %v2625
        %v3106 = vcvt.s32.f32 %v2626
        %v3107 = vcvt.s32.f32 %v2627
        %v3108 = vcvt.s32.f32 %v2628
        %v3109 = vcvt.s32.f32 %v2629
        %v3110 = vcvt.s32.f32 %v2630
        %v3111 = vcvt.s32.f32 %v2631
        %v3112 = vcvt.s32.f32 %v2632
        %v3113 = vcvt.s32.f32 %v2633
        %v3114 = vcvt.s32.f32 %v2634
        %v3115 = vcvt.s32.f32 %v2635
        %v3116 = vcvt.s32.f32 %v2636
        %v3117 = vcvt.s32.f32 %v2637
        %v3118 = vcvt.s32.f32 %v2638
        %v3119 = vcvt.s32.f32 %v2639
        %v3120 = vcvt.s32.f32 %v2640
        %v3121 = vcvt.s32.f32 %v2641
        %v3122 = vcvt.s32.f32 %v2642
        %v3123 = vcvt.s32.f32 %v2643
        %v3124 = vcvt.s32.f32 %v2644
        %v3125 = vcvt.s32.f32 %v2645
        %v3126 = vcvt.s32.f32 %v2646
        %v3127 = vcvt.s32.f32 %v2647
        %v3128 = vcvt.s32.f32 %v2648
        %v3129 = vcvt.s32.f32 %v2649
        %v3130 = vcvt.s32.f32 %v2650
        %v3131 = vcvt.s32.f32 %v2651
        %v3132 = vcvt.s32.f32 %v2652
        %v3133 = vcvt.s32.f32 %v2653
        %v3134 = vcvt.s32.f32 %v2654
        %v3135 = vcvt.s32.f32 %v2655
        %v3136 = vcvt.s32.f32 %v2656
        %v3137 = vcvt.s32.f32 %v2657
        %v3138 = vcvt.s32.f32 %v2658
        %v3139 = vcvt.s32.f32 %v2659
        %v3140 = vcvt.s32.f32 %v2660
        %v3141 = vcvt.s32.f32 %v2661
        %v3142 = vcvt.s32.f32 %v2662
        %v3143 = vcvt.s32.f32 %v2663
        %v3144 = vcvt.s32.f32 %v2664
        %v3145 = vcvt.s32.f32 %v2665
        %v3146 = vcvt.s32.f32 %v2666
        %v3147 = vcvt.s32.f32 %v2667
        %v3148 = vcvt.s32.f32 %v2668
        %v3149 = vcvt.s32.f32 %v2669
        %v3150 = vcvt.s32.f32 %v2670
        %v3151 = vcvt.s32.f32 %v2671
        %v3152 = vcvt.s32.f32 %v2672
        %v3153 = vcvt.s32.f32 %v2673
        %v3154 = vcvt.s32.f32 %v2674
        %v3155 = vcvt.s32.f32 %v2675
        %v3156 = vcvt.s32.f32 %v2676
        %v3157 = vcvt.s32.f32 %v2677
        %v3158 = vcvt.s32.f32 %v2678
        %v3159 = vcvt.s32.f32 %v2679
        %v3160 = vcvt.s32.f32 %v2680
        %v3161 = vcvt.s32.f32 %v2681
        %v3162 = vcvt.s32.f32 %v2682
        %v3163 = vcvt.s32.f32 %v2683
        %v3164 = vcvt.s32.f32 %v2684
        %v3165 = vcvt.s32.f32 %v2685
        %v3166 = vcvt.s32.f32 %v2686
        %v3167 = vcvt.s32.f32 %v2687
        %v3168 = vcvt.s32.f32 %v2688
        %v3169 = vcvt.s32.f32 %v2689
        %v3170 = vcvt.s32.f32 %v2690
        %v3171 = vcvt.s32.f32 %v2691
        %v3172 = vcvt.s32.f32 %v2692
        %v3173 = vcvt.s32.f32 %v2693
        %v3174 = vcvt.s32.f32 %v2694
        %v3175 = vcvt.s32.f32 %v2695
        %v3176 = vcvt.s32.f32 %v2696
        %v3177 = vcvt.s32.f32 %v2697
        %v3178 = vcvt.s32.f32 %v2698
        %v3179 = vcvt.s32.f32 %v2699
        %v3180 = vcvt.s32.f32 %v2700
        %v3181 = vcvt.s32.f32 %v2701
        %v3182 = vcvt.s32.f32 %v2702
        %v3183 = vcvt.s32.f32 %v2703
        %v3184 = vcvt.s32.f32 %v2704
        %v3185 = vcvt.s32.f32 %v2705
        %v3186 = vcvt.s32.f32 %v2706
        %v3187 = vcvt.s32.f32 %v2707
        %v3188 = vcvt.s32.f32 %v2708
        %v3189 = vcvt.s32.f32 %v2709
        %v3190 = vcvt.s32.f32 %v2710
        %v3191 = vcvt.s32.f32 %v2711
        %v3192 = vcvt.s32.f32 %v2712
        %v3193 = vcvt.s32.f32 %v2713
        %v3194 = vcvt.s32.f32 %v2714
        %v3195 = vcvt.s32.f32 %v2715
        %v3196 = vcvt.s32.f32 %v2716
        %v3197 = vcvt.s32.f32 %v2717
        %v3198 = vcvt.s32.f32 %v2718
        %v3199 = vcvt.s32.f32 %v2719
        %v3200 = vcvt.s32.f32 %v2720
        %v3201 = vcvt.s32.f32 %v2721
        %v3202 = vcvt.s32.f32 %v2722
        %v3203 = vcvt.s32.f32 %v2723
        %v3204 = vcvt.s32.f32 %v2724
        %v3205 = vcvt.s32.f32 %v2725
        %v3206 = vcvt.s32.f32 %v2726
        %v3207 = vcvt.s32.f32 %v2727
        %v3208 = vcvt.s32.f32 %v2728
        %v3209 = vcvt.s32.f32 %v2729
        %v3210 = vcvt.s32.f32 %v2730
        %v3211 = vcvt.s32.f32 %v2731
        %v3212 = vcvt.s32.f32 %v2732
        %v3213 = vcvt.s32.f32 %v2733
        %v3214 = vcvt.s32.f32 %v2734
        %v3215 = vcvt.s32.f32 %v2735
        %v3216 = vcvt.s32.f32 %v2736
        %v3217 = vcvt.s32.f32 %v2737
        %v3218 = vcvt.s32.f32 %v2738
        %v3219 = vcvt.s32.f32 %v2739
        %v3220 = vcvt.s32.f32 %v2740
        %v3221 = vcvt.s32.f32 %v2741
        %v3222 = vcvt.s32.f32 %v2742
        %v3223 = vcvt.s32.f32 %v2743
        %v3224 = vcvt.s32.f32 %v2744
        %v3225 = vcvt.s32.f32 %v2745
        %v3226 = vcvt.s32.f32 %v2746
        %v3227 = vcvt.s32.f32 %v2747
        %v3228 = vcvt.s32.f32 %v2748
        %v3229 = vcvt.s32.f32 %v2749
        %v3230 = vcvt.s32.f32 %v2750
        %v3231 = vcvt.s32.f32 %v2751
        %v3232 = vcvt.s32.f32 %v2752
        %v3233 = vcvt.s32.f32 %v2753
        %v3234 = vcvt.s32.f32 %v2754
        %v3235 = vcvt.s32.f32 %v2755
        %v3236 = vcvt.s32.f32 %v2756
        %v3237 = vcvt.s32.f32 %v2757
        %v3238 = vcvt.s32.f32 %v2758
        %v3239 = vcvt.s32.f32 %v2759
        %v3240 = vcvt.s32.f32 %v2760
        %v3241 = vcvt.s32.f32 %v2761
        %v3242 = vcvt.s32.f32 %v2762
        %v3243 = vcvt.s32.f32 %v2763
        %v3244 = vcvt.s32.f32 %v2764
        %v3245 = vcvt.s32.f32 %v2765
        %v3246 = vcvt.s32.f32 %v2766
        %v3247 = vcvt.s32.f32 %v2767
        %v3248 = vcvt.s32.f32 %v2768
        %v3249 = vcvt.s32.f32 %v2769
        %v3250 = vcvt.s32.f32 %v2770
        %v3251 = vcvt.s32.f32 %v2771
        %v3252 = vcvt.s32.f32 %v2772
        %v3253 = vcvt.s32.f32 %v2773
        %v3254 = vcvt.s32.f32 %v2774
        %v3255 = vcvt.s32.f32 %v2775
        %v3256 = vcvt.s32.f32 %v2776
        %v3257 = vcvt.s32.f32 %v2777
        %v3258 = vcvt.s32.f32 %v2778
        %v3259 = vcvt.s32.f32 %v2779
        %v3260 = vcvt.s32.f32 %v2780
        %v3261 = vcvt.s32.f32 %v2781
        %v3262 = vcvt.s32.f32 %v2782
        %v3263 = vcvt.s32.f32 %v2783
        %v3264 = vcvt.s32.f32 %v2784
        %v3265 = vcvt.s32.f32 %v2785
        %v3266 = vcvt.s32.f32 %v2786
        %v3267 = vcvt.s32.f32 %v2787
        %v3268 = vcvt.s32.f32 %v2788
        %v3269 = vcvt.s32.f32 %v2789
        %v3270 = vcvt.s32.f32 %v2790
        %v3271 = vcvt.s32.f32 %v2791
        %v3272 = vcvt.s32.f32 %v2792
        %v3273 = vcvt.s32.f32 %v2793
        %v3274 = vcvt.s32.f32 %v2794
        %v3275 = vcvt.s32.f32 %v2795
        %v3276 = vcvt.s32.f32 %v2796
        %v3277 = vcvt.s32.f32 %v2797
        %v3278 = vcvt.s32.f32 %v2798
        %v3279 = vcvt.s32.f32 %v2799
        %v3280 = vcvt.s32.f32 %v2800
        %v3281 = vcvt.s32.f32 %v2801
        %v3282 = vcvt.s32.f32 %v2802
        %v3283 = vcvt.s32.f32 %v2803
        %v3284 = vcvt.s32.f32 %v2804
        %v3285 = vcvt.s32.f32 %v2805
        %v3286 = vcvt.s32.f32 %v2806
        %v3287 = vcvt.s32.f32 %v2807
        %v3288 = vcvt.s32.f32 %v2808
        %v3289 = vcvt.s32.f32 %v2809
        %v3290 = vcvt.s32.f32 %v2810
        %v3291 = vcvt.s32.f32 %v2811
        %v3292 = vcvt.s32.f32 %v2812
        %v3293 = vcvt.s32.f32 %v2813
        %v3294 = vcvt.s32.f32 %v2814
        %v3295 = vcvt.s32.f32 %v2815
        %v3296 = vcvt.s32.f32 %v2816
        %v3297 = vcvt.s32.f32 %v2817
        %v3298 = vcvt.s32.f32 %v2818
        %v3299 = vcvt.s32.f32 %v2819
        %v3300 = vcvt.s32.f32 %v2820
        %v3301 = vcvt.s32.f32 %v2821
        %v3302 = vcvt.s32.f32 %v2822
        %v3303 = vcvt.s32.f32 %v2823
        %v3304 = vcvt.s32.f32 %v2824
        %v3305 = vcvt.s32.f32 %v2825
        %v3306 = vcvt.s32.f32 %v2826
        %v3307 = vcvt.s32.f32 %v2827
        %v3308 = vcvt.s32.f32 %v2828
        %v3309 = vcvt.s32.f32 %v2829
        %v3310 = vcvt.s32.f32 %v2830
        %v3311 = vcvt.s32.f32 %v2831
        %v3312 = vcvt.s32.f32 %v2832
        %v3313 = vcvt.s32.f32 %v2833
        %v3314 = vcvt.s32.f32 %v2834
        %v3315 = vcvt.s32.f32 %v2835
        %v3316 = vcvt.s32.f32 %v2836
        %v3317 = vcvt.s32.f32 %v2837
        %v3318 = vcvt.s32.f32 %v2838
        %v3319 = vcvt.s32.f32 %v2839
        %v3320 = vcvt.s32.f32 %v2840
        %v3321 = vcvt.s32.f32 %v2841
        %v3322 = vcvt.s32.f32 %v2842
        %v3323 = vcvt.s32.f32 %v2843
        %v3324 = vcvt.s32.f32 %v2844
        %v3325 = vcvt.s32.f32 %v2845
        %v3326 = vcvt.s32.f32 %v2846
        %v3327 = vcvt.s32.f32 %v2847
        %v3328 = vcvt.s32.f32 %v2848
        %v3329 = vcvt.s32.f32 %v2849
        %v3330 = vcvt.s32.f32 %v2850
        %v3331 = vcvt.s32.f32 %v2851
        %v3332 = vcvt.s32.f32 %v2852
        %v3333 = vcvt.s32.f32 %v2853
        %v3334 = vcvt.s32.f32 %v2854
        %v3335 = vcvt.s32.f32 %v2855
        %v3336 = vcvt.s32.f32 %v2856
        %v3337 = vcvt.s32.f32 %v2857
        %v3338 = vcvt.s32.f32 %v2858
        %v3339 = vcvt.s32.f32 %v2859
        %v3340 = vcvt.s32.f32 %v2860
        %v3341 = vcvt.s32.f32 %v2861
        %v3342 = vcvt.s32.f32 %v2862
        %v3343 = vcvt.s32.f32 %v2863
        %v3344 = vcvt.s32.f32 %v2864
        %v3345 = vcvt.s32.f32 %v2865
        %v3346 = vcvt.s32.f32 %v2866
        %v3347 = vcvt.s32.f32 %v2867
        %v3348 = vcvt.s32.f32 %v2868
        %v3349 = vcvt.s32.f32 %v2869
        %v3350 = vcvt.s32.f32 %v2870
        %v3351 = vcvt.s32.f32 %v2871
        %v3352 = vcvt.s32.f32 %v2872
        %v3353 = vcvt.s32.f32 %v2873
        %v3354 = vcvt.s32.f32 %v2874
        %v3355 = vcvt.s32.f32 %v2875
        %v3356 = vcvt.s32.f32 %v2876
        %v3357 = vcvt.s32.f32 %v2877
        %v3358 = vcvt.s32.f32 %v2878
        %v3359 = vcvt.s32.f32 %v2879
        %v3360 = vcvt.s32.f32 %v2880
        %v3361 = vcvt.s32.f32 %v2881
        %v3362 = vcvt.s32.f32 %v2882
        %v3363 = vcvt.s32.f32 %v2883
        %v3364 = vcvt.s32.f32 %v2884
        %v3365 = vcvt.s32.f32 %v2885
        %v3366 = vcvt.s32.f32 %v2886
        %v3367 = vcvt.s32.f32 %v2887
        %v3368 = vcvt.s32.f32 %v2888
        %v3369 = vcvt.s32.f32 %v2889
        %v3370 = vcvt.s32.f32 %v2890
        %v3371 = vcvt.s32.f32 %v2891
        %v3372 = vcvt.s32.f32 %v2892
        %v3373 = vcvt.s32.f32 %v2893
        %v3374 = vcvt.s32.f32 %v2894
        %v3375 = vcvt.s32.f32 %v2895
        %v3376 = vcvt.s32.f32 %v2896
        %v3377 = vcvt.s32.f32 %v2897
        %v3378 = vcvt.s32.f32 %v2898
        %v3379 = vcvt.s32.f32 %v2899
        %v3380 = vcvt.s32.f32 %v2900
        %v3381 = vcvt.s32.f32 %v2901
        %v3382 = vcvt.s32.f32 %v2902
        %v3383 = vcvt.s32.f32 %v2903
        %v3384 = vcvt.s32.f32 %v2904
        %v3385 = vcvt.s32.f32 %v2905
        %v3386 = vcvt.s32.f32 %v2906
        %v3387 = vcvt.s32.f32 %v2907
        %v3388 = vcvt.s32.f32 %v2908
        %v3389 = vcvt.s32.f32 %v2909
        %v3390 = vcvt.s32.f32 %v2910
        %v3391 = vcvt.s32.f32 %v2911
        %v3392 = vcvt.s32.f32 %v2912
        %v3393 = vcvt.s32.f32 %v2913
        %v3394 = vcvt.s32.f32 %v2914
        %v3395 = vcvt.s32.f32 %v2915
        %v3396 = vcvt.s32.f32 %v2916
        %v3397 = vcvt.s32.f32 %v2917
        %v3398 = vcvt.s32.f32 %v2918
        %v3399 = vcvt.s32.f32 %v2919
        %v3400 = vcvt.s32.f32 %v2920
        %v3401 = vcvt.s32.f32 %v2921
        %v3402 = vcvt.s32.f32 %v2922
        %v3403 = vcvt.s32.f32 %v2923
        %v3404 = vcvt.s32.f32 %v2924
        %v3405 = vcvt.s32.f32 %v2925
        %v3406 = vcvt.s32.f32 %v2926
        %v3407 = vcvt.s32.f32 %v2927
        %v3408 = vcvt.s32.f32 %v2928
        %v3409 = vcvt.s32.f32 %v2929
        %v3410 = vcvt.s32.f32 %v2930
        %v3411 = vcvt.s32.f32 %v2931
        %v3412 = vcvt.s32.f32 %v2932
        %v3413 = vcvt.s32.f32 %v2933
        %v3414 = vcvt.s32.f32 %v2934
        %v3415 = vcvt.s32.f32 %v2935
        %v3416 = vcvt.s32.f32 %v2936
        %v3417 = vcvt.s32.f32 %v2937
        %v3418 = vcvt.s32.f32 %v2938
        %v3419 = vcvt.s32.f32 %v2939
        %v3420 = vcvt.s32.f32 %v2940
        %v3421 = vcvt.s32.f32 %v2941
        %v3422 = vcvt.s32.f32 %v2942
        %v3423 = vcvt.s32.f32 %v2943
        %v3424 = vcvt.s32.f32 %v2944
        %v3425 = vcvt.s32.f32 %v2945
        %v3426 = vcvt.s32.f32 %v2946
        %v3427 = vcvt.s32.f32 %v2947
        %v3428 = vcvt.s32.f32 %v2948
        %v3429 = vcvt.s32.f32 %v2949
        %v3430 = vcvt.s32.f32 %v2950
        %v3431 = vcvt.s32.f32 %v2951
        %v3432 = vcvt.s32.f32 %v2952
        %v3433 = vcvt.s32.f32 %v2953
        %v3434 = vpack.c.bf16 %v2966, %v2954
        %v3435 = vpack.c.bf16 %v2967, %v2955
        %v3436 = vpack.c.bf16 %v2968, %v2956
        %v3437 = vpack.c.bf16 %v2969, %v2957
        %v3438 = vpack.c.bf16 %v2970, %v2958
        %v3439 = vpack.c.bf16 %v2971, %v2959
        %v3440 = vpack.c.bf16 %v2972, %v2960
        %v3441 = vpack.c.bf16 %v2973, %v2961
        %v3442 = vpack.c.bf16 %v2974, %v2962
        %v3443 = vpack.c.bf16 %v2975, %v2963
        %v3444 = vpack.c.bf16 %v2976, %v2964
        %v3445 = vpack.c.bf16 %v2977, %v2965
        %v3446 = vpack.c.bf16 %v2990, %v2978
        %v3447 = vpack.c.bf16 %v2991, %v2979
        %v3448 = vpack.c.bf16 %v2992, %v2980
        %v3449 = vpack.c.bf16 %v2993, %v2981
        %v3450 = vpack.c.bf16 %v2994, %v2982
        %v3451 = vpack.c.bf16 %v2995, %v2983
        %v3452 = vpack.c.bf16 %v2996, %v2984
        %v3453 = vpack.c.bf16 %v2997, %v2985
        %v3454 = vpack.c.bf16 %v2998, %v2986
        %v3455 = vpack.c.bf16 %v2999, %v2987
        %v3456 = vpack.c.bf16 %v3000, %v2988
        %v3457 = vpack.c.bf16 %v3001, %v2989
        %v3458 = vpack.c.bf16 %v3014, %v3002
        %v3459 = vpack.c.bf16 %v3015, %v3003
        %v3460 = vpack.c.bf16 %v3016, %v3004
        %v3461 = vpack.c.bf16 %v3017, %v3005
        %v3462 = vpack.c.bf16 %v3018, %v3006
        %v3463 = vpack.c.bf16 %v3019, %v3007
        %v3464 = vpack.c.bf16 %v3020, %v3008
        %v3465 = vpack.c.bf16 %v3021, %v3009
        %v3466 = vpack.c.bf16 %v3022, %v3010
        %v3467 = vpack.c.bf16 %v3023, %v3011
        %v3468 = vpack.c.bf16 %v3024, %v3012
        %v3469 = vpack.c.bf16 %v3025, %v3013
        %v3470 = vpack.c.bf16 %v3038, %v3026
        %v3471 = vpack.c.bf16 %v3039, %v3027
        %v3472 = vpack.c.bf16 %v3040, %v3028
        %v3473 = vpack.c.bf16 %v3041, %v3029
        %v3474 = vpack.c.bf16 %v3042, %v3030
        %v3475 = vpack.c.bf16 %v3043, %v3031
        %v3476 = vpack.c.bf16 %v3044, %v3032
        %v3477 = vpack.c.bf16 %v3045, %v3033
        %v3478 = vpack.c.bf16 %v3046, %v3034
        %v3479 = vpack.c.bf16 %v3047, %v3035
        %v3480 = vpack.c.bf16 %v3048, %v3036
        %v3481 = vpack.c.bf16 %v3049, %v3037
        %v3482 = vpack.c.bf16 %v3062, %v3050
        %v3483 = vpack.c.bf16 %v3063, %v3051
        %v3484 = vpack.c.bf16 %v3064, %v3052
        %v3485 = vpack.c.bf16 %v3065, %v3053
        %v3486 = vpack.c.bf16 %v3066, %v3054
        %v3487 = vpack.c.bf16 %v3067, %v3055
        %v3488 = vpack.c.bf16 %v3068, %v3056
        %v3489 = vpack.c.bf16 %v3069, %v3057
        %v3490 = vpack.c.bf16 %v3070, %v3058
        %v3491 = vpack.c.bf16 %v3071, %v3059
        %v3492 = vpack.c.bf16 %v3072, %v3060
        %v3493 = vpack.c.bf16 %v3073, %v3061
        %v3494 = vpack.c.bf16 %v3086, %v3074
        %v3495 = vpack.c.bf16 %v3087, %v3075
        %v3496 = vpack.c.bf16 %v3088, %v3076
        %v3497 = vpack.c.bf16 %v3089, %v3077
        %v3498 = vpack.c.bf16 %v3090, %v3078
        %v3499 = vpack.c.bf16 %v3091, %v3079
        %v3500 = vpack.c.bf16 %v3092, %v3080
        %v3501 = vpack.c.bf16 %v3093, %v3081
        %v3502 = vpack.c.bf16 %v3094, %v3082
        %v3503 = vpack.c.bf16 %v3095, %v3083
        %v3504 = vpack.c.bf16 %v3096, %v3084
        %v3505 = vpack.c.bf16 %v3097, %v3085
        %v3506 = vpack.c.bf16 %v3110, %v3098
        %v3507 = vpack.c.bf16 %v3111, %v3099
        %v3508 = vpack.c.bf16 %v3112, %v3100
        %v3509 = vpack.c.bf16 %v3113, %v3101
        %v3510 = vpack.c.bf16 %v3114, %v3102
        %v3511 = vpack.c.bf16 %v3115, %v3103
        %v3512 = vpack.c.bf16 %v3116, %v3104
        %v3513 = vpack.c.bf16 %v3117, %v3105
        %v3514 = vpack.c.bf16 %v3118, %v3106
        %v3515 = vpack.c.bf16 %v3119, %v3107
        %v3516 = vpack.c.bf16 %v3120, %v3108
        %v3517 = vpack.c.bf16 %v3121, %v3109
        %v3518 = vpack.c.bf16 %v3134, %v3122
        %v3519 = vpack.c.bf16 %v3135, %v3123
        %v3520 = vpack.c.bf16 %v3136, %v3124
        %v3521 = vpack.c.bf16 %v3137, %v3125
        %v3522 = vpack.c.bf16 %v3138, %v3126
        %v3523 = vpack.c.bf16 %v3139, %v3127
        %v3524 = vpack.c.bf16 %v3140, %v3128
        %v3525 = vpack.c.bf16 %v3141, %v3129
        %v3526 = vpack.c.bf16 %v3142, %v3130
        %v3527 = vpack.c.bf16 %v3143, %v3131
        %v3528 = vpack.c.bf16 %v3144, %v3132
        %v3529 = vpack.c.bf16 %v3145, %v3133
        %v3530 = vpack.c.bf16 %v3158, %v3146
        %v3531 = vpack.c.bf16 %v3159, %v3147
        %v3532 = vpack.c.bf16 %v3160, %v3148
        %v3533 = vpack.c.bf16 %v3161, %v3149
        %v3534 = vpack.c.bf16 %v3162, %v3150
        %v3535 = vpack.c.bf16 %v3163, %v3151
        %v3536 = vpack.c.bf16 %v3164, %v3152
        %v3537 = vpack.c.bf16 %v3165, %v3153
        %v3538 = vpack.c.bf16 %v3166, %v3154
        %v3539 = vpack.c.bf16 %v3167, %v3155
        %v3540 = vpack.c.bf16 %v3168, %v3156
        %v3541 = vpack.c.bf16 %v3169, %v3157
        %v3542 = vpack.c.bf16 %v3182, %v3170
        %v3543 = vpack.c.bf16 %v3183, %v3171
        %v3544 = vpack.c.bf16 %v3184, %v3172
        %v3545 = vpack.c.bf16 %v3185, %v3173
        %v3546 = vpack.c.bf16 %v3186, %v3174
        %v3547 = vpack.c.bf16 %v3187, %v3175
        %v3548 = vpack.c.bf16 %v3188, %v3176
        %v3549 = vpack.c.bf16 %v3189, %v3177
        %v3550 = vpack.c.bf16 %v3190, %v3178
        %v3551 = vpack.c.bf16 %v3191, %v3179
        %v3552 = vpack.c.bf16 %v3192, %v3180
        %v3553 = vpack.c.bf16 %v3193, %v3181
        %v3554 = vpack.c.bf16 %v3206, %v3194
        %v3555 = vpack.c.bf16 %v3207, %v3195
        %v3556 = vpack.c.bf16 %v3208, %v3196
        %v3557 = vpack.c.bf16 %v3209, %v3197
        %v3558 = vpack.c.bf16 %v3210, %v3198
        %v3559 = vpack.c.bf16 %v3211, %v3199
        %v3560 = vpack.c.bf16 %v3212, %v3200
        %v3561 = vpack.c.bf16 %v3213, %v3201
        %v3562 = vpack.c.bf16 %v3214, %v3202
        %v3563 = vpack.c.bf16 %v3215, %v3203
        %v3564 = vpack.c.bf16 %v3216, %v3204
        %v3565 = vpack.c.bf16 %v3217, %v3205
        %v3566 = vpack.c.bf16 %v3230, %v3218
        %v3567 = vpack.c.bf16 %v3231, %v3219
        %v3568 = vpack.c.bf16 %v3232, %v3220
        %v3569 = vpack.c.bf16 %v3233, %v3221
        %v3570 = vpack.c.bf16 %v3234, %v3222
        %v3571 = vpack.c.bf16 %v3235, %v3223
        %v3572 = vpack.c.bf16 %v3236, %v3224
        %v3573 = vpack.c.bf16 %v3237, %v3225
        %v3574 = vpack.c.bf16 %v3238, %v3226
        %v3575 = vpack.c.bf16 %v3239, %v3227
        %v3576 = vpack.c.bf16 %v3240, %v3228
        %v3577 = vpack.c.bf16 %v3241, %v3229
        %v3578 = vpack.c.bf16 %v3254, %v3242
        %v3579 = vpack.c.bf16 %v3255, %v3243
        %v3580 = vpack.c.bf16 %v3256, %v3244
        %v3581 = vpack.c.bf16 %v3257, %v3245
        %v3582 = vpack.c.bf16 %v3258, %v3246
        %v3583 = vpack.c.bf16 %v3259, %v3247
        %v3584 = vpack.c.bf16 %v3260, %v3248
        %v3585 = vpack.c.bf16 %v3261, %v3249
        %v3586 = vpack.c.bf16 %v3262, %v3250
        %v3587 = vpack.c.bf16 %v3263, %v3251
        %v3588 = vpack.c.bf16 %v3264, %v3252
        %v3589 = vpack.c.bf16 %v3265, %v3253
        %v3590 = vpack.c.bf16 %v3278, %v3266
        %v3591 = vpack.c.bf16 %v3279, %v3267
        %v3592 = vpack.c.bf16 %v3280, %v3268
        %v3593 = vpack.c.bf16 %v3281, %v3269
        %v3594 = vpack.c.bf16 %v3282, %v3270
        %v3595 = vpack.c.bf16 %v3283, %v3271
        %v3596 = vpack.c.bf16 %v3284, %v3272
        %v3597 = vpack.c.bf16 %v3285, %v3273
        %v3598 = vpack.c.bf16 %v3286, %v3274
        %v3599 = vpack.c.bf16 %v3287, %v3275
        %v3600 = vpack.c.bf16 %v3288, %v3276
        %v3601 = vpack.c.bf16 %v3289, %v3277
        %v3602 = vpack.c.bf16 %v3302, %v3290
        %v3603 = vpack.c.bf16 %v3303, %v3291
        %v3604 = vpack.c.bf16 %v3304, %v3292
        %v3605 = vpack.c.bf16 %v3305, %v3293
        %v3606 = vpack.c.bf16 %v3306, %v3294
        %v3607 = vpack.c.bf16 %v3307, %v3295
        %v3608 = vpack.c.bf16 %v3308, %v3296
        %v3609 = vpack.c.bf16 %v3309, %v3297
        %v3610 = vpack.c.bf16 %v3310, %v3298
        %v3611 = vpack.c.bf16 %v3311, %v3299
        %v3612 = vpack.c.bf16 %v3312, %v3300
        %v3613 = vpack.c.bf16 %v3313, %v3301
        %v3614 = vpack.c.bf16 %v3326, %v3314
        %v3615 = vpack.c.bf16 %v3327, %v3315
        %v3616 = vpack.c.bf16 %v3328, %v3316
        %v3617 = vpack.c.bf16 %v3329, %v3317
        %v3618 = vpack.c.bf16 %v3330, %v3318
        %v3619 = vpack.c.bf16 %v3331, %v3319
        %v3620 = vpack.c.bf16 %v3332, %v3320
        %v3621 = vpack.c.bf16 %v3333, %v3321
        %v3622 = vpack.c.bf16 %v3334, %v3322
        %v3623 = vpack.c.bf16 %v3335, %v3323
        %v3624 = vpack.c.bf16 %v3336, %v3324
        %v3625 = vpack.c.bf16 %v3337, %v3325
        %v3626 = vpack.c.bf16 %v3350, %v3338
        %v3627 = vpack.c.bf16 %v3351, %v3339
        %v3628 = vpack.c.bf16 %v3352, %v3340
        %v3629 = vpack.c.bf16 %v3353, %v3341
        %v3630 = vpack.c.bf16 %v3354, %v3342
        %v3631 = vpack.c.bf16 %v3355, %v3343
        %v3632 = vpack.c.bf16 %v3356, %v3344
        %v3633 = vpack.c.bf16 %v3357, %v3345
        %v3634 = vpack.c.bf16 %v3358, %v3346
        %v3635 = vpack.c.bf16 %v3359, %v3347
        %v3636 = vpack.c.bf16 %v3360, %v3348
        %v3637 = vpack.c.bf16 %v3361, %v3349
        %v3638 = vpack.c.bf16 %v3374, %v3362
        %v3639 = vpack.c.bf16 %v3375, %v3363
        %v3640 = vpack.c.bf16 %v3376, %v3364
        %v3641 = vpack.c.bf16 %v3377, %v3365
        %v3642 = vpack.c.bf16 %v3378, %v3366
        %v3643 = vpack.c.bf16 %v3379, %v3367
        %v3644 = vpack.c.bf16 %v3380, %v3368
        %v3645 = vpack.c.bf16 %v3381, %v3369
        %v3646 = vpack.c.bf16 %v3382, %v3370
        %v3647 = vpack.c.bf16 %v3383, %v3371
        %v3648 = vpack.c.bf16 %v3384, %v3372
        %v3649 = vpack.c.bf16 %v3385, %v3373
        %v3650 = vpack.c.bf16 %v3398, %v3386
        %v3651 = vpack.c.bf16 %v3399, %v3387
        %v3652 = vpack.c.bf16 %v3400, %v3388
        %v3653 = vpack.c.bf16 %v3401, %v3389
        %v3654 = vpack.c.bf16 %v3402, %v3390
        %v3655 = vpack.c.bf16 %v3403, %v3391
        %v3656 = vpack.c.bf16 %v3404, %v3392
        %v3657 = vpack.c.bf16 %v3405, %v3393
        %v3658 = vpack.c.bf16 %v3406, %v3394
        %v3659 = vpack.c.bf16 %v3407, %v3395
        %v3660 = vpack.c.bf16 %v3408, %v3396
        %v3661 = vpack.c.bf16 %v3409, %v3397
        %v3662 = vpack.c.bf16 %v3422, %v3410
        %v3663 = vpack.c.bf16 %v3423, %v3411
        %v3664 = vpack.c.bf16 %v3424, %v3412
        %v3665 = vpack.c.bf16 %v3425, %v3413
        %v3666 = vpack.c.bf16 %v3426, %v3414
        %v3667 = vpack.c.bf16 %v3427, %v3415
        %v3668 = vpack.c.bf16 %v3428, %v3416
        %v3669 = vpack.c.bf16 %v3429, %v3417
        %v3670 = vpack.c.bf16 %v3430, %v3418
        %v3671 = vpack.c.bf16 %v3431, %v3419
        %v3672 = vpack.c.bf16 %v3432, %v3420
        %v3673 = vpack.c.bf16 %v3433, %v3421
        %v3674 = vld [vmem:[#allocation5] sm:$0xff]
        %v3675 = vld [vmem:[#allocation5 + $0x8] sm:$0xf]
        %v3676 = vld [vmem:[#allocation5 + $0xc] sm:$0x11]
        %v3677 = vld [vmem:[#allocation5 + $0x14] sm:$0x1]
        %v3682 = vunpack.c.l.b16 %v3674
        %v3683 = vunpack.c.h.b16 %v3674
        %v3684 = vunpack.c.l.b16 %v3675
        %v3685 = vunpack.c.l.b16 %v3676
        %v3686 = vunpack.c.h.b16 %v3676
        %v3687 = vunpack.c.l.b16 %v3677
        %v3688 = vpack.c.b16 %v3685, %v3682
        %v3689 = vpack.c.b16 %v3686, %v3683
        %v3690 = vpack.c.b16 %v3687, %v3684
        %vm3693 = vcmask 523264
        %v3695 = vsel %vm3693, %v3690, 0
        %3697 = vmatpush.bf16.msra.mxu0 %v1826
        %3698 = vmatpush.bf16.msra.mxu0 %v1814
        %3699 = vmatpush.bf16.msra.mxu0 %v1802
        %3700 = vmatpush.bf16.msra.mxu0 %v1790
        %3701 = vmatpush.bf16.msra.mxu0 %v1778
        %3702 = vmatpush.bf16.msra.mxu0 %v1766
        %3703 = vmatpush.bf16.msra.mxu0 %v1754
        %3704 = vmatpush.bf16.msra.mxu0 %v1742
        %3705 = vmatmul.bf16.gmra.mxu0 %v3688
        %v3706 = vpop.f32.mrf.mxu0
        %v3707 = vadd.f32 0.0, %v3706
        %v3708 = vpop.f32.mrf.mxu0
        %v3709 = vadd.f32 0.0, %v3708
        %3710 = vdwg.mxu0
        %3711 = vmatpush.bf16.msra.mxu0 %v1922
        %3712 = vmatpush.bf16.msra.mxu0 %v1910
        %3713 = vmatpush.bf16.msra.mxu0 %v1898
        %3714 = vmatpush.bf16.msra.mxu0 %v1886
        %3715 = vmatpush.bf16.msra.mxu0 %v1874
        %3716 = vmatpush.bf16.msra.mxu0 %v1862
        %3717 = vmatpush.bf16.msra.mxu0 %v1850
        %3718 = vmatpush.bf16.msra.mxu0 %v1838
        %3719 = vmatmul.bf16.gmra.mxu0 %v3689
        %v3720 = vpop.f32.mrf.mxu0
        %v3721 = vadd.f32 %v3707, %v3720
        %v3722 = vpop.f32.mrf.mxu0
        %v3723 = vadd.f32 %v3709, %v3722
        %3724 = vdwg.mxu0
        %3725 = vmatpush.bf16.msra.mxu0 0
        %3726 = vmatpush.bf16.msra.mxu0 0
        %3727 = vmatpush.bf16.msra.mxu0 0
        %3728 = vmatpush.bf16.msra.mxu0 0
        %3729 = vmatpush.bf16.msra.mxu0 %v1970
        %3730 = vmatpush.bf16.msra.mxu0 %v1958
        %3731 = vmatpush.bf16.msra.mxu0 %v1946
        %3732 = vmatpush.bf16.msra.mxu0 %v1934
        %3733 = vmatmul.bf16.gmra.mxu0 %v3695
        %v3734 = vpop.f32.mrf.mxu0
        %v3735 = vadd.f32 %v3721, %v3734
        %v3736 = vpop.f32.mrf.mxu0
        %v3737 = vadd.f32 %v3723, %v3736
        %3738 = vdwg.mxu0
        %3739 = vmatpush.bf16.msra.mxu0 %v1827
        %3740 = vmatpush.bf16.msra.mxu0 %v1815
        %3741 = vmatpush.bf16.msra.mxu0 %v1803
        %3742 = vmatpush.bf16.msra.mxu0 %v1791
        %3743 = vmatpush.bf16.msra.mxu0 %v1779
        %3744 = vmatpush.bf16.msra.mxu0 %v1767
        %3745 = vmatpush.bf16.msra.mxu0 %v1755
        %3746 = vmatpush.bf16.msra.mxu0 %v1743
        %3747 = vmatmul.bf16.gmra.mxu0 %v3688
        %v3748 = vpop.f32.mrf.mxu0
        %v3749 = vadd.f32 0.0, %v3748
        %v3750 = vpop.f32.mrf.mxu0
        %v3751 = vadd.f32 0.0, %v3750
        %3752 = vdwg.mxu0
        %3753 = vmatpush.bf16.msra.mxu0 %v1923
        %3754 = vmatpush.bf16.msra.mxu0 %v1911
        %3755 = vmatpush.bf16.msra.mxu0 %v1899
        %3756 = vmatpush.bf16.msra.mxu0 %v1887
        %3757 = vmatpush.bf16.msra.mxu0 %v1875
        %3758 = vmatpush.bf16.msra.mxu0 %v1863
        %3759 = vmatpush.bf16.msra.mxu0 %v1851
        %3760 = vmatpush.bf16.msra.mxu0 %v1839
        %3761 = vmatmul.bf16.gmra.mxu0 %v3689
        %v3762 = vpop.f32.mrf.mxu0
        %v3763 = vadd.f32 %v3749, %v3762
        %v3764 = vpop.f32.mrf.mxu0
        %v3765 = vadd.f32 %v3751, %v3764
        %3766 = vdwg.mxu0
        %3767 = vmatpush.bf16.msra.mxu0 0
        %3768 = vmatpush.bf16.msra.mxu0 0
        %3769 = vmatpush.bf16.msra.mxu0 0
        %3770 = vmatpush.bf16.msra.mxu0 0
        %3771 = vmatpush.bf16.msra.mxu0 %v1971
        %3772 = vmatpush.bf16.msra.mxu0 %v1959
        %3773 = vmatpush.bf16.msra.mxu0 %v1947
        %3774 = vmatpush.bf16.msra.mxu0 %v1935
        %3775 = vmatmul.bf16.gmra.mxu0 %v3695
        %v3776 = vpop.f32.mrf.mxu0
        %v3777 = vadd.f32 %v3763, %v3776
        %v3778 = vpop.f32.mrf.mxu0
        %v3779 = vadd.f32 %v3765, %v3778
        %3780 = vdwg.mxu0
        %3781 = vmatpush.bf16.msra.mxu0 %v1828
        %3782 = vmatpush.bf16.msra.mxu0 %v1816
        %3783 = vmatpush.bf16.msra.mxu0 %v1804
        %3784 = vmatpush.bf16.msra.mxu0 %v1792
        %3785 = vmatpush.bf16.msra.mxu0 %v1780
        %3786 = vmatpush.bf16.msra.mxu0 %v1768
        %3787 = vmatpush.bf16.msra.mxu0 %v1756
        %3788 = vmatpush.bf16.msra.mxu0 %v1744
        %3789 = vmatmul.bf16.gmra.mxu0 %v3688
        %v3790 = vpop.f32.mrf.mxu0
        %v3791 = vadd.f32 0.0, %v3790
        %v3792 = vpop.f32.mrf.mxu0
        %v3793 = vadd.f32 0.0, %v3792
        %3794 = vdwg.mxu0
        %3795 = vmatpush.bf16.msra.mxu0 %v1924
        %3796 = vmatpush.bf16.msra.mxu0 %v1912
        %3797 = vmatpush.bf16.msra.mxu0 %v1900
        %3798 = vmatpush.bf16.msra.mxu0 %v1888
        %3799 = vmatpush.bf16.msra.mxu0 %v1876
        %3800 = vmatpush.bf16.msra.mxu0 %v1864
        %3801 = vmatpush.bf16.msra.mxu0 %v1852
        %3802 = vmatpush.bf16.msra.mxu0 %v1840
        %3803 = vmatmul.bf16.gmra.mxu0 %v3689
        %v3804 = vpop.f32.mrf.mxu0
        %v3805 = vadd.f32 %v3791, %v3804
        %v3806 = vpop.f32.mrf.mxu0
        %v3807 = vadd.f32 %v3793, %v3806
        %3808 = vdwg.mxu0
        %3809 = vmatpush.bf16.msra.mxu0 0
        %3810 = vmatpush.bf16.msra.mxu0 0
        %3811 = vmatpush.bf16.msra.mxu0 0
        %3812 = vmatpush.bf16.msra.mxu0 0
        %3813 = vmatpush.bf16.msra.mxu0 %v1972
        %3814 = vmatpush.bf16.msra.mxu0 %v1960
        %3815 = vmatpush.bf16.msra.mxu0 %v1948
        %3816 = vmatpush.bf16.msra.mxu0 %v1936
        %3817 = vmatmul.bf16.gmra.mxu0 %v3695
        %v3818 = vpop.f32.mrf.mxu0
        %v3819 = vadd.f32 %v3805, %v3818
        %v3820 = vpop.f32.mrf.mxu0
        %v3821 = vadd.f32 %v3807, %v3820
        %3822 = vdwg.mxu0
        %3823 = vmatpush.bf16.msra.mxu0 %v1829
        %3824 = vmatpush.bf16.msra.mxu0 %v1817
        %3825 = vmatpush.bf16.msra.mxu0 %v1805
        %3826 = vmatpush.bf16.msra.mxu0 %v1793
        %3827 = vmatpush.bf16.msra.mxu0 %v1781
        %3828 = vmatpush.bf16.msra.mxu0 %v1769
        %3829 = vmatpush.bf16.msra.mxu0 %v1757
        %3830 = vmatpush.bf16.msra.mxu0 %v1745
        %3831 = vmatmul.bf16.gmra.mxu0 %v3688
        %v3832 = vpop.f32.mrf.mxu0
        %v3833 = vadd.f32 0.0, %v3832
        %v3834 = vpop.f32.mrf.mxu0
        %v3835 = vadd.f32 0.0, %v3834
        %3836 = vdwg.mxu0
        %3837 = vmatpush.bf16.msra.mxu0 %v1925
        %3838 = vmatpush.bf16.msra.mxu0 %v1913
        %3839 = vmatpush.bf16.msra.mxu0 %v1901
        %3840 = vmatpush.bf16.msra.mxu0 %v1889
        %3841 = vmatpush.bf16.msra.mxu0 %v1877
        %3842 = vmatpush.bf16.msra.mxu0 %v1865
        %3843 = vmatpush.bf16.msra.mxu0 %v1853
        %3844 = vmatpush.bf16.msra.mxu0 %v1841
        %3845 = vmatmul.bf16.gmra.mxu0 %v3689
        %v3846 = vpop.f32.mrf.mxu0
        %v3847 = vadd.f32 %v3833, %v3846
        %v3848 = vpop.f32.mrf.mxu0
        %v3849 = vadd.f32 %v3835, %v3848
        %3850 = vdwg.mxu0
        %3851 = vmatpush.bf16.msra.mxu0 0
        %3852 = vmatpush.bf16.msra.mxu0 0
        %3853 = vmatpush.bf16.msra.mxu0 0
        %3854 = vmatpush.bf16.msra.mxu0 0
        %3855 = vmatpush.bf16.msra.mxu0 %v1973
        %3856 = vmatpush.bf16.msra.mxu0 %v1961
        %3857 = vmatpush.bf16.msra.mxu0 %v1949
        %3858 = vmatpush.bf16.msra.mxu0 %v1937
        %3859 = vmatmul.bf16.gmra.mxu0 %v3695
        %v3860 = vpop.f32.mrf.mxu0
        %v3861 = vadd.f32 %v3847, %v3860
        %v3862 = vpop.f32.mrf.mxu0
        %v3863 = vadd.f32 %v3849, %v3862
        %3864 = vdwg.mxu0
        %3865 = vmatpush.bf16.msra.mxu0 %v1830
        %3866 = vmatpush.bf16.msra.mxu0 %v1818
        %3867 = vmatpush.bf16.msra.mxu0 %v1806
        %3868 = vmatpush.bf16.msra.mxu0 %v1794
        %3869 = vmatpush.bf16.msra.mxu0 %v1782
        %3870 = vmatpush.bf16.msra.mxu0 %v1770
        %3871 = vmatpush.bf16.msra.mxu0 %v1758
        %3872 = vmatpush.bf16.msra.mxu0 %v1746
        %3873 = vmatmul.bf16.gmra.mxu0 %v3688
        %v3874 = vpop.f32.mrf.mxu0
        %v3875 = vadd.f32 0.0, %v3874
        %v3876 = vpop.f32.mrf.mxu0
        %v3877 = vadd.f32 0.0, %v3876
        %3878 = vdwg.mxu0
        %3879 = vmatpush.bf16.msra.mxu0 %v1926
        %3880 = vmatpush.bf16.msra.mxu0 %v1914
        %3881 = vmatpush.bf16.msra.mxu0 %v1902
        %3882 = vmatpush.bf16.msra.mxu0 %v1890
        %3883 = vmatpush.bf16.msra.mxu0 %v1878
        %3884 = vmatpush.bf16.msra.mxu0 %v1866
        %3885 = vmatpush.bf16.msra.mxu0 %v1854
        %3886 = vmatpush.bf16.msra.mxu0 %v1842
        %3887 = vmatmul.bf16.gmra.mxu0 %v3689
        %v3888 = vpop.f32.mrf.mxu0
        %v3889 = vadd.f32 %v3875, %v3888
        %v3890 = vpop.f32.mrf.mxu0
        %v3891 = vadd.f32 %v3877, %v3890
        %3892 = vdwg.mxu0
        %3893 = vmatpush.bf16.msra.mxu0 0
        %3894 = vmatpush.bf16.msra.mxu0 0
        %3895 = vmatpush.bf16.msra.mxu0 0
        %3896 = vmatpush.bf16.msra.mxu0 0
        %3897 = vmatpush.bf16.msra.mxu0 %v1974
        %3898 = vmatpush.bf16.msra.mxu0 %v1962
        %3899 = vmatpush.bf16.msra.mxu0 %v1950
        %3900 = vmatpush.bf16.msra.mxu0 %v1938
        %3901 = vmatmul.bf16.gmra.mxu0 %v3695
        %v3902 = vpop.f32.mrf.mxu0
        %v3903 = vadd.f32 %v3889, %v3902
        %v3904 = vpop.f32.mrf.mxu0
        %v3905 = vadd.f32 %v3891, %v3904
        %3906 = vdwg.mxu0
        %3907 = vmatpush.bf16.msra.mxu0 %v1831
        %3908 = vmatpush.bf16.msra.mxu0 %v1819
        %3909 = vmatpush.bf16.msra.mxu0 %v1807
        %3910 = vmatpush.bf16.msra.mxu0 %v1795
        %3911 = vmatpush.bf16.msra.mxu0 %v1783
        %3912 = vmatpush.bf16.msra.mxu0 %v1771
        %3913 = vmatpush.bf16.msra.mxu0 %v1759
        %3914 = vmatpush.bf16.msra.mxu0 %v1747
        %3915 = vmatmul.bf16.gmra.mxu0 %v3688
        %v3916 = vpop.f32.mrf.mxu0
        %v3917 = vadd.f32 0.0, %v3916
        %v3918 = vpop.f32.mrf.mxu0
        %v3919 = vadd.f32 0.0, %v3918
        %3920 = vdwg.mxu0
        %3921 = vmatpush.bf16.msra.mxu0 %v1927
        %3922 = vmatpush.bf16.msra.mxu0 %v1915
        %3923 = vmatpush.bf16.msra.mxu0 %v1903
        %3924 = vmatpush.bf16.msra.mxu0 %v1891
        %3925 = vmatpush.bf16.msra.mxu0 %v1879
        %3926 = vmatpush.bf16.msra.mxu0 %v1867
        %3927 = vmatpush.bf16.msra.mxu0 %v1855
        %3928 = vmatpush.bf16.msra.mxu0 %v1843
        %3929 = vmatmul.bf16.gmra.mxu0 %v3689
        %v3930 = vpop.f32.mrf.mxu0
        %v3931 = vadd.f32 %v3917, %v3930
        %v3932 = vpop.f32.mrf.mxu0
        %v3933 = vadd.f32 %v3919, %v3932
        %3934 = vdwg.mxu0
        %3935 = vmatpush.bf16.msra.mxu0 0
        %3936 = vmatpush.bf16.msra.mxu0 0
        %3937 = vmatpush.bf16.msra.mxu0 0
        %3938 = vmatpush.bf16.msra.mxu0 0
        %3939 = vmatpush.bf16.msra.mxu0 %v1975
        %3940 = vmatpush.bf16.msra.mxu0 %v1963
        %3941 = vmatpush.bf16.msra.mxu0 %v1951
        %3942 = vmatpush.bf16.msra.mxu0 %v1939
        %3943 = vmatmul.bf16.gmra.mxu0 %v3695
        %v3944 = vpop.f32.mrf.mxu0
        %v3945 = vadd.f32 %v3931, %v3944
        %v3946 = vpop.f32.mrf.mxu0
        %v3947 = vadd.f32 %v3933, %v3946
        %3948 = vdwg.mxu0
        %3949 = vmatpush.bf16.msra.mxu0 %v1832
        %3950 = vmatpush.bf16.msra.mxu0 %v1820
        %3951 = vmatpush.bf16.msra.mxu0 %v1808
        %3952 = vmatpush.bf16.msra.mxu0 %v1796
        %3953 = vmatpush.bf16.msra.mxu0 %v1784
        %3954 = vmatpush.bf16.msra.mxu0 %v1772
        %3955 = vmatpush.bf16.msra.mxu0 %v1760
        %3956 = vmatpush.bf16.msra.mxu0 %v1748
        %3957 = vmatmul.bf16.gmra.mxu0 %v3688
        %v3958 = vpop.f32.mrf.mxu0
        %v3959 = vadd.f32 0.0, %v3958
        %v3960 = vpop.f32.mrf.mxu0
        %v3961 = vadd.f32 0.0, %v3960
        %3962 = vdwg.mxu0
        %3963 = vmatpush.bf16.msra.mxu0 %v1928
        %3964 = vmatpush.bf16.msra.mxu0 %v1916
        %3965 = vmatpush.bf16.msra.mxu0 %v1904
        %3966 = vmatpush.bf16.msra.mxu0 %v1892
        %3967 = vmatpush.bf16.msra.mxu0 %v1880
        %3968 = vmatpush.bf16.msra.mxu0 %v1868
        %3969 = vmatpush.bf16.msra.mxu0 %v1856
        %3970 = vmatpush.bf16.msra.mxu0 %v1844
        %3971 = vmatmul.bf16.gmra.mxu0 %v3689
        %v3972 = vpop.f32.mrf.mxu0
        %v3973 = vadd.f32 %v3959, %v3972
        %v3974 = vpop.f32.mrf.mxu0
        %v3975 = vadd.f32 %v3961, %v3974
        %3976 = vdwg.mxu0
        %3977 = vmatpush.bf16.msra.mxu0 0
        %3978 = vmatpush.bf16.msra.mxu0 0
        %3979 = vmatpush.bf16.msra.mxu0 0
        %3980 = vmatpush.bf16.msra.mxu0 0
        %3981 = vmatpush.bf16.msra.mxu0 %v1976
        %3982 = vmatpush.bf16.msra.mxu0 %v1964
        %3983 = vmatpush.bf16.msra.mxu0 %v1952
        %3984 = vmatpush.bf16.msra.mxu0 %v1940
        %3985 = vmatmul.bf16.gmra.mxu0 %v3695
        %v3986 = vpop.f32.mrf.mxu0
        %v3987 = vadd.f32 %v3973, %v3986
        %v3988 = vpop.f32.mrf.mxu0
        %v3989 = vadd.f32 %v3975, %v3988
        %3990 = vdwg.mxu0
        %3991 = vmatpush.bf16.msra.mxu0 %v1833
        %3992 = vmatpush.bf16.msra.mxu0 %v1821
        %3993 = vmatpush.bf16.msra.mxu0 %v1809
        %3994 = vmatpush.bf16.msra.mxu0 %v1797
        %3995 = vmatpush.bf16.msra.mxu0 %v1785
        %3996 = vmatpush.bf16.msra.mxu0 %v1773
        %3997 = vmatpush.bf16.msra.mxu0 %v1761
        %3998 = vmatpush.bf16.msra.mxu0 %v1749
        %3999 = vmatmul.bf16.gmra.mxu0 %v3688
        %v4000 = vpop.f32.mrf.mxu0
        %v4001 = vadd.f32 0.0, %v4000
        %v4002 = vpop.f32.mrf.mxu0
        %v4003 = vadd.f32 0.0, %v4002
        %4004 = vdwg.mxu0
        %4005 = vmatpush.bf16.msra.mxu0 %v1929
        %4006 = vmatpush.bf16.msra.mxu0 %v1917
        %4007 = vmatpush.bf16.msra.mxu0 %v1905
        %4008 = vmatpush.bf16.msra.mxu0 %v1893
        %4009 = vmatpush.bf16.msra.mxu0 %v1881
        %4010 = vmatpush.bf16.msra.mxu0 %v1869
        %4011 = vmatpush.bf16.msra.mxu0 %v1857
        %4012 = vmatpush.bf16.msra.mxu0 %v1845
        %4013 = vmatmul.bf16.gmra.mxu0 %v3689
        %v4014 = vpop.f32.mrf.mxu0
        %v4015 = vadd.f32 %v4001, %v4014
        %v4016 = vpop.f32.mrf.mxu0
        %v4017 = vadd.f32 %v4003, %v4016
        %4018 = vdwg.mxu0
        %4019 = vmatpush.bf16.msra.mxu0 0
        %4020 = vmatpush.bf16.msra.mxu0 0
        %4021 = vmatpush.bf16.msra.mxu0 0
        %4022 = vmatpush.bf16.msra.mxu0 0
        %4023 = vmatpush.bf16.msra.mxu0 %v1977
        %4024 = vmatpush.bf16.msra.mxu0 %v1965
        %4025 = vmatpush.bf16.msra.mxu0 %v1953
        %4026 = vmatpush.bf16.msra.mxu0 %v1941
        %4027 = vmatmul.bf16.gmra.mxu0 %v3695
        %v4028 = vpop.f32.mrf.mxu0
        %v4029 = vadd.f32 %v4015, %v4028
        %v4030 = vpop.f32.mrf.mxu0
        %v4031 = vadd.f32 %v4017, %v4030
        %4032 = vdwg.mxu0
        %4033 = vmatpush.bf16.msra.mxu0 %v1834
        %4034 = vmatpush.bf16.msra.mxu0 %v1822
        %4035 = vmatpush.bf16.msra.mxu0 %v1810
        %4036 = vmatpush.bf16.msra.mxu0 %v1798
        %4037 = vmatpush.bf16.msra.mxu0 %v1786
        %4038 = vmatpush.bf16.msra.mxu0 %v1774
        %4039 = vmatpush.bf16.msra.mxu0 %v1762
        %4040 = vmatpush.bf16.msra.mxu0 %v1750
        %4041 = vmatmul.bf16.gmra.mxu0 %v3688
        %v4042 = vpop.f32.mrf.mxu0
        %v4043 = vadd.f32 0.0, %v4042
        %v4044 = vpop.f32.mrf.mxu0
        %v4045 = vadd.f32 0.0, %v4044
        %4046 = vdwg.mxu0
        %4047 = vmatpush.bf16.msra.mxu0 %v1930
        %4048 = vmatpush.bf16.msra.mxu0 %v1918
        %4049 = vmatpush.bf16.msra.mxu0 %v1906
        %4050 = vmatpush.bf16.msra.mxu0 %v1894
        %4051 = vmatpush.bf16.msra.mxu0 %v1882
        %4052 = vmatpush.bf16.msra.mxu0 %v1870
        %4053 = vmatpush.bf16.msra.mxu0 %v1858
        %4054 = vmatpush.bf16.msra.mxu0 %v1846
        %4055 = vmatmul.bf16.gmra.mxu0 %v3689
        %v4056 = vpop.f32.mrf.mxu0
        %v4057 = vadd.f32 %v4043, %v4056
        %v4058 = vpop.f32.mrf.mxu0
        %v4059 = vadd.f32 %v4045, %v4058
        %4060 = vdwg.mxu0
        %4061 = vmatpush.bf16.msra.mxu0 0
        %4062 = vmatpush.bf16.msra.mxu0 0
        %4063 = vmatpush.bf16.msra.mxu0 0
        %4064 = vmatpush.bf16.msra.mxu0 0
        %4065 = vmatpush.bf16.msra.mxu0 %v1978
        %4066 = vmatpush.bf16.msra.mxu0 %v1966
        %4067 = vmatpush.bf16.msra.mxu0 %v1954
        %4068 = vmatpush.bf16.msra.mxu0 %v1942
        %4069 = vmatmul.bf16.gmra.mxu0 %v3695
        %v4070 = vpop.f32.mrf.mxu0
        %v4071 = vadd.f32 %v4057, %v4070
        %v4072 = vpop.f32.mrf.mxu0
        %v4073 = vadd.f32 %v4059, %v4072
        %4074 = vdwg.mxu0
        %4075 = vmatpush.bf16.msra.mxu0 %v1835
        %4076 = vmatpush.bf16.msra.mxu0 %v1823
        %4077 = vmatpush.bf16.msra.mxu0 %v1811
        %4078 = vmatpush.bf16.msra.mxu0 %v1799
        %4079 = vmatpush.bf16.msra.mxu0 %v1787
        %4080 = vmatpush.bf16.msra.mxu0 %v1775
        %4081 = vmatpush.bf16.msra.mxu0 %v1763
        %4082 = vmatpush.bf16.msra.mxu0 %v1751
        %4083 = vmatmul.bf16.gmra.mxu0 %v3688
        %v4084 = vpop.f32.mrf.mxu0
        %v4085 = vadd.f32 0.0, %v4084
        %v4086 = vpop.f32.mrf.mxu0
        %v4087 = vadd.f32 0.0, %v4086
        %4088 = vdwg.mxu0
        %4089 = vmatpush.bf16.msra.mxu0 %v1931
        %4090 = vmatpush.bf16.msra.mxu0 %v1919
        %4091 = vmatpush.bf16.msra.mxu0 %v1907
        %4092 = vmatpush.bf16.msra.mxu0 %v1895
        %4093 = vmatpush.bf16.msra.mxu0 %v1883
        %4094 = vmatpush.bf16.msra.mxu0 %v1871
        %4095 = vmatpush.bf16.msra.mxu0 %v1859
        %4096 = vmatpush.bf16.msra.mxu0 %v1847
        %4097 = vmatmul.bf16.gmra.mxu0 %v3689
        %v4098 = vpop.f32.mrf.mxu0
        %v4099 = vadd.f32 %v4085, %v4098
        %v4100 = vpop.f32.mrf.mxu0
        %v4101 = vadd.f32 %v4087, %v4100
        %4102 = vdwg.mxu0
        %4103 = vmatpush.bf16.msra.mxu0 0
        %4104 = vmatpush.bf16.msra.mxu0 0
        %4105 = vmatpush.bf16.msra.mxu0 0
        %4106 = vmatpush.bf16.msra.mxu0 0
        %4107 = vmatpush.bf16.msra.mxu0 %v1979
        %4108 = vmatpush.bf16.msra.mxu0 %v1967
        %4109 = vmatpush.bf16.msra.mxu0 %v1955
        %4110 = vmatpush.bf16.msra.mxu0 %v1943
        %4111 = vmatmul.bf16.gmra.mxu0 %v3695
        %v4112 = vpop.f32.mrf.mxu0
        %v4113 = vadd.f32 %v4099, %v4112
        %v4114 = vpop.f32.mrf.mxu0
        %v4115 = vadd.f32 %v4101, %v4114
        %4116 = vdwg.mxu0
        %4117 = vmatpush.bf16.msra.mxu0 %v1836
        %4118 = vmatpush.bf16.msra.mxu0 %v1824
        %4119 = vmatpush.bf16.msra.mxu0 %v1812
        %4120 = vmatpush.bf16.msra.mxu0 %v1800
        %4121 = vmatpush.bf16.msra.mxu0 %v1788
        %4122 = vmatpush.bf16.msra.mxu0 %v1776
        %4123 = vmatpush.bf16.msra.mxu0 %v1764
        %4124 = vmatpush.bf16.msra.mxu0 %v1752
        %4125 = vmatmul.bf16.gmra.mxu0 %v3688
        %v4126 = vpop.f32.mrf.mxu0
        %v4127 = vadd.f32 0.0, %v4126
        %v4128 = vpop.f32.mrf.mxu0
        %v4129 = vadd.f32 0.0, %v4128
        %4130 = vdwg.mxu0
        %4131 = vmatpush.bf16.msra.mxu0 %v1932
        %4132 = vmatpush.bf16.msra.mxu0 %v1920
        %4133 = vmatpush.bf16.msra.mxu0 %v1908
        %4134 = vmatpush.bf16.msra.mxu0 %v1896
        %4135 = vmatpush.bf16.msra.mxu0 %v1884
        %4136 = vmatpush.bf16.msra.mxu0 %v1872
        %4137 = vmatpush.bf16.msra.mxu0 %v1860
        %4138 = vmatpush.bf16.msra.mxu0 %v1848
        %4139 = vmatmul.bf16.gmra.mxu0 %v3689
        %v4140 = vpop.f32.mrf.mxu0
        %v4141 = vadd.f32 %v4127, %v4140
        %v4142 = vpop.f32.mrf.mxu0
        %v4143 = vadd.f32 %v4129, %v4142
        %4144 = vdwg.mxu0
        %4145 = vmatpush.bf16.msra.mxu0 0
        %4146 = vmatpush.bf16.msra.mxu0 0
        %4147 = vmatpush.bf16.msra.mxu0 0
        %4148 = vmatpush.bf16.msra.mxu0 0
        %4149 = vmatpush.bf16.msra.mxu0 %v1980
        %4150 = vmatpush.bf16.msra.mxu0 %v1968
        %4151 = vmatpush.bf16.msra.mxu0 %v1956
        %4152 = vmatpush.bf16.msra.mxu0 %v1944
        %4153 = vmatmul.bf16.gmra.mxu0 %v3695
        %v4154 = vpop.f32.mrf.mxu0
        %v4155 = vadd.f32 %v4141, %v4154
        %v4156 = vpop.f32.mrf.mxu0
        %v4157 = vadd.f32 %v4143, %v4156
        %4158 = vdwg.mxu0
        %4159 = vmatpush.bf16.msra.mxu0 %v1837
        %4160 = vmatpush.bf16.msra.mxu0 %v1825
        %4161 = vmatpush.bf16.msra.mxu0 %v1813
        %4162 = vmatpush.bf16.msra.mxu0 %v1801
        %4163 = vmatpush.bf16.msra.mxu0 %v1789
        %4164 = vmatpush.bf16.msra.mxu0 %v1777
        %4165 = vmatpush.bf16.msra.mxu0 %v1765
        %4166 = vmatpush.bf16.msra.mxu0 %v1753
        %4167 = vmatmul.bf16.gmra.mxu0 %v3688
        %v4168 = vpop.f32.mrf.mxu0
        %v4169 = vadd.f32 0.0, %v4168
        %v4170 = vpop.f32.mrf.mxu0
        %v4171 = vadd.f32 0.0, %v4170
        %4172 = vdwg.mxu0
        %4173 = vmatpush.bf16.msra.mxu0 %v1933
        %4174 = vmatpush.bf16.msra.mxu0 %v1921
        %4175 = vmatpush.bf16.msra.mxu0 %v1909
        %4176 = vmatpush.bf16.msra.mxu0 %v1897
        %4177 = vmatpush.bf16.msra.mxu0 %v1885
        %4178 = vmatpush.bf16.msra.mxu0 %v1873
        %4179 = vmatpush.bf16.msra.mxu0 %v1861
        %4180 = vmatpush.bf16.msra.mxu0 %v1849
        %4181 = vmatmul.bf16.gmra.mxu0 %v3689
        %v4182 = vpop.f32.mrf.mxu0
        %v4183 = vadd.f32 %v4169, %v4182
        %v4184 = vpop.f32.mrf.mxu0
        %v4185 = vadd.f32 %v4171, %v4184
        %4186 = vdwg.mxu0
        %4187 = vmatpush.bf16.msra.mxu0 0
        %4188 = vmatpush.bf16.msra.mxu0 0
        %4189 = vmatpush.bf16.msra.mxu0 0
        %4190 = vmatpush.bf16.msra.mxu0 0
        %4191 = vmatpush.bf16.msra.mxu0 %v1981
        %4192 = vmatpush.bf16.msra.mxu0 %v1969
        %4193 = vmatpush.bf16.msra.mxu0 %v1957
        %4194 = vmatpush.bf16.msra.mxu0 %v1945
        %4195 = vmatmul.bf16.gmra.mxu0 %v3695
        %v4196 = vpop.f32.mrf.mxu0
        %v4197 = vadd.f32 %v4183, %v4196
        %v4198 = vpop.f32.mrf.mxu0
        %v4199 = vadd.f32 %v4185, %v4198
        %4200 = vdwg.mxu0
        %v4201 = vld [vmem:[#allocation7] sm:$0xff]
        %v4202 = vld [vmem:[#allocation7 + $0x8] sm:$0xf]
        %v4203 = vld [vmem:[#allocation7 + $0xc] sm:$0x11]
        %v4204 = vld [vmem:[#allocation7 + $0x14] sm:$0x1]
        %v4209 = vunpack.c.l.b16 %v4201
        %v4210 = vunpack.c.h.b16 %v4201
        %v4211 = vunpack.c.l.b16 %v4202
        %v4212 = vunpack.c.l.b16 %v4203
        %v4213 = vunpack.c.h.b16 %v4203
        %v4214 = vunpack.c.l.b16 %v4204
        %v4215 = vpack.c.b16 %v4212, %v4209
        %v4216 = vpack.c.b16 %v4213, %v4210
        %v4217 = vpack.c.b16 %v4214, %v4211
        %v4221 = vsel %vm3693, %v4217, 0
        %4223 = vmatpush.bf16.msra.mxu0 %v3518
        %4224 = vmatpush.bf16.msra.mxu0 %v3506
        %4225 = vmatpush.bf16.msra.mxu0 %v3494
        %4226 = vmatpush.bf16.msra.mxu0 %v3482
        %4227 = vmatpush.bf16.msra.mxu0 %v3470
        %4228 = vmatpush.bf16.msra.mxu0 %v3458
        %4229 = vmatpush.bf16.msra.mxu0 %v3446
        %4230 = vmatpush.bf16.msra.mxu0 %v3434
        %4231 = vmatmul.bf16.gmra.mxu0 %v4215
        %v4232 = vpop.f32.mrf.mxu0
        %v4233 = vadd.f32 0.0, %v4232
        %v4234 = vpop.f32.mrf.mxu0
        %v4235 = vadd.f32 0.0, %v4234
        %4236 = vdwg.mxu0
        %4237 = vmatpush.bf16.msra.mxu0 %v3614
        %4238 = vmatpush.bf16.msra.mxu0 %v3602
        %4239 = vmatpush.bf16.msra.mxu0 %v3590
        %4240 = vmatpush.bf16.msra.mxu0 %v3578
        %4241 = vmatpush.bf16.msra.mxu0 %v3566
        %4242 = vmatpush.bf16.msra.mxu0 %v3554
        %4243 = vmatpush.bf16.msra.mxu0 %v3542
        %4244 = vmatpush.bf16.msra.mxu0 %v3530
        %4245 = vmatmul.bf16.gmra.mxu0 %v4216
        %v4246 = vpop.f32.mrf.mxu0
        %v4247 = vadd.f32 %v4233, %v4246
        %v4248 = vpop.f32.mrf.mxu0
        %v4249 = vadd.f32 %v4235, %v4248
        %4250 = vdwg.mxu0
        %4251 = vmatpush.bf16.msra.mxu0 0
        %4252 = vmatpush.bf16.msra.mxu0 0
        %4253 = vmatpush.bf16.msra.mxu0 0
        %4254 = vmatpush.bf16.msra.mxu0 0
        %4255 = vmatpush.bf16.msra.mxu0 %v3662
        %4256 = vmatpush.bf16.msra.mxu0 %v3650
        %4257 = vmatpush.bf16.msra.mxu0 %v3638
        %4258 = vmatpush.bf16.msra.mxu0 %v3626
        %4259 = vmatmul.bf16.gmra.mxu0 %v4221
        %v4260 = vpop.f32.mrf.mxu0
        %v4261 = vadd.f32 %v4247, %v4260
        %v4262 = vpop.f32.mrf.mxu0
        %v4263 = vadd.f32 %v4249, %v4262
        %4264 = vdwg.mxu0
        %4265 = vmatpush.bf16.msra.mxu0 %v3519
        %4266 = vmatpush.bf16.msra.mxu0 %v3507
        %4267 = vmatpush.bf16.msra.mxu0 %v3495
        %4268 = vmatpush.bf16.msra.mxu0 %v3483
        %4269 = vmatpush.bf16.msra.mxu0 %v3471
        %4270 = vmatpush.bf16.msra.mxu0 %v3459
        %4271 = vmatpush.bf16.msra.mxu0 %v3447
        %4272 = vmatpush.bf16.msra.mxu0 %v3435
        %4273 = vmatmul.bf16.gmra.mxu0 %v4215
        %v4274 = vpop.f32.mrf.mxu0
        %v4275 = vadd.f32 0.0, %v4274
        %v4276 = vpop.f32.mrf.mxu0
        %v4277 = vadd.f32 0.0, %v4276
        %4278 = vdwg.mxu0
        %4279 = vmatpush.bf16.msra.mxu0 %v3615
        %4280 = vmatpush.bf16.msra.mxu0 %v3603
        %4281 = vmatpush.bf16.msra.mxu0 %v3591
        %4282 = vmatpush.bf16.msra.mxu0 %v3579
        %4283 = vmatpush.bf16.msra.mxu0 %v3567
        %4284 = vmatpush.bf16.msra.mxu0 %v3555
        %4285 = vmatpush.bf16.msra.mxu0 %v3543
        %4286 = vmatpush.bf16.msra.mxu0 %v3531
        %4287 = vmatmul.bf16.gmra.mxu0 %v4216
        %v4288 = vpop.f32.mrf.mxu0
        %v4289 = vadd.f32 %v4275, %v4288
        %v4290 = vpop.f32.mrf.mxu0
        %v4291 = vadd.f32 %v4277, %v4290
        %4292 = vdwg.mxu0
        %4293 = vmatpush.bf16.msra.mxu0 0
        %4294 = vmatpush.bf16.msra.mxu0 0
        %4295 = vmatpush.bf16.msra.mxu0 0
        %4296 = vmatpush.bf16.msra.mxu0 0
        %4297 = vmatpush.bf16.msra.mxu0 %v3663
        %4298 = vmatpush.bf16.msra.mxu0 %v3651
        %4299 = vmatpush.bf16.msra.mxu0 %v3639
        %4300 = vmatpush.bf16.msra.mxu0 %v3627
        %4301 = vmatmul.bf16.gmra.mxu0 %v4221
        %v4302 = vpop.f32.mrf.mxu0
        %v4303 = vadd.f32 %v4289, %v4302
        %v4304 = vpop.f32.mrf.mxu0
        %v4305 = vadd.f32 %v4291, %v4304
        %4306 = vdwg.mxu0
        %4307 = vmatpush.bf16.msra.mxu0 %v3520
        %4308 = vmatpush.bf16.msra.mxu0 %v3508
        %4309 = vmatpush.bf16.msra.mxu0 %v3496
        %4310 = vmatpush.bf16.msra.mxu0 %v3484
        %4311 = vmatpush.bf16.msra.mxu0 %v3472
        %4312 = vmatpush.bf16.msra.mxu0 %v3460
        %4313 = vmatpush.bf16.msra.mxu0 %v3448
        %4314 = vmatpush.bf16.msra.mxu0 %v3436
        %4315 = vmatmul.bf16.gmra.mxu0 %v4215
        %v4316 = vpop.f32.mrf.mxu0
        %v4317 = vadd.f32 0.0, %v4316
        %v4318 = vpop.f32.mrf.mxu0
        %v4319 = vadd.f32 0.0, %v4318
        %4320 = vdwg.mxu0
        %4321 = vmatpush.bf16.msra.mxu0 %v3616
        %4322 = vmatpush.bf16.msra.mxu0 %v3604
        %4323 = vmatpush.bf16.msra.mxu0 %v3592
        %4324 = vmatpush.bf16.msra.mxu0 %v3580
        %4325 = vmatpush.bf16.msra.mxu0 %v3568
        %4326 = vmatpush.bf16.msra.mxu0 %v3556
        %4327 = vmatpush.bf16.msra.mxu0 %v3544
        %4328 = vmatpush.bf16.msra.mxu0 %v3532
        %4329 = vmatmul.bf16.gmra.mxu0 %v4216
        %v4330 = vpop.f32.mrf.mxu0
        %v4331 = vadd.f32 %v4317, %v4330
        %v4332 = vpop.f32.mrf.mxu0
        %v4333 = vadd.f32 %v4319, %v4332
        %4334 = vdwg.mxu0
        %4335 = vmatpush.bf16.msra.mxu0 0
        %4336 = vmatpush.bf16.msra.mxu0 0
        %4337 = vmatpush.bf16.msra.mxu0 0
        %4338 = vmatpush.bf16.msra.mxu0 0
        %4339 = vmatpush.bf16.msra.mxu0 %v3664
        %4340 = vmatpush.bf16.msra.mxu0 %v3652
        %4341 = vmatpush.bf16.msra.mxu0 %v3640
        %4342 = vmatpush.bf16.msra.mxu0 %v3628
        %4343 = vmatmul.bf16.gmra.mxu0 %v4221
        %v4344 = vpop.f32.mrf.mxu0
        %v4345 = vadd.f32 %v4331, %v4344
        %v4346 = vpop.f32.mrf.mxu0
        %v4347 = vadd.f32 %v4333, %v4346
        %4348 = vdwg.mxu0
        %4349 = vmatpush.bf16.msra.mxu0 %v3521
        %4350 = vmatpush.bf16.msra.mxu0 %v3509
        %4351 = vmatpush.bf16.msra.mxu0 %v3497
        %4352 = vmatpush.bf16.msra.mxu0 %v3485
        %4353 = vmatpush.bf16.msra.mxu0 %v3473
        %4354 = vmatpush.bf16.msra.mxu0 %v3461
        %4355 = vmatpush.bf16.msra.mxu0 %v3449
        %4356 = vmatpush.bf16.msra.mxu0 %v3437
        %4357 = vmatmul.bf16.gmra.mxu0 %v4215
        %v4358 = vpop.f32.mrf.mxu0
        %v4359 = vadd.f32 0.0, %v4358
        %v4360 = vpop.f32.mrf.mxu0
        %v4361 = vadd.f32 0.0, %v4360
        %4362 = vdwg.mxu0
        %4363 = vmatpush.bf16.msra.mxu0 %v3617
        %4364 = vmatpush.bf16.msra.mxu0 %v3605
        %4365 = vmatpush.bf16.msra.mxu0 %v3593
        %4366 = vmatpush.bf16.msra.mxu0 %v3581
        %4367 = vmatpush.bf16.msra.mxu0 %v3569
        %4368 = vmatpush.bf16.msra.mxu0 %v3557
        %4369 = vmatpush.bf16.msra.mxu0 %v3545
        %4370 = vmatpush.bf16.msra.mxu0 %v3533
        %4371 = vmatmul.bf16.gmra.mxu0 %v4216
        %v4372 = vpop.f32.mrf.mxu0
        %v4373 = vadd.f32 %v4359, %v4372
        %v4374 = vpop.f32.mrf.mxu0
        %v4375 = vadd.f32 %v4361, %v4374
        %4376 = vdwg.mxu0
        %4377 = vmatpush.bf16.msra.mxu0 0
        %4378 = vmatpush.bf16.msra.mxu0 0
        %4379 = vmatpush.bf16.msra.mxu0 0
        %4380 = vmatpush.bf16.msra.mxu0 0
        %4381 = vmatpush.bf16.msra.mxu0 %v3665
        %4382 = vmatpush.bf16.msra.mxu0 %v3653
        %4383 = vmatpush.bf16.msra.mxu0 %v3641
        %4384 = vmatpush.bf16.msra.mxu0 %v3629
        %4385 = vmatmul.bf16.gmra.mxu0 %v4221
        %v4386 = vpop.f32.mrf.mxu0
        %v4387 = vadd.f32 %v4373, %v4386
        %v4388 = vpop.f32.mrf.mxu0
        %v4389 = vadd.f32 %v4375, %v4388
        %4390 = vdwg.mxu0
        %4391 = vmatpush.bf16.msra.mxu0 %v3522
        %4392 = vmatpush.bf16.msra.mxu0 %v3510
        %4393 = vmatpush.bf16.msra.mxu0 %v3498
        %4394 = vmatpush.bf16.msra.mxu0 %v3486
        %4395 = vmatpush.bf16.msra.mxu0 %v3474
        %4396 = vmatpush.bf16.msra.mxu0 %v3462
        %4397 = vmatpush.bf16.msra.mxu0 %v3450
        %4398 = vmatpush.bf16.msra.mxu0 %v3438
        %4399 = vmatmul.bf16.gmra.mxu0 %v4215
        %v4400 = vpop.f32.mrf.mxu0
        %v4401 = vadd.f32 0.0, %v4400
        %v4402 = vpop.f32.mrf.mxu0
        %v4403 = vadd.f32 0.0, %v4402
        %4404 = vdwg.mxu0
        %4405 = vmatpush.bf16.msra.mxu0 %v3618
        %4406 = vmatpush.bf16.msra.mxu0 %v3606
        %4407 = vmatpush.bf16.msra.mxu0 %v3594
        %4408 = vmatpush.bf16.msra.mxu0 %v3582
        %4409 = vmatpush.bf16.msra.mxu0 %v3570
        %4410 = vmatpush.bf16.msra.mxu0 %v3558
        %4411 = vmatpush.bf16.msra.mxu0 %v3546
        %4412 = vmatpush.bf16.msra.mxu0 %v3534
        %4413 = vmatmul.bf16.gmra.mxu0 %v4216
        %v4414 = vpop.f32.mrf.mxu0
        %v4415 = vadd.f32 %v4401, %v4414
        %v4416 = vpop.f32.mrf.mxu0
        %v4417 = vadd.f32 %v4403, %v4416
        %4418 = vdwg.mxu0
        %4419 = vmatpush.bf16.msra.mxu0 0
        %4420 = vmatpush.bf16.msra.mxu0 0
        %4421 = vmatpush.bf16.msra.mxu0 0
        %4422 = vmatpush.bf16.msra.mxu0 0
        %4423 = vmatpush.bf16.msra.mxu0 %v3666
        %4424 = vmatpush.bf16.msra.mxu0 %v3654
        %4425 = vmatpush.bf16.msra.mxu0 %v3642
        %4426 = vmatpush.bf16.msra.mxu0 %v3630
        %4427 = vmatmul.bf16.gmra.mxu0 %v4221
        %v4428 = vpop.f32.mrf.mxu0
        %v4429 = vadd.f32 %v4415, %v4428
        %v4430 = vpop.f32.mrf.mxu0
        %v4431 = vadd.f32 %v4417, %v4430
        %4432 = vdwg.mxu0
        %4433 = vmatpush.bf16.msra.mxu0 %v3523
        %4434 = vmatpush.bf16.msra.mxu0 %v3511
        %4435 = vmatpush.bf16.msra.mxu0 %v3499
        %4436 = vmatpush.bf16.msra.mxu0 %v3487
        %4437 = vmatpush.bf16.msra.mxu0 %v3475
        %4438 = vmatpush.bf16.msra.mxu0 %v3463
        %4439 = vmatpush.bf16.msra.mxu0 %v3451
        %4440 = vmatpush.bf16.msra.mxu0 %v3439
        %4441 = vmatmul.bf16.gmra.mxu0 %v4215
        %v4442 = vpop.f32.mrf.mxu0
        %v4443 = vadd.f32 0.0, %v4442
        %v4444 = vpop.f32.mrf.mxu0
        %v4445 = vadd.f32 0.0, %v4444
        %4446 = vdwg.mxu0
        %4447 = vmatpush.bf16.msra.mxu0 %v3619
        %4448 = vmatpush.bf16.msra.mxu0 %v3607
        %4449 = vmatpush.bf16.msra.mxu0 %v3595
        %4450 = vmatpush.bf16.msra.mxu0 %v3583
        %4451 = vmatpush.bf16.msra.mxu0 %v3571
        %4452 = vmatpush.bf16.msra.mxu0 %v3559
        %4453 = vmatpush.bf16.msra.mxu0 %v3547
        %4454 = vmatpush.bf16.msra.mxu0 %v3535
        %4455 = vmatmul.bf16.gmra.mxu0 %v4216
        %v4456 = vpop.f32.mrf.mxu0
        %v4457 = vadd.f32 %v4443, %v4456
        %v4458 = vpop.f32.mrf.mxu0
        %v4459 = vadd.f32 %v4445, %v4458
        %4460 = vdwg.mxu0
        %4461 = vmatpush.bf16.msra.mxu0 0
        %4462 = vmatpush.bf16.msra.mxu0 0
        %4463 = vmatpush.bf16.msra.mxu0 0
        %4464 = vmatpush.bf16.msra.mxu0 0
        %4465 = vmatpush.bf16.msra.mxu0 %v3667
        %4466 = vmatpush.bf16.msra.mxu0 %v3655
        %4467 = vmatpush.bf16.msra.mxu0 %v3643
        %4468 = vmatpush.bf16.msra.mxu0 %v3631
        %4469 = vmatmul.bf16.gmra.mxu0 %v4221
        %v4470 = vpop.f32.mrf.mxu0
        %v4471 = vadd.f32 %v4457, %v4470
        %v4472 = vpop.f32.mrf.mxu0
        %v4473 = vadd.f32 %v4459, %v4472
        %4474 = vdwg.mxu0
        %4475 = vmatpush.bf16.msra.mxu0 %v3524
        %4476 = vmatpush.bf16.msra.mxu0 %v3512
        %4477 = vmatpush.bf16.msra.mxu0 %v3500
        %4478 = vmatpush.bf16.msra.mxu0 %v3488
        %4479 = vmatpush.bf16.msra.mxu0 %v3476
        %4480 = vmatpush.bf16.msra.mxu0 %v3464
        %4481 = vmatpush.bf16.msra.mxu0 %v3452
        %4482 = vmatpush.bf16.msra.mxu0 %v3440
        %4483 = vmatmul.bf16.gmra.mxu0 %v4215
        %v4484 = vpop.f32.mrf.mxu0
        %v4485 = vadd.f32 0.0, %v4484
        %v4486 = vpop.f32.mrf.mxu0
        %v4487 = vadd.f32 0.0, %v4486
        %4488 = vdwg.mxu0
        %4489 = vmatpush.bf16.msra.mxu0 %v3620
        %4490 = vmatpush.bf16.msra.mxu0 %v3608
        %4491 = vmatpush.bf16.msra.mxu0 %v3596
        %4492 = vmatpush.bf16.msra.mxu0 %v3584
        %4493 = vmatpush.bf16.msra.mxu0 %v3572
        %4494 = vmatpush.bf16.msra.mxu0 %v3560
        %4495 = vmatpush.bf16.msra.mxu0 %v3548
        %4496 = vmatpush.bf16.msra.mxu0 %v3536
        %4497 = vmatmul.bf16.gmra.mxu0 %v4216
        %v4498 = vpop.f32.mrf.mxu0
        %v4499 = vadd.f32 %v4485, %v4498
        %v4500 = vpop.f32.mrf.mxu0
        %v4501 = vadd.f32 %v4487, %v4500
        %4502 = vdwg.mxu0
        %4503 = vmatpush.bf16.msra.mxu0 0
        %4504 = vmatpush.bf16.msra.mxu0 0
        %4505 = vmatpush.bf16.msra.mxu0 0
        %4506 = vmatpush.bf16.msra.mxu0 0
        %4507 = vmatpush.bf16.msra.mxu0 %v3668
        %4508 = vmatpush.bf16.msra.mxu0 %v3656
        %4509 = vmatpush.bf16.msra.mxu0 %v3644
        %4510 = vmatpush.bf16.msra.mxu0 %v3632
        %4511 = vmatmul.bf16.gmra.mxu0 %v4221
        %v4512 = vpop.f32.mrf.mxu0
        %v4513 = vadd.f32 %v4499, %v4512
        %v4514 = vpop.f32.mrf.mxu0
        %v4515 = vadd.f32 %v4501, %v4514
        %4516 = vdwg.mxu0
        %4517 = vmatpush.bf16.msra.mxu0 %v3525
        %4518 = vmatpush.bf16.msra.mxu0 %v3513
        %4519 = vmatpush.bf16.msra.mxu0 %v3501
        %4520 = vmatpush.bf16.msra.mxu0 %v3489
        %4521 = vmatpush.bf16.msra.mxu0 %v3477
        %4522 = vmatpush.bf16.msra.mxu0 %v3465
        %4523 = vmatpush.bf16.msra.mxu0 %v3453
        %4524 = vmatpush.bf16.msra.mxu0 %v3441
        %4525 = vmatmul.bf16.gmra.mxu0 %v4215
        %v4526 = vpop.f32.mrf.mxu0
        %v4527 = vadd.f32 0.0, %v4526
        %v4528 = vpop.f32.mrf.mxu0
        %v4529 = vadd.f32 0.0, %v4528
        %4530 = vdwg.mxu0
        %4531 = vmatpush.bf16.msra.mxu0 %v3621
        %4532 = vmatpush.bf16.msra.mxu0 %v3609
        %4533 = vmatpush.bf16.msra.mxu0 %v3597
        %4534 = vmatpush.bf16.msra.mxu0 %v3585
        %4535 = vmatpush.bf16.msra.mxu0 %v3573
        %4536 = vmatpush.bf16.msra.mxu0 %v3561
        %4537 = vmatpush.bf16.msra.mxu0 %v3549
        %4538 = vmatpush.bf16.msra.mxu0 %v3537
        %4539 = vmatmul.bf16.gmra.mxu0 %v4216
        %v4540 = vpop.f32.mrf.mxu0
        %v4541 = vadd.f32 %v4527, %v4540
        %v4542 = vpop.f32.mrf.mxu0
        %v4543 = vadd.f32 %v4529, %v4542
        %4544 = vdwg.mxu0
        %4545 = vmatpush.bf16.msra.mxu0 0
        %4546 = vmatpush.bf16.msra.mxu0 0
        %4547 = vmatpush.bf16.msra.mxu0 0
        %4548 = vmatpush.bf16.msra.mxu0 0
        %4549 = vmatpush.bf16.msra.mxu0 %v3669
        %4550 = vmatpush.bf16.msra.mxu0 %v3657
        %4551 = vmatpush.bf16.msra.mxu0 %v3645
        %4552 = vmatpush.bf16.msra.mxu0 %v3633
        %4553 = vmatmul.bf16.gmra.mxu0 %v4221
        %v4554 = vpop.f32.mrf.mxu0
        %v4555 = vadd.f32 %v4541, %v4554
        %v4556 = vpop.f32.mrf.mxu0
        %v4557 = vadd.f32 %v4543, %v4556
        %4558 = vdwg.mxu0
        %4559 = vmatpush.bf16.msra.mxu0 %v3526
        %4560 = vmatpush.bf16.msra.mxu0 %v3514
        %4561 = vmatpush.bf16.msra.mxu0 %v3502
        %4562 = vmatpush.bf16.msra.mxu0 %v3490
        %4563 = vmatpush.bf16.msra.mxu0 %v3478
        %4564 = vmatpush.bf16.msra.mxu0 %v3466
        %4565 = vmatpush.bf16.msra.mxu0 %v3454
        %4566 = vmatpush.bf16.msra.mxu0 %v3442
        %4567 = vmatmul.bf16.gmra.mxu0 %v4215
        %v4568 = vpop.f32.mrf.mxu0
        %v4569 = vadd.f32 0.0, %v4568
        %v4570 = vpop.f32.mrf.mxu0
        %v4571 = vadd.f32 0.0, %v4570
        %4572 = vdwg.mxu0
        %4573 = vmatpush.bf16.msra.mxu0 %v3622
        %4574 = vmatpush.bf16.msra.mxu0 %v3610
        %4575 = vmatpush.bf16.msra.mxu0 %v3598
        %4576 = vmatpush.bf16.msra.mxu0 %v3586
        %4577 = vmatpush.bf16.msra.mxu0 %v3574
        %4578 = vmatpush.bf16.msra.mxu0 %v3562
        %4579 = vmatpush.bf16.msra.mxu0 %v3550
        %4580 = vmatpush.bf16.msra.mxu0 %v3538
        %4581 = vmatmul.bf16.gmra.mxu0 %v4216
        %v4582 = vpop.f32.mrf.mxu0
        %v4583 = vadd.f32 %v4569, %v4582
        %v4584 = vpop.f32.mrf.mxu0
        %v4585 = vadd.f32 %v4571, %v4584
        %4586 = vdwg.mxu0
        %4587 = vmatpush.bf16.msra.mxu0 0
        %4588 = vmatpush.bf16.msra.mxu0 0
        %4589 = vmatpush.bf16.msra.mxu0 0
        %4590 = vmatpush.bf16.msra.mxu0 0
        %4591 = vmatpush.bf16.msra.mxu0 %v3670
        %4592 = vmatpush.bf16.msra.mxu0 %v3658
        %4593 = vmatpush.bf16.msra.mxu0 %v3646
        %4594 = vmatpush.bf16.msra.mxu0 %v3634
        %4595 = vmatmul.bf16.gmra.mxu0 %v4221
        %v4596 = vpop.f32.mrf.mxu0
        %v4597 = vadd.f32 %v4583, %v4596
        %v4598 = vpop.f32.mrf.mxu0
        %v4599 = vadd.f32 %v4585, %v4598
        %4600 = vdwg.mxu0
        %4601 = vmatpush.bf16.msra.mxu0 %v3527
        %4602 = vmatpush.bf16.msra.mxu0 %v3515
        %4603 = vmatpush.bf16.msra.mxu0 %v3503
        %4604 = vmatpush.bf16.msra.mxu0 %v3491
        %4605 = vmatpush.bf16.msra.mxu0 %v3479
        %4606 = vmatpush.bf16.msra.mxu0 %v3467
        %4607 = vmatpush.bf16.msra.mxu0 %v3455
        %4608 = vmatpush.bf16.msra.mxu0 %v3443
        %4609 = vmatmul.bf16.gmra.mxu0 %v4215
        %v4610 = vpop.f32.mrf.mxu0
        %v4611 = vadd.f32 0.0, %v4610
        %v4612 = vpop.f32.mrf.mxu0
        %v4613 = vadd.f32 0.0, %v4612
        %4614 = vdwg.mxu0
        %4615 = vmatpush.bf16.msra.mxu0 %v3623
        %4616 = vmatpush.bf16.msra.mxu0 %v3611
        %4617 = vmatpush.bf16.msra.mxu0 %v3599
        %4618 = vmatpush.bf16.msra.mxu0 %v3587
        %4619 = vmatpush.bf16.msra.mxu0 %v3575
        %4620 = vmatpush.bf16.msra.mxu0 %v3563
        %4621 = vmatpush.bf16.msra.mxu0 %v3551
        %4622 = vmatpush.bf16.msra.mxu0 %v3539
        %4623 = vmatmul.bf16.gmra.mxu0 %v4216
        %v4624 = vpop.f32.mrf.mxu0
        %v4625 = vadd.f32 %v4611, %v4624
        %v4626 = vpop.f32.mrf.mxu0
        %v4627 = vadd.f32 %v4613, %v4626
        %4628 = vdwg.mxu0
        %4629 = vmatpush.bf16.msra.mxu0 0
        %4630 = vmatpush.bf16.msra.mxu0 0
        %4631 = vmatpush.bf16.msra.mxu0 0
        %4632 = vmatpush.bf16.msra.mxu0 0
        %4633 = vmatpush.bf16.msra.mxu0 %v3671
        %4634 = vmatpush.bf16.msra.mxu0 %v3659
        %4635 = vmatpush.bf16.msra.mxu0 %v3647
        %4636 = vmatpush.bf16.msra.mxu0 %v3635
        %4637 = vmatmul.bf16.gmra.mxu0 %v4221
        %v4638 = vpop.f32.mrf.mxu0
        %v4639 = vadd.f32 %v4625, %v4638
        %v4640 = vpop.f32.mrf.mxu0
        %v4641 = vadd.f32 %v4627, %v4640
        %4642 = vdwg.mxu0
        %4643 = vmatpush.bf16.msra.mxu0 %v3528
        %4644 = vmatpush.bf16.msra.mxu0 %v3516
        %4645 = vmatpush.bf16.msra.mxu0 %v3504
        %4646 = vmatpush.bf16.msra.mxu0 %v3492
        %4647 = vmatpush.bf16.msra.mxu0 %v3480
        %4648 = vmatpush.bf16.msra.mxu0 %v3468
        %4649 = vmatpush.bf16.msra.mxu0 %v3456
        %4650 = vmatpush.bf16.msra.mxu0 %v3444
        %4651 = vmatmul.bf16.gmra.mxu0 %v4215
        %v4652 = vpop.f32.mrf.mxu0
        %v4653 = vadd.f32 0.0, %v4652
        %v4654 = vpop.f32.mrf.mxu0
        %v4655 = vadd.f32 0.0, %v4654
        %4656 = vdwg.mxu0
        %4657 = vmatpush.bf16.msra.mxu0 %v3624
        %4658 = vmatpush.bf16.msra.mxu0 %v3612
        %4659 = vmatpush.bf16.msra.mxu0 %v3600
        %4660 = vmatpush.bf16.msra.mxu0 %v3588
        %4661 = vmatpush.bf16.msra.mxu0 %v3576
        %4662 = vmatpush.bf16.msra.mxu0 %v3564
        %4663 = vmatpush.bf16.msra.mxu0 %v3552
        %4664 = vmatpush.bf16.msra.mxu0 %v3540
        %4665 = vmatmul.bf16.gmra.mxu0 %v4216
        %v4666 = vpop.f32.mrf.mxu0
        %v4667 = vadd.f32 %v4653, %v4666
        %v4668 = vpop.f32.mrf.mxu0
        %v4669 = vadd.f32 %v4655, %v4668
        %4670 = vdwg.mxu0
        %4671 = vmatpush.bf16.msra.mxu0 0
        %4672 = vmatpush.bf16.msra.mxu0 0
        %4673 = vmatpush.bf16.msra.mxu0 0
        %4674 = vmatpush.bf16.msra.mxu0 0
        %4675 = vmatpush.bf16.msra.mxu0 %v3672
        %4676 = vmatpush.bf16.msra.mxu0 %v3660
        %4677 = vmatpush.bf16.msra.mxu0 %v3648
        %4678 = vmatpush.bf16.msra.mxu0 %v3636
        %4679 = vmatmul.bf16.gmra.mxu0 %v4221
        %v4680 = vpop.f32.mrf.mxu0
        %v4681 = vadd.f32 %v4667, %v4680
        %v4682 = vpop.f32.mrf.mxu0
        %v4683 = vadd.f32 %v4669, %v4682
        %4684 = vdwg.mxu0
        %4685 = vmatpush.bf16.msra.mxu0 %v3529
        %4686 = vmatpush.bf16.msra.mxu0 %v3517
        %4687 = vmatpush.bf16.msra.mxu0 %v3505
        %4688 = vmatpush.bf16.msra.mxu0 %v3493
        %4689 = vmatpush.bf16.msra.mxu0 %v3481
        %4690 = vmatpush.bf16.msra.mxu0 %v3469
        %4691 = vmatpush.bf16.msra.mxu0 %v3457
        %4692 = vmatpush.bf16.msra.mxu0 %v3445
        %4693 = vmatmul.bf16.gmra.mxu0 %v4215
        %v4694 = vpop.f32.mrf.mxu0
        %v4695 = vadd.f32 0.0, %v4694
        %v4696 = vpop.f32.mrf.mxu0
        %v4697 = vadd.f32 0.0, %v4696
        %4698 = vdwg.mxu0
        %4699 = vmatpush.bf16.msra.mxu0 %v3625
        %4700 = vmatpush.bf16.msra.mxu0 %v3613
        %4701 = vmatpush.bf16.msra.mxu0 %v3601
        %4702 = vmatpush.bf16.msra.mxu0 %v3589
        %4703 = vmatpush.bf16.msra.mxu0 %v3577
        %4704 = vmatpush.bf16.msra.mxu0 %v3565
        %4705 = vmatpush.bf16.msra.mxu0 %v3553
        %4706 = vmatpush.bf16.msra.mxu0 %v3541
        %4707 = vmatmul.bf16.gmra.mxu0 %v4216
        %v4708 = vpop.f32.mrf.mxu0
        %v4709 = vadd.f32 %v4695, %v4708
        %v4710 = vpop.f32.mrf.mxu0
        %v4711 = vadd.f32 %v4697, %v4710
        %4712 = vdwg.mxu0
        %4713 = vmatpush.bf16.msra.mxu0 0
        %4714 = vmatpush.bf16.msra.mxu0 0
        %4715 = vmatpush.bf16.msra.mxu0 0
        %4716 = vmatpush.bf16.msra.mxu0 0
        %4717 = vmatpush.bf16.msra.mxu0 %v3673
        %4718 = vmatpush.bf16.msra.mxu0 %v3661
        %4719 = vmatpush.bf16.msra.mxu0 %v3649
        %4720 = vmatpush.bf16.msra.mxu0 %v3637
        %4721 = vmatmul.bf16.gmra.mxu0 %v4221
        %v4722 = vpop.f32.mrf.mxu0
        %v4723 = vadd.f32 %v4709, %v4722
        %v4724 = vpop.f32.mrf.mxu0
        %v4725 = vadd.f32 %v4711, %v4724
        %4726 = vdwg.mxu0
        %v4739 = vrot.slane %v3735, 3
        %v4740 = vrot.slane %v3777, 3
        %v4741 = vrot.slane %v3819, 3
        %v4742 = vrot.slane %v3861, 3
        %v4743 = vrot.slane %v3903, 3
        %v4744 = vrot.slane %v3945, 3
        %v4745 = vrot.slane %v3987, 3
        %v4746 = vrot.slane %v4029, 3
        %v4747 = vrot.slane %v4071, 3
        %v4748 = vrot.slane %v4113, 3
        %v4749 = vrot.slane %v4155, 3
        %v4750 = vrot.slane %v4197, 3
        %v4763 = vadd.f32 %v3735, %v4739
        %v4764 = vadd.f32 %v3777, %v4740
        %v4765 = vadd.f32 %v3819, %v4741
        %v4766 = vadd.f32 %v3861, %v4742
        %v4767 = vadd.f32 %v3903, %v4743
        %v4768 = vadd.f32 %v3945, %v4744
        %v4769 = vadd.f32 %v3987, %v4745
        %v4770 = vadd.f32 %v4029, %v4746
        %v4771 = vadd.f32 %v4071, %v4747
        %v4772 = vadd.f32 %v4113, %v4748
        %v4773 = vadd.f32 %v4155, %v4749
        %v4774 = vadd.f32 %v4197, %v4750
        %vm4787 = vcmask 1041408
        %v4788 = vrot.slane %v3735, 6
        %v4789 = vrot.slane %v3737, 6
        %v4790 = vsel %vm4787, %v4788, %v4789
        %v4791 = vrot.slane %v3777, 6
        %v4792 = vrot.slane %v3779, 6
        %v4793 = vsel %vm4787, %v4791, %v4792
        %v4794 = vrot.slane %v3819, 6
        %v4795 = vrot.slane %v3821, 6
        %v4796 = vsel %vm4787, %v4794, %v4795
        %v4797 = vrot.slane %v3861, 6
        %v4798 = vrot.slane %v3863, 6
        %v4799 = vsel %vm4787, %v4797, %v4798
        %v4800 = vrot.slane %v3903, 6
        %v4801 = vrot.slane %v3905, 6
        %v4802 = vsel %vm4787, %v4800, %v4801
        %v4803 = vrot.slane %v3945, 6
        %v4804 = vrot.slane %v3947, 6
        %v4805 = vsel %vm4787, %v4803, %v4804
        %v4806 = vrot.slane %v3987, 6
        %v4807 = vrot.slane %v3989, 6
        %v4808 = vsel %vm4787, %v4806, %v4807
        %v4809 = vrot.slane %v4029, 6
        %v4810 = vrot.slane %v4031, 6
        %v4811 = vsel %vm4787, %v4809, %v4810
        %v4812 = vrot.slane %v4071, 6
        %v4813 = vrot.slane %v4073, 6
        %v4814 = vsel %vm4787, %v4812, %v4813
        %v4815 = vrot.slane %v4113, 6
        %v4816 = vrot.slane %v4115, 6
        %v4817 = vsel %vm4787, %v4815, %v4816
        %v4818 = vrot.slane %v4155, 6
        %v4819 = vrot.slane %v4157, 6
        %v4820 = vsel %vm4787, %v4818, %v4819
        %v4821 = vrot.slane %v4197, 6
        %v4822 = vrot.slane %v4199, 6
        %v4823 = vsel %vm4787, %v4821, %v4822
        %v4836 = vadd.f32 %v4763, %v4790
        %v4837 = vadd.f32 %v4764, %v4793
        %v4838 = vadd.f32 %v4765, %v4796
        %v4839 = vadd.f32 %v4766, %v4799
        %v4840 = vadd.f32 %v4767, %v4802
        %v4841 = vadd.f32 %v4768, %v4805
        %v4842 = vadd.f32 %v4769, %v4808
        %v4843 = vadd.f32 %v4770, %v4811
        %v4844 = vadd.f32 %v4771, %v4814
        %v4845 = vadd.f32 %v4772, %v4817
        %v4846 = vadd.f32 %v4773, %v4820
        %v4847 = vadd.f32 %v4774, %v4823
        %4848 = vst [vmem:[%s221] sm:$0x7] %v4836
        %4849 = vst [vmem:[%s221 + $0x8] sm:$0x7] %v4837
        %4850 = vst [vmem:[%s221 + $0x10] sm:$0x7] %v4838
        %4851 = vst [vmem:[%s221 + $0x18] sm:$0x7] %v4839
        %4852 = vst [vmem:[%s221 + $0x20] sm:$0x7] %v4840
        %4853 = vst [vmem:[%s221 + $0x28] sm:$0x7] %v4841
        %4854 = vst [vmem:[%s221 + $0x30] sm:$0x7] %v4842
        %4855 = vst [vmem:[%s221 + $0x38] sm:$0x7] %v4843
        %4856 = vst [vmem:[%s221 + $0x40] sm:$0x7] %v4844
        %4857 = vst [vmem:[%s221 + $0x48] sm:$0x7] %v4845
        %4858 = vst [vmem:[%s221 + $0x50] sm:$0x7] %v4846
        %4859 = vst [vmem:[%s221 + $0x58] sm:$0x7] %v4847
        %v4872 = vrot.slane %v4261, 3
        %v4873 = vrot.slane %v4303, 3
        %v4874 = vrot.slane %v4345, 3
        %v4875 = vrot.slane %v4387, 3
        %v4876 = vrot.slane %v4429, 3
        %v4877 = vrot.slane %v4471, 3
        %v4878 = vrot.slane %v4513, 3
        %v4879 = vrot.slane %v4555, 3
        %v4880 = vrot.slane %v4597, 3
        %v4881 = vrot.slane %v4639, 3
        %v4882 = vrot.slane %v4681, 3
        %v4883 = vrot.slane %v4723, 3
        %v4896 = vadd.f32 %v4261, %v4872
        %v4897 = vadd.f32 %v4303, %v4873
        %v4898 = vadd.f32 %v4345, %v4874
        %v4899 = vadd.f32 %v4387, %v4875
        %v4900 = vadd.f32 %v4429, %v4876
        %v4901 = vadd.f32 %v4471, %v4877
        %v4902 = vadd.f32 %v4513, %v4878
        %v4903 = vadd.f32 %v4555, %v4879
        %v4904 = vadd.f32 %v4597, %v4880
        %v4905 = vadd.f32 %v4639, %v4881
        %v4906 = vadd.f32 %v4681, %v4882
        %v4907 = vadd.f32 %v4723, %v4883
        %v4920 = vrot.slane %v4261, 6
        %v4921 = vrot.slane %v4263, 6
        %v4922 = vsel %vm4787, %v4920, %v4921
        %v4923 = vrot.slane %v4303, 6
        %v4924 = vrot.slane %v4305, 6
        %v4925 = vsel %vm4787, %v4923, %v4924
        %v4926 = vrot.slane %v4345, 6
        %v4927 = vrot.slane %v4347, 6
        %v4928 = vsel %vm4787, %v4926, %v4927
        %v4929 = vrot.slane %v4387, 6
        %v4930 = vrot.slane %v4389, 6
        %v4931 = vsel %vm4787, %v4929, %v4930
        %v4932 = vrot.slane %v4429, 6
        %v4933 = vrot.slane %v4431, 6
        %v4934 = vsel %vm4787, %v4932, %v4933
        %v4935 = vrot.slane %v4471, 6
        %v4936 = vrot.slane %v4473, 6
        %v4937 = vsel %vm4787, %v4935, %v4936
        %v4938 = vrot.slane %v4513, 6
        %v4939 = vrot.slane %v4515, 6
        %v4940 = vsel %vm4787, %v4938, %v4939
        %v4941 = vrot.slane %v4555, 6
        %v4942 = vrot.slane %v4557, 6
        %v4943 = vsel %vm4787, %v4941, %v4942
        %v4944 = vrot.slane %v4597, 6
        %v4945 = vrot.slane %v4599, 6
        %v4946 = vsel %vm4787, %v4944, %v4945
        %v4947 = vrot.slane %v4639, 6
        %v4948 = vrot.slane %v4641, 6
        %v4949 = vsel %vm4787, %v4947, %v4948
        %v4950 = vrot.slane %v4681, 6
        %v4951 = vrot.slane %v4683, 6
        %v4952 = vsel %vm4787, %v4950, %v4951
        %v4953 = vrot.slane %v4723, 6
        %v4954 = vrot.slane %v4725, 6
        %v4955 = vsel %vm4787, %v4953, %v4954
        %v4968 = vadd.f32 %v4896, %v4922
        %v4969 = vadd.f32 %v4897, %v4925
        %v4970 = vadd.f32 %v4898, %v4928
        %v4971 = vadd.f32 %v4899, %v4931
        %v4972 = vadd.f32 %v4900, %v4934
        %v4973 = vadd.f32 %v4901, %v4937
        %v4974 = vadd.f32 %v4902, %v4940
        %v4975 = vadd.f32 %v4903, %v4943
        %v4976 = vadd.f32 %v4904, %v4946
        %v4977 = vadd.f32 %v4905, %v4949
        %v4978 = vadd.f32 %v4906, %v4952
        %v4979 = vadd.f32 %v4907, %v4955
        %v4992 = vrot.slane %v4968, 5
        %v4993 = vrot.slane %v4969, 5
        %v4994 = vrot.slane %v4970, 5
        %v4995 = vrot.slane %v4971, 5
        %v4996 = vrot.slane %v4972, 5
        %v4997 = vrot.slane %v4973, 5
        %v4998 = vrot.slane %v4974, 5
        %v4999 = vrot.slane %v4975, 5
        %v5000 = vrot.slane %v4976, 5
        %v5001 = vrot.slane %v4977, 5
        %v5002 = vrot.slane %v4978, 5
        %v5003 = vrot.slane %v4979, 5
        %5016 = vst [vmem:[%s221] sm:$0x38] %v4992
        %5017 = vst [vmem:[%s221 + $0x8] sm:$0x38] %v4993
        %5018 = vst [vmem:[%s221 + $0x10] sm:$0x38] %v4994
        %5019 = vst [vmem:[%s221 + $0x18] sm:$0x38] %v4995
        %5020 = vst [vmem:[%s221 + $0x20] sm:$0x38] %v4996
        %5021 = vst [vmem:[%s221 + $0x28] sm:$0x38] %v4997
        %5022 = vst [vmem:[%s221 + $0x30] sm:$0x38] %v4998
        %5023 = vst [vmem:[%s221 + $0x38] sm:$0x38] %v4999
        %5024 = vst [vmem:[%s221 + $0x40] sm:$0x38] %v5000
        %5025 = vst [vmem:[%s221 + $0x48] sm:$0x38] %v5001
        %5026 = vst [vmem:[%s221 + $0x50] sm:$0x38] %v5002
        %5027 = vst [vmem:[%s221 + $0x58] sm:$0x38] %v5003
        %v5040 = vrot.slane %v225, 4
        %v5041 = vrot.slane %v226, 4
        %v5042 = vrot.slane %v227, 4
        %v5043 = vrot.slane %v228, 4
        %v5044 = vrot.slane %v229, 4
        %v5045 = vrot.slane %v230, 4
        %v5046 = vrot.slane %v231, 4
        %v5047 = vrot.slane %v232, 4
        %v5048 = vrot.slane %v233, 4
        %v5049 = vrot.slane %v234, 4
        %v5050 = vrot.slane %v235, 4
        %v5051 = vrot.slane %v236, 4
        %5064 = vst [vmem:[%s221] sm:$0xc0] %v5040
        %5065 = vst [vmem:[%s221 + $0x8] sm:$0xc0] %v5041
        %5066 = vst [vmem:[%s221 + $0x10] sm:$0xc0] %v5042
        %5067 = vst [vmem:[%s221 + $0x18] sm:$0xc0] %v5043
        %5068 = vst [vmem:[%s221 + $0x20] sm:$0xc0] %v5044
        %5069 = vst [vmem:[%s221 + $0x28] sm:$0xc0] %v5045
        %5070 = vst [vmem:[%s221 + $0x30] sm:$0xc0] %v5046
        %5071 = vst [vmem:[%s221 + $0x38] sm:$0xc0] %v5047
        %5072 = vst [vmem:[%s221 + $0x40] sm:$0xc0] %v5048
        %5073 = vst [vmem:[%s221 + $0x48] sm:$0xc0] %v5049
        %5074 = vst [vmem:[%s221 + $0x50] sm:$0xc0] %v5050
        %5075 = vst [vmem:[%s221 + $0x58] sm:$0xc0] %v5051
        %5076 = vst [vmem:[%s221 + $0x60] sm:$0x1] %v5040
        %5077 = vst [vmem:[%s221 + $0x68] sm:$0x1] %v5041
        %5078 = vst [vmem:[%s221 + $0x70] sm:$0x1] %v5042
        %5079 = vst [vmem:[%s221 + $0x78] sm:$0x1] %v5043
        %5080 = vst [vmem:[%s221 + $0x80] sm:$0x1] %v5044
        %5081 = vst [vmem:[%s221 + $0x88] sm:$0x1] %v5045
        %5082 = vst [vmem:[%s221 + $0x90] sm:$0x1] %v5046
        %5083 = vst [vmem:[%s221 + $0x98] sm:$0x1] %v5047
        %5084 = vst [vmem:[%s221 + $0xa0] sm:$0x1] %v5048
        %5085 = vst [vmem:[%s221 + $0xa8] sm:$0x1] %v5049
        %5086 = vst [vmem:[%s221 + $0xb0] sm:$0x1] %v5050
        %5087 = vst [vmem:[%s221 + $0xb8] sm:$0x1] %v5051
        %s5088 = sand.u32 %s97, 1
        %s5089 = scalar_lea.sflag [#allocation4], %s5088
        %s5090 = sand.u32 %s97, 1
        %s5091 = smul.addr %s5090, 192
        %s5092 = scalar_lea.vmem [#allocation8], %s5091
        // Predicated region
        $region45: #{tpu_custom_call.1} parent=31 // pred_check
          %p5093 = pneg %p107
        $region46: #{tpu_custom_call.1} parent=31 // pred_check_branch
          %5095 = sbr.rel (%p5093) target = $region48
        $region47: #{tpu_custom_call.1} parent=31 // pred_region
          %s5096 = smul.u32 12, %s21
          %5098 = vsyncadd %s5089, 0
          %s5099 = smul.addr %s5096, 8
          %s5100 = scalar_lea.hbm %s3, %s5099
          %s5101 = sshll.u32 %s5092, 4
          %s5102 = int_to_ptr.vmem [resolvable:$true] %s5101
          %s5103 = sshll.u32 %s5100, 4
          %s5104 = int_to_ptr.hbm [resolvable:$true] %s5103
          %5109 = dma.vmem_to_hbm [thread:$0]  %s5102, 3072, %s5104, %s5089, 1536, 3072, 96
        $region48: #{tpu_custom_call.1} parent=31 // pred_fallthru
          _
      $region32: #{tpu_custom_call.1} parent=5 // pred_fallthru
        _
      %p5110 = scmp.le.s32.totalorder 2, %s16
      // Predicated region
      $region49: #{tpu_custom_call.1} parent=5 // pred_check
        %p5111 = pneg %p5110
      $region50: #{tpu_custom_call.1} parent=5 // pred_check_branch
        %5113 = sbr.rel (%p5111) target = $region52
      $region51: #{tpu_custom_call.1} parent=5 // pred_region
        %s5114 = ssub.s32 %s16, 2
        // Predicated region
        $region53: #{tpu_custom_call.1} parent=51 // pred_check
          %p5115 = pneg %p113
        $region54: #{tpu_custom_call.1} parent=51 // pred_check_branch
          %5117 = sbr.rel (%p5115) target = $region56
        $region55: #{tpu_custom_call.1} parent=51 // pred_region
          %s5118 = sand.u32 %s98, 1
          %s5119 = scalar_lea.sflag [#allocation4], %s5118
          %s5120 = sand.u32 %s98, 1
          %s5121 = smul.addr %s5120, 192
          %s5122 = scalar_lea.vmem [#allocation8], %s5121
          %5124 = dma.done %s5119, 3072
        $region56: #{tpu_custom_call.1} parent=51 // pred_fallthru
          _
      $region52: #{tpu_custom_call.1} parent=5 // pred_fallthru
        _
    $region6: #{tpu_custom_call.1} parent=1 // loop_footer
      %s20 = sadd.s32 1, %s16
    $region7: #{tpu_custom_call.1} parent=1 // loop_footer_branch
      %15 = sbr.rel target = $region3
    $region8: #{tpu_custom_call.1} parent=1 // loop_exit
      _
    %5125 = vsyncpa [#allocation3], 1
    %s5126 = scalar_lea.sflag [#allocation3], 1
    %5127 = vsyncpa %s5126, 1
    %5128 = vsyncpa [#allocation6], 1
    %5129 = vsyncpa [#allocation4], 1
    %s5130 = scalar_lea.sflag [#allocation4], 1
    %5131 = vsyncpa %s5130, 1

</llo_original>
